<compile_context>
chip_gen: v6e
topology: v6e:2x2x1
jax: 0.10.0
libtpu: 0.0.40
codegen_flags: <defaults>
</compile_context>

<pallas_src>
import functools

import numpy as np

import jax
import jax.numpy as jnp
from jax import lax
from jax.experimental import pallas as pl
from jax.experimental.pallas import tpu as pltpu


_K = 3        # active kernel size (change_kernel_size(3))
_PAD = 1      # padding for the active 3x3 kernel (dilation=1)
_VMEM_LIMIT = 32 * 1024 * 1024   # safe on v5e/v6e and under v7x's 64 MiB


# --------------------------------------------------------------------------
# parameter / mask preparation (trace-time glue, plain JAX + numpy)
# --------------------------------------------------------------------------
def _active_depthwise_filter(w_max_dw, transform):
    """OFA kernel transform: slice the 3x3 center of the stored 5x5 depthwise
    filter and apply the learned 9x9 matrix (F.linear(x, M) == x @ M.T)."""
    c = w_max_dw.shape[0]
    sub = w_max_dw[:, 0, 1:4, 1:4].reshape(c, _K * _K)
    return (sub @ transform.T).reshape(c, _K, _K)


def _combined_weight_taps(w_max_dw, transform, w_pw):
    """wct9[u*3+v, co, ci] = w_dw[ci,u,v] * w_pw[co,ci]:
    depthwise + 1x1 pointwise folded into 9 per-tap GEMM weights."""
    w3 = _active_depthwise_filter(w_max_dw, transform)          # (C_in, 3, 3)
    p = w_pw[:, :, 0, 0]                                        # (C_out_s, C_in)
    wt = jnp.einsum("cuv,oc->uvoc", w3, p)                      # (3,3,C_out_s,C_in)
    return wt.reshape(_K * _K, p.shape[0], w3.shape[0])         # (9, C_out_s, C_in)


def _tap_rolls_and_masks(h, w, nb):
    """Static lane-roll amounts + per-sample-tiled validity masks realizing the
    3x3 neighbourhood (zero padding 1) directly on the flattened (NB*H*W,)
    lane axis: tap (u,v) at output index m reads act[m + (u-1)*W + (v-1)],
    valid only where the un-padded neighbour exists inside the SAME sample,
    so both image-border wraps and sample-boundary wraps are zeroed."""
    hw = h * w
    lb = nb * hw
    hh, ww = np.meshgrid(np.arange(h), np.arange(w), indexing="ij")
    shifts, masks = [], []
    for u in range(_K):
        for v in range(_K):
            dh, dw = u - _PAD, v - _PAD
            valid = ((hh + dh >= 0) & (hh + dh < h) &
                     (ww + dw >= 0) & (ww + dw < w))
            masks.append(np.tile(valid.reshape(hw), nb).astype(np.float32))
            shifts.append(int((-(dh * w + dw)) % lb))
    return tuple(shifts), jnp.asarray(np.stack(masks, axis=0))   # tuple, (9, lb)


def _choose_batch_block(n, hw, c_max, bytes_budget=2 << 20):
    """Largest divisor NB of N such that one (c_max, NB*HW) f32 tile fits the
    per-buffer budget (keeps double-buffered in/out tiles well under VMEM)."""
    best = 1
    for nb in range(1, n + 1):
        if n % nb == 0 and c_max * nb * hw * 4 <= bytes_budget:
            best = nb
    return best


# --------------------------------------------------------------------------
# stage kernel: [fused previous-BN affine] -> ReLU -> 9 accumulating
# (depthwise*pointwise) GEMM taps -> per-block partial BN statistics
# --------------------------------------------------------------------------
def _make_stage_kernel(shifts, fuse_affine, matmul_dtype):
    def body(x, wct_ref, mask_ref, y_ref, stats_ref):
        act = jnp.maximum(x, 0.0)                         # (C_in, LB), f32 VPU

        acc = None
        for t, s in enumerate(shifts):                    # unrolled 9 taps
            rolled = act if s == 0 else pltpu.roll(act, shift=s, axis=1)
            tap = rolled * mask_ref[t:t + 1, :]           # zero padding mask
            w_t = wct_ref[t]                              # (C_out, C_in)
            if matmul_dtype != jnp.float32:
                w_t = w_t.astype(matmul_dtype)
                tap = tap.astype(matmul_dtype)
            contrib = jnp.dot(w_t, tap, preferred_element_type=jnp.float32)
            acc = contrib if acc is None else acc + contrib

        y_ref[...] = acc.astype(y_ref.dtype)              # (C_out, LB) lane-dense

        # per-block partial BatchNorm sums (combined in the wrapper epilogue)
        s1 = jnp.sum(acc, axis=1, keepdims=True)
        s2 = jnp.sum(acc * acc, axis=1, keepdims=True)
        stats_ref[...] = jnp.concatenate([s1, s2], axis=1)   # (C_out, 2)

    if fuse_affine:
        def kernel(x_ref, scale_ref, shift_ref, wct_ref, mask_ref,
                   y_ref, stats_ref):
            x = x_ref[...] * scale_ref[...] + shift_ref[...]
            body(x, wct_ref, mask_ref, y_ref, stats_ref)
    else:
        def kernel(x_ref, wct_ref, mask_ref, y_ref, stats_ref):
            body(x_ref[...], wct_ref, mask_ref, y_ref, stats_ref)

    return kernel


def _sep_stage(x_cl, wct9, masks, shifts, lb, scale=None, shift=None,
               *, matmul_dtype=jnp.float32):
    c_in, l = x_cl.shape
    c_out = wct9.shape[1]
    num_blocks = l // lb
    fuse_affine = scale is not None
    kernel = _make_stage_kernel(shifts, fuse_affine, matmul_dtype)

    in_specs = [pl.BlockSpec((c_in, lb), lambda n: (0, n))]
    args = [x_cl]
    if fuse_affine:
        in_specs += [pl.BlockSpec((c_in, 1), lambda n: (0, 0)),
                     pl.BlockSpec((c_in, 1), lambda n: (0, 0))]
        args += [scale, shift]
    in_specs += [pl.BlockSpec((_K * _K, c_out, c_in), lambda n: (0, 0, 0)),
                 pl.BlockSpec((_K * _K, lb), lambda n: (0, 0))]
    args += [wct9, masks]

    y, stats = pl.pallas_call(
        kernel,
        out_shape=(jax.ShapeDtypeStruct((c_out, l), jnp.float32),
                   jax.ShapeDtypeStruct((num_blocks, c_out, 2), jnp.float32)),
        grid_spec=pltpu.PrefetchScalarGridSpec(
            num_scalar_prefetch=0,
            grid=(num_blocks,),
            in_specs=in_specs,
            out_specs=[pl.BlockSpec((c_out, lb), lambda n: (0, n)),
                       pl.BlockSpec((None, c_out, 2), lambda n: (n, 0, 0))]),
        compiler_params=pltpu.CompilerParams(
            # no cross-step state -> fully parallel (uses both TCs on v7x)
            dimension_semantics=("parallel",),
            vmem_limit_bytes=_VMEM_LIMIT),
    )(*args)
    return y, stats


def _finalize_stats(partials, m_total, eps):
    """Combine per-block partial (sum, sumsq) into mean / rsqrt(var+eps)."""
    total = jnp.sum(partials, axis=0)                     # (C, 2) tiny jnp op
    mean = total[:, 0] / jnp.float32(m_total)
    var = total[:, 1] / jnp.float32(m_total) - mean * mean
    rstd = lax.rsqrt(var + jnp.float32(eps))
    return mean, rstd


# --------------------------------------------------------------------------
# final BatchNorm apply (bn2): lane-dense, in-place (aliased), parallel blocks
# --------------------------------------------------------------------------
def _bn_apply_inplace(y, scale, shift, lb):
    c, l = y.shape
    num_blocks = l // lb

    def kernel(y_ref, s_ref, b_ref, o_ref):
        o_ref[...] = (y_ref[...] * s_ref[...] + b_ref[...]).astype(o_ref.dtype)

    return pl.pallas_call(
        kernel,
        out_shape=jax.ShapeDtypeStruct((c, l), jnp.float32),
        grid_spec=pltpu.PrefetchScalarGridSpec(
            num_scalar_prefetch=0,
            grid=(num_blocks,),
            in_specs=[pl.BlockSpec((c, lb), lambda n: (0, n)),
                      pl.BlockSpec((c, 1), lambda n: (0, 0)),
                      pl.BlockSpec((c, 1), lambda n: (0, 0))],
            out_specs=pl.BlockSpec((c, lb), lambda n: (0, n))),
        input_output_aliases={0: 0},      # in-place affine, no extra HBM buffer
        compiler_params=pltpu.CompilerParams(
            dimension_semantics=("parallel",),
            vmem_limit_bytes=_VMEM_LIMIT),
    )(y, scale, shift)


# --------------------------------------------------------------------------
# public wrapper: full KernelTransformSepConv forward
# --------------------------------------------------------------------------
@functools.partial(jax.jit,
                   static_argnames=("stride", "eps", "use_bf16_matmul"))
def kernel_transform_sep_conv(x, w5_dw1, kt1, w_pw1, gamma1, beta1,
                              w5_dw2, kt2, w_pw2, gamma2, beta2,
                              *, stride=1, eps=1e-5, use_bf16_matmul=False):
    """op(x) -> bn1 -> op2 -> bn2 with active kernel size 3 (dil=1, pad=1).

    Set use_bf16_matmul=True on v6e/v7x to run the 9 tap GEMMs with bf16
    operands (f32 accumulation); keep False for strict f32 parity.
    """
    # TODO(synk): stride>1 (reduction-cell) depthwise path is not implemented
    # in the fused lane-rolled kernel; the active config here is stride=1.
    assert stride == 1, "only the stride=1 (normal cell) path is implemented"

    n, c_in, h, w = x.shape
    c_mid = w_pw1.shape[0]          # == c_in
    c_out = w_pw2.shape[0]
    hw = h * w
    l = n * hw
    assert hw % 128 == 0, "lane-dense layout assumes H*W is a multiple of 128"

    nb = _choose_batch_block(n, hw, max(c_in, c_mid, c_out))
    lb = nb * hw
    shifts, masks = _tap_rolls_and_masks(h, w, nb)

    wct1 = _combined_weight_taps(w5_dw1, kt1, w_pw1)    # (9, c_mid, c_in)
    wct2 = _combined_weight_taps(w5_dw2, kt2, w_pw2)    # (9, c_out, c_mid)
    mdt = jnp.bfloat16 if use_bf16_matmul else jnp.float32

    # NCHW -> channels-major lane-dense (C, N*H*W): batch folded onto the
    # 128-wide lane axis so every block is big and every store is full-lane.
    x_cl = jnp.transpose(x, (1, 0, 2, 3)).reshape(c_in, l)

    # stage 1 (no fused affine: the "previous BN" is the identity).
    y1, p1 = _sep_stage(x_cl, wct1, masks, shifts, lb, matmul_dtype=mdt)
    mean1, rstd1 = _finalize_stats(p1, l, eps)
    scale1 = (rstd1 * gamma1.astype(jnp.float32)).reshape(c_mid, 1)
    shift1 = (beta1.astype(jnp.float32).reshape(c_mid, 1)
              - mean1.reshape(c_mid, 1) * scale1)

    # stage 2: bn1's affine + the ReLU are fused into the stage-2 kernel.
    y2, p2 = _sep_stage(y1, wct2, masks, shifts, lb, scale1, shift1,
                        matmul_dtype=mdt)
    mean2, rstd2 = _finalize_stats(p2, l, eps)
    scale2 = (rstd2 * gamma2.astype(jnp.float32)).reshape(c_out, 1)
    shift2 = (beta2.astype(jnp.float32).reshape(c_out, 1)
              - mean2.reshape(c_out, 1) * scale2)

    # bn2 finalize, in-place over the same big lane-dense blocks.
    out_cl = _bn_apply_inplace(y2, scale2, shift2, lb)
    return jnp.transpose(out_cl.reshape(c_out, n, h, w), (1, 0, 2, 3))


# --------------------------------------------------------------------------
# pure-JAX reference matching the PyTorch forward
# --------------------------------------------------------------------------
def _sep_stage_reference(x, w_max_dw, transform, w_pw, stride):
    c_in = x.shape[1]
    w3 = _active_depthwise_filter(w_max_dw, transform).reshape(c_in, 1, _K, _K)
    y = jnp.maximum(x, 0.0)
    y = lax.conv_general_dilated(
        y, w3, window_strides=(stride, stride),
        padding=((_PAD, _PAD), (_PAD, _PAD)),
        dimension_numbers=("NCHW", "OIHW", "NCHW"),
        feature_group_count=c_in)
    y = lax.conv_general_dilated(
        y, w_pw, window_strides=(1, 1), padding="VALID",
        dimension_numbers=("NCHW", "OIHW", "NCHW"))
    return y


def _bn_reference(y, gamma, beta, eps):
    mean = jnp.mean(y, axis=(0, 2, 3), keepdims=True)
    var = jnp.mean((y - mean) ** 2, axis=(0, 2, 3), keepdims=True)
    return ((y - mean) / jnp.sqrt(var + eps) * gamma.reshape(1, -1, 1, 1)
            + beta.reshape(1, -1, 1, 1))


def reference(x, w5_dw1, kt1, w_pw1, gamma1, beta1,
              w5_dw2, kt2, w_pw2, gamma2, beta2, *, stride=1, eps=1e-5):
    y = _sep_stage_reference(x, w5_dw1, kt1, w_pw1, stride)
    y = _bn_reference(y, gamma1, beta1, eps)
    y = _sep_stage_reference(y, w5_dw2, kt2, w_pw2, 1)
    return _bn_reference(y, gamma2, beta2, eps)


if __name__ == "__main__":
    key = jax.random.PRNGKey(0)
    ks = jax.random.split(key, 11)

    N, C_in, C_out, H, W = 2, 4, 8, 16, 16
    x = jax.random.normal(ks[0], (N, C_in, H, W), jnp.float32)

    # synthetic parameters with the shapes the module implies:
    # depthwise max-kernel weights (C,1,5,5), 5->3 transform matrices (9,9),
    # pointwise weights (C_out_s, C_in, 1, 1), BN affine params.
    w5_dw1 = 0.2 * jax.random.normal(ks[1], (C_in, 1, 5, 5), jnp.float32)
    kt1 = jnp.eye(9, dtype=jnp.float32) + 0.05 * jax.random.normal(ks[2], (9, 9), jnp.float32)
    w_pw1 = 0.3 * jax.random.normal(ks[3], (C_in, C_in, 1, 1), jnp.float32)
    gamma1 = 1.0 + 0.1 * jax.random.normal(ks[4], (C_in,), jnp.float32)
    beta1 = 0.1 * jax.random.normal(ks[5], (C_in,), jnp.float32)

    w5_dw2 = 0.2 * jax.random.normal(ks[6], (C_in, 1, 5, 5), jnp.float32)
    kt2 = jnp.eye(9, dtype=jnp.float32) + 0.05 * jax.random.normal(ks[7], (9, 9), jnp.float32)
    w_pw2 = 0.3 * jax.random.normal(ks[8], (C_out, C_in, 1, 1), jnp.float32)
    gamma2 = 1.0 + 0.1 * jax.random.normal(ks[9], (C_out,), jnp.float32)
    beta2 = 0.1 * jax.random.normal(ks[10], (C_out,), jnp.float32)

    out = kernel_transform_sep_conv(x, w5_dw1, kt1, w_pw1, gamma1, beta1,
                                    w5_dw2, kt2, w_pw2, gamma2, beta2,
                                    stride=1)
    out = jax.block_until_ready(out)

    ref = reference(x, w5_dw1, kt1, w_pw1, gamma1, beta1,
                    w5_dw2, kt2, w_pw2, gamma2, beta2, stride=1)
    assert out.shape == (N, C_out, H, W), out.shape
    max_err = float(jnp.max(jnp.abs(out - ref)))
    assert jnp.allclose(out, ref, rtol=1e-4, atol=1e-4), max_err

    print("KERNEL_OK")
</pallas_src>

<mosaic_0001>
module attributes {stable_mosaic.version = 11 : i64} {
  func.func @kernel(%arg0: i32, %arg1: memref<4x512xf32, #tpu.memory_space<vmem>>, %arg2: memref<9x4x4xf32, #tpu.memory_space<vmem>>, %arg3: memref<9x512xf32, #tpu.memory_space<vmem>>, %arg4: memref<4x512xf32, #tpu.memory_space<vmem>>, %arg5: memref<1x4x2xf32, #tpu.memory_space<vmem>>) attributes {dimension_semantics = [#tpu.dimension_semantics<parallel>], iteration_bounds = array<i64: 1>, scalar_prefetch = 0 : i64, scratch_operands = 0 : i64, tpu.core_type = #tpu.core_type<tc>, window_params = [{transform_indices = @transform_0, window_bounds = array<i64: 4, 512>}, {pipeline_mode = #tpu.pipeline_mode<synchronous>, transform_indices = @transform_1, window_bounds = array<i64: 9, 4, 4>}, {pipeline_mode = #tpu.pipeline_mode<synchronous>, transform_indices = @transform_2, window_bounds = array<i64: 9, 512>}, {transform_indices = @transform_3, window_bounds = array<i64: 4, 512>}, {transform_indices = @transform_4, window_bounds = array<i64: 1, 4, 2>}]} {
    %c0 = arith.constant 0 : index
    %c0_0 = arith.constant 0 : index
    %0 = vector.load %arg1[%c0, %c0_0] : memref<4x512xf32, #tpu.memory_space<vmem>>, vector<4x512xf32>
    %cst = arith.constant 0.000000e+00 : f32
    %1 = vector.broadcast %cst : f32 to vector<4x512xf32>
    %2 = arith.maximumf %0, %1 : vector<4x512xf32>
    %c17_i32 = arith.constant 17 : i32
    %3 = tpu.dynamic_rotate %2 by %c17_i32 dim 1 : vector<4x512xf32>, i32 -> vector<4x512xf32>
    %c0_1 = arith.constant 0 : index
    %c0_2 = arith.constant 0 : index
    %4 = vector.load %arg3[%c0_1, %c0_2] : memref<9x512xf32, #tpu.memory_space<vmem>>, vector<1x512xf32>
    %5 = vector.broadcast %4 : vector<1x512xf32> to vector<4x512xf32>
    %6 = arith.mulf %3, %5 : vector<4x512xf32>
    %c0_3 = arith.constant 0 : index
    %c0_4 = arith.constant 0 : index
    %c0_5 = arith.constant 0 : index
    %7 = vector.load %arg2[%c0_3, %c0_4, %c0_5] : memref<9x4x4xf32, #tpu.memory_space<vmem>>, vector<1x4x4xf32>
    %8 = vector.shape_cast %7 : vector<1x4x4xf32> to vector<4x4xf32>
    %cst_6 = arith.constant dense<0.000000e+00> : vector<4x512xf32>
    %9 = tpu.matmul %8, %6, %cst_6 {dimension_numbers = #tpu.dot_dimension_numbers<[1], [0], [0], [1], [0, 0, 1, 1], [], []>} : vector<4x4xf32>, vector<4x512xf32>, vector<4x512xf32> -> vector<4x512xf32>
    %c16_i32 = arith.constant 16 : i32
    %10 = tpu.dynamic_rotate %2 by %c16_i32 dim 1 : vector<4x512xf32>, i32 -> vector<4x512xf32>
    %c1 = arith.constant 1 : index
    %c0_7 = arith.constant 0 : index
    %11 = vector.load %arg3[%c1, %c0_7] : memref<9x512xf32, #tpu.memory_space<vmem>>, vector<1x512xf32>
    %12 = vector.broadcast %11 : vector<1x512xf32> to vector<4x512xf32>
    %13 = arith.mulf %10, %12 : vector<4x512xf32>
    %c1_8 = arith.constant 1 : index
    %c0_9 = arith.constant 0 : index
    %c0_10 = arith.constant 0 : index
    %14 = vector.load %arg2[%c1_8, %c0_9, %c0_10] : memref<9x4x4xf32, #tpu.memory_space<vmem>>, vector<1x4x4xf32>
    %15 = vector.shape_cast %14 : vector<1x4x4xf32> to vector<4x4xf32>
    %cst_11 = arith.constant dense<0.000000e+00> : vector<4x512xf32>
    %16 = tpu.matmul %15, %13, %cst_11 {dimension_numbers = #tpu.dot_dimension_numbers<[1], [0], [0], [1], [0, 0, 1, 1], [], []>} : vector<4x4xf32>, vector<4x512xf32>, vector<4x512xf32> -> vector<4x512xf32>
    %17 = arith.addf %9, %16 : vector<4x512xf32>
    %c15_i32 = arith.constant 15 : i32
    %18 = tpu.dynamic_rotate %2 by %c15_i32 dim 1 : vector<4x512xf32>, i32 -> vector<4x512xf32>
    %c2 = arith.constant 2 : index
    %c0_12 = arith.constant 0 : index
    %19 = vector.load %arg3[%c2, %c0_12] : memref<9x512xf32, #tpu.memory_space<vmem>>, vector<1x512xf32>
    %20 = vector.broadcast %19 : vector<1x512xf32> to vector<4x512xf32>
    %21 = arith.mulf %18, %20 : vector<4x512xf32>
    %c2_13 = arith.constant 2 : index
    %c0_14 = arith.constant 0 : index
    %c0_15 = arith.constant 0 : index
    %22 = vector.load %arg2[%c2_13, %c0_14, %c0_15] : memref<9x4x4xf32, #tpu.memory_space<vmem>>, vector<1x4x4xf32>
    %23 = vector.shape_cast %22 : vector<1x4x4xf32> to vector<4x4xf32>
    %cst_16 = arith.constant dense<0.000000e+00> : vector<4x512xf32>
    %24 = tpu.matmul %23, %21, %cst_16 {dimension_numbers = #tpu.dot_dimension_numbers<[1], [0], [0], [1], [0, 0, 1, 1], [], []>} : vector<4x4xf32>, vector<4x512xf32>, vector<4x512xf32> -> vector<4x512xf32>
    %25 = arith.addf %17, %24 : vector<4x512xf32>
    %c1_i32 = arith.constant 1 : i32
    %26 = tpu.dynamic_rotate %2 by %c1_i32 dim 1 : vector<4x512xf32>, i32 -> vector<4x512xf32>
    %c3 = arith.constant 3 : index
    %c0_17 = arith.constant 0 : index
    %27 = vector.load %arg3[%c3, %c0_17] : memref<9x512xf32, #tpu.memory_space<vmem>>, vector<1x512xf32>
    %28 = vector.broadcast %27 : vector<1x512xf32> to vector<4x512xf32>
    %29 = arith.mulf %26, %28 : vector<4x512xf32>
    %c3_18 = arith.constant 3 : index
    %c0_19 = arith.constant 0 : index
    %c0_20 = arith.constant 0 : index
    %30 = vector.load %arg2[%c3_18, %c0_19, %c0_20] : memref<9x4x4xf32, #tpu.memory_space<vmem>>, vector<1x4x4xf32>
    %31 = vector.shape_cast %30 : vector<1x4x4xf32> to vector<4x4xf32>
    %cst_21 = arith.constant dense<0.000000e+00> : vector<4x512xf32>
    %32 = tpu.matmul %31, %29, %cst_21 {dimension_numbers = #tpu.dot_dimension_numbers<[1], [0], [0], [1], [0, 0, 1, 1], [], []>} : vector<4x4xf32>, vector<4x512xf32>, vector<4x512xf32> -> vector<4x512xf32>
    %33 = arith.addf %25, %32 : vector<4x512xf32>
    %c4 = arith.constant 4 : index
    %c0_22 = arith.constant 0 : index
    %34 = vector.load %arg3[%c4, %c0_22] : memref<9x512xf32, #tpu.memory_space<vmem>>, vector<1x512xf32>
    %35 = vector.broadcast %34 : vector<1x512xf32> to vector<4x512xf32>
    %36 = arith.mulf %2, %35 : vector<4x512xf32>
    %c4_23 = arith.constant 4 : index
    %c0_24 = arith.constant 0 : index
    %c0_25 = arith.constant 0 : index
    %37 = vector.load %arg2[%c4_23, %c0_24, %c0_25] : memref<9x4x4xf32, #tpu.memory_space<vmem>>, vector<1x4x4xf32>
    %38 = vector.shape_cast %37 : vector<1x4x4xf32> to vector<4x4xf32>
    %cst_26 = arith.constant dense<0.000000e+00> : vector<4x512xf32>
    %39 = tpu.matmul %38, %36, %cst_26 {dimension_numbers = #tpu.dot_dimension_numbers<[1], [0], [0], [1], [0, 0, 1, 1], [], []>} : vector<4x4xf32>, vector<4x512xf32>, vector<4x512xf32> -> vector<4x512xf32>
    %40 = arith.addf %33, %39 : vector<4x512xf32>
    %c511_i32 = arith.constant 511 : i32
    %41 = tpu.dynamic_rotate %2 by %c511_i32 dim 1 : vector<4x512xf32>, i32 -> vector<4x512xf32>
    %c5 = arith.constant 5 : index
    %c0_27 = arith.constant 0 : index
    %42 = vector.load %arg3[%c5, %c0_27] : memref<9x512xf32, #tpu.memory_space<vmem>>, vector<1x512xf32>
    %43 = vector.broadcast %42 : vector<1x512xf32> to vector<4x512xf32>
    %44 = arith.mulf %41, %43 : vector<4x512xf32>
    %c5_28 = arith.constant 5 : index
    %c0_29 = arith.constant 0 : index
    %c0_30 = arith.constant 0 : index
    %45 = vector.load %arg2[%c5_28, %c0_29, %c0_30] : memref<9x4x4xf32, #tpu.memory_space<vmem>>, vector<1x4x4xf32>
    %46 = vector.shape_cast %45 : vector<1x4x4xf32> to vector<4x4xf32>
    %cst_31 = arith.constant dense<0.000000e+00> : vector<4x512xf32>
    %47 = tpu.matmul %46, %44, %cst_31 {dimension_numbers = #tpu.dot_dimension_numbers<[1], [0], [0], [1], [0, 0, 1, 1], [], []>} : vector<4x4xf32>, vector<4x512xf32>, vector<4x512xf32> -> vector<4x512xf32>
    %48 = arith.addf %40, %47 : vector<4x512xf32>
    %c497_i32 = arith.constant 497 : i32
    %49 = tpu.dynamic_rotate %2 by %c497_i32 dim 1 : vector<4x512xf32>, i32 -> vector<4x512xf32>
    %c6 = arith.constant 6 : index
    %c0_32 = arith.constant 0 : index
    %50 = vector.load %arg3[%c6, %c0_32] : memref<9x512xf32, #tpu.memory_space<vmem>>, vector<1x512xf32>
    %51 = vector.broadcast %50 : vector<1x512xf32> to vector<4x512xf32>
    %52 = arith.mulf %49, %51 : vector<4x512xf32>
    %c6_33 = arith.constant 6 : index
    %c0_34 = arith.constant 0 : index
    %c0_35 = arith.constant 0 : index
    %53 = vector.load %arg2[%c6_33, %c0_34, %c0_35] : memref<9x4x4xf32, #tpu.memory_space<vmem>>, vector<1x4x4xf32>
    %54 = vector.shape_cast %53 : vector<1x4x4xf32> to vector<4x4xf32>
    %cst_36 = arith.constant dense<0.000000e+00> : vector<4x512xf32>
    %55 = tpu.matmul %54, %52, %cst_36 {dimension_numbers = #tpu.dot_dimension_numbers<[1], [0], [0], [1], [0, 0, 1, 1], [], []>} : vector<4x4xf32>, vector<4x512xf32>, vector<4x512xf32> -> vector<4x512xf32>
    %56 = arith.addf %48, %55 : vector<4x512xf32>
    %c496_i32 = arith.constant 496 : i32
    %57 = tpu.dynamic_rotate %2 by %c496_i32 dim 1 : vector<4x512xf32>, i32 -> vector<4x512xf32>
    %c7 = arith.constant 7 : index
    %c0_37 = arith.constant 0 : index
    %58 = vector.load %arg3[%c7, %c0_37] : memref<9x512xf32, #tpu.memory_space<vmem>>, vector<1x512xf32>
    %59 = vector.broadcast %58 : vector<1x512xf32> to vector<4x512xf32>
    %60 = arith.mulf %57, %59 : vector<4x512xf32>
    %c7_38 = arith.constant 7 : index
    %c0_39 = arith.constant 0 : index
    %c0_40 = arith.constant 0 : index
    %61 = vector.load %arg2[%c7_38, %c0_39, %c0_40] : memref<9x4x4xf32, #tpu.memory_space<vmem>>, vector<1x4x4xf32>
    %62 = vector.shape_cast %61 : vector<1x4x4xf32> to vector<4x4xf32>
    %cst_41 = arith.constant dense<0.000000e+00> : vector<4x512xf32>
    %63 = tpu.matmul %62, %60, %cst_41 {dimension_numbers = #tpu.dot_dimension_numbers<[1], [0], [0], [1], [0, 0, 1, 1], [], []>} : vector<4x4xf32>, vector<4x512xf32>, vector<4x512xf32> -> vector<4x512xf32>
    %64 = arith.addf %56, %63 : vector<4x512xf32>
    %c495_i32 = arith.constant 495 : i32
    %65 = tpu.dynamic_rotate %2 by %c495_i32 dim 1 : vector<4x512xf32>, i32 -> vector<4x512xf32>
    %c8 = arith.constant 8 : index
    %c0_42 = arith.constant 0 : index
    %66 = vector.load %arg3[%c8, %c0_42] : memref<9x512xf32, #tpu.memory_space<vmem>>, vector<1x512xf32>
    %67 = vector.broadcast %66 : vector<1x512xf32> to vector<4x512xf32>
    %68 = arith.mulf %65, %67 : vector<4x512xf32>
    %c8_43 = arith.constant 8 : index
    %c0_44 = arith.constant 0 : index
    %c0_45 = arith.constant 0 : index
    %69 = vector.load %arg2[%c8_43, %c0_44, %c0_45] : memref<9x4x4xf32, #tpu.memory_space<vmem>>, vector<1x4x4xf32>
    %70 = vector.shape_cast %69 : vector<1x4x4xf32> to vector<4x4xf32>
    %cst_46 = arith.constant dense<0.000000e+00> : vector<4x512xf32>
    %71 = tpu.matmul %70, %68, %cst_46 {dimension_numbers = #tpu.dot_dimension_numbers<[1], [0], [0], [1], [0, 0, 1, 1], [], []>} : vector<4x4xf32>, vector<4x512xf32>, vector<4x512xf32> -> vector<4x512xf32>
    %72 = arith.addf %64, %71 : vector<4x512xf32>
    %c0_47 = arith.constant 0 : index
    %c0_48 = arith.constant 0 : index
    %73 = vector.load %arg4[%c0_47, %c0_48] : memref<4x512xf32, #tpu.memory_space<vmem>>, vector<4x512xf32>
    tpu.vector_store %arg4[%c0_47, %c0_48], %72 {strides = array<i32>} : memref<4x512xf32, #tpu.memory_space<vmem>>, vector<4x512xf32>,
    %cst_49 = arith.constant dense<0.000000e+00> : vector<4xf32>
    %74 = vector.multi_reduction <add>, %72, %cst_49 [1] : vector<4x512xf32> to vector<4xf32>
    %75 = vector.shape_cast %74 : vector<4xf32> to vector<4x1xf32>
    %76 = arith.mulf %72, %72 : vector<4x512xf32>
    %cst_50 = arith.constant dense<0.000000e+00> : vector<4xf32>
    %77 = vector.multi_reduction <add>, %76, %cst_50 [1] : vector<4x512xf32> to vector<4xf32>
    %78 = vector.shape_cast %77 : vector<4xf32> to vector<4x1xf32>
    %79 = tpu.concatenate %75, %78 in 1 : vector<4x1xf32>, vector<4x1xf32> -> vector<4x2xf32>
    %c0_51 = arith.constant 0 : index
    %c0_52 = arith.constant 0 : index
    %c0_53 = arith.constant 0 : index
    %80 = vector.load %arg5[%c0_51, %c0_52, %c0_53] : memref<1x4x2xf32, #tpu.memory_space<vmem>>, vector<1x4x2xf32>
    %81 = vector.shape_cast %80 : vector<1x4x2xf32> to vector<4x2xf32>
    %82 = vector.shape_cast %79 : vector<4x2xf32> to vector<1x4x2xf32>
    tpu.vector_store %arg5[%c0_51, %c0_52, %c0_53], %82 {strides = array<i32>} : memref<1x4x2xf32, #tpu.memory_space<vmem>>, vector<1x4x2xf32>,
    return
  }
  func.func @transform_0(%arg0: i32) -> (i32, i32) {
    %c0_i32 = arith.constant 0 : i32
    %c0_i32_0 = arith.constant 0 : i32
    return %c0_i32, %arg0 : i32, i32
  }
  func.func @transform_1(%arg0: i32) -> (i32, i32, i32) {
    %c0_i32 = arith.constant 0 : i32
    %c0_i32_0 = arith.constant 0 : i32
    %c0_i32_1 = arith.constant 0 : i32
    %c0_i32_2 = arith.constant 0 : i32
    return %c0_i32, %c0_i32_0, %c0_i32_1 : i32, i32, i32
  }
  func.func @transform_2(%arg0: i32) -> (i32, i32) {
    %c0_i32 = arith.constant 0 : i32
    %c0_i32_0 = arith.constant 0 : i32
    %c0_i32_1 = arith.constant 0 : i32
    return %c0_i32, %c0_i32_0 : i32, i32
  }
  func.func @transform_3(%arg0: i32) -> (i32, i32) {
    %c0_i32 = arith.constant 0 : i32
    %c0_i32_0 = arith.constant 0 : i32
    return %c0_i32, %arg0 : i32, i32
  }
  func.func @transform_4(%arg0: i32) -> (i32, i32, i32) {
    %c0_i32 = arith.constant 0 : i32
    %c0_i32_0 = arith.constant 0 : i32
    %c0_i32_1 = arith.constant 0 : i32
    return %arg0, %c0_i32, %c0_i32_0 : i32, i32, i32
  }
}

module attributes {stable_mosaic.version = 11 : i64} {
  func.func @kernel(%arg0: i32, %arg1: memref<4x512xf32, #tpu.memory_space<vmem>>, %arg2: memref<4x1xf32, #tpu.memory_space<vmem>>, %arg3: memref<4x1xf32, #tpu.memory_space<vmem>>, %arg4: memref<9x8x4xf32, #tpu.memory_space<vmem>>, %arg5: memref<9x512xf32, #tpu.memory_space<vmem>>, %arg6: memref<8x512xf32, #tpu.memory_space<vmem>>, %arg7: memref<1x8x2xf32, #tpu.memory_space<vmem>>) attributes {dimension_semantics = [#tpu.dimension_semantics<parallel>], iteration_bounds = array<i64: 1>, scalar_prefetch = 0 : i64, scratch_operands = 0 : i64, tpu.core_type = #tpu.core_type<tc>, window_params = [{transform_indices = @transform_0, window_bounds = array<i64: 4, 512>}, {pipeline_mode = #tpu.pipeline_mode<synchronous>, transform_indices = @transform_1, window_bounds = array<i64: 4, 1>}, {pipeline_mode = #tpu.pipeline_mode<synchronous>, transform_indices = @transform_2, window_bounds = array<i64: 4, 1>}, {pipeline_mode = #tpu.pipeline_mode<synchronous>, transform_indices = @transform_3, window_bounds = array<i64: 9, 8, 4>}, {pipeline_mode = #tpu.pipeline_mode<synchronous>, transform_indices = @transform_4, window_bounds = array<i64: 9, 512>}, {transform_indices = @transform_5, window_bounds = array<i64: 8, 512>}, {transform_indices = @transform_6, window_bounds = array<i64: 1, 8, 2>}]} {
    %c0 = arith.constant 0 : index
    %c0_0 = arith.constant 0 : index
    %0 = vector.load %arg1[%c0, %c0_0] : memref<4x512xf32, #tpu.memory_space<vmem>>, vector<4x512xf32>
    %c0_1 = arith.constant 0 : index
    %c0_2 = arith.constant 0 : index
    %1 = vector.load %arg2[%c0_1, %c0_2] : memref<4x1xf32, #tpu.memory_space<vmem>>, vector<4x1xf32>
    %2 = vector.broadcast %1 : vector<4x1xf32> to vector<4x512xf32>
    %3 = arith.mulf %0, %2 : vector<4x512xf32>
    %c0_3 = arith.constant 0 : index
    %c0_4 = arith.constant 0 : index
    %4 = vector.load %arg3[%c0_3, %c0_4] : memref<4x1xf32, #tpu.memory_space<vmem>>, vector<4x1xf32>
    %5 = vector.broadcast %4 : vector<4x1xf32> to vector<4x512xf32>
    %6 = arith.addf %3, %5 : vector<4x512xf32>
    %cst = arith.constant 0.000000e+00 : f32
    %7 = vector.broadcast %cst : f32 to vector<4x512xf32>
    %8 = arith.maximumf %6, %7 : vector<4x512xf32>
    %c17_i32 = arith.constant 17 : i32
    %9 = tpu.dynamic_rotate %8 by %c17_i32 dim 1 : vector<4x512xf32>, i32 -> vector<4x512xf32>
    %c0_5 = arith.constant 0 : index
    %c0_6 = arith.constant 0 : index
    %10 = vector.load %arg5[%c0_5, %c0_6] : memref<9x512xf32, #tpu.memory_space<vmem>>, vector<1x512xf32>
    %11 = vector.broadcast %10 : vector<1x512xf32> to vector<4x512xf32>
    %12 = arith.mulf %9, %11 : vector<4x512xf32>
    %c0_7 = arith.constant 0 : index
    %c0_8 = arith.constant 0 : index
    %c0_9 = arith.constant 0 : index
    %13 = vector.load %arg4[%c0_7, %c0_8, %c0_9] : memref<9x8x4xf32, #tpu.memory_space<vmem>>, vector<1x8x4xf32>
    %14 = vector.shape_cast %13 : vector<1x8x4xf32> to vector<8x4xf32>
    %cst_10 = arith.constant dense<0.000000e+00> : vector<8x512xf32>
    %15 = tpu.matmul %14, %12, %cst_10 {dimension_numbers = #tpu.dot_dimension_numbers<[1], [0], [0], [1], [0, 0, 1, 1], [], []>} : vector<8x4xf32>, vector<4x512xf32>, vector<8x512xf32> -> vector<8x512xf32>
    %c16_i32 = arith.constant 16 : i32
    %16 = tpu.dynamic_rotate %8 by %c16_i32 dim 1 : vector<4x512xf32>, i32 -> vector<4x512xf32>
    %c1 = arith.constant 1 : index
    %c0_11 = arith.constant 0 : index
    %17 = vector.load %arg5[%c1, %c0_11] : memref<9x512xf32, #tpu.memory_space<vmem>>, vector<1x512xf32>
    %18 = vector.broadcast %17 : vector<1x512xf32> to vector<4x512xf32>
    %19 = arith.mulf %16, %18 : vector<4x512xf32>
    %c1_12 = arith.constant 1 : index
    %c0_13 = arith.constant 0 : index
    %c0_14 = arith.constant 0 : index
    %20 = vector.load %arg4[%c1_12, %c0_13, %c0_14] : memref<9x8x4xf32, #tpu.memory_space<vmem>>, vector<1x8x4xf32>
    %21 = vector.shape_cast %20 : vector<1x8x4xf32> to vector<8x4xf32>
    %cst_15 = arith.constant dense<0.000000e+00> : vector<8x512xf32>
    %22 = tpu.matmul %21, %19, %cst_15 {dimension_numbers = #tpu.dot_dimension_numbers<[1], [0], [0], [1], [0, 0, 1, 1], [], []>} : vector<8x4xf32>, vector<4x512xf32>, vector<8x512xf32> -> vector<8x512xf32>
    %23 = arith.addf %15, %22 : vector<8x512xf32>
    %c15_i32 = arith.constant 15 : i32
    %24 = tpu.dynamic_rotate %8 by %c15_i32 dim 1 : vector<4x512xf32>, i32 -> vector<4x512xf32>
    %c2 = arith.constant 2 : index
    %c0_16 = arith.constant 0 : index
    %25 = vector.load %arg5[%c2, %c0_16] : memref<9x512xf32, #tpu.memory_space<vmem>>, vector<1x512xf32>
    %26 = vector.broadcast %25 : vector<1x512xf32> to vector<4x512xf32>
    %27 = arith.mulf %24, %26 : vector<4x512xf32>
    %c2_17 = arith.constant 2 : index
    %c0_18 = arith.constant 0 : index
    %c0_19 = arith.constant 0 : index
    %28 = vector.load %arg4[%c2_17, %c0_18, %c0_19] : memref<9x8x4xf32, #tpu.memory_space<vmem>>, vector<1x8x4xf32>
    %29 = vector.shape_cast %28 : vector<1x8x4xf32> to vector<8x4xf32>
    %cst_20 = arith.constant dense<0.000000e+00> : vector<8x512xf32>
    %30 = tpu.matmul %29, %27, %cst_20 {dimension_numbers = #tpu.dot_dimension_numbers<[1], [0], [0], [1], [0, 0, 1, 1], [], []>} : vector<8x4xf32>, vector<4x512xf32>, vector<8x512xf32> -> vector<8x512xf32>
    %31 = arith.addf %23, %30 : vector<8x512xf32>
    %c1_i32 = arith.constant 1 : i32
    %32 = tpu.dynamic_rotate %8 by %c1_i32 dim 1 : vector<4x512xf32>, i32 -> vector<4x512xf32>
    %c3 = arith.constant 3 : index
    %c0_21 = arith.constant 0 : index
    %33 = vector.load %arg5[%c3, %c0_21] : memref<9x512xf32, #tpu.memory_space<vmem>>, vector<1x512xf32>
    %34 = vector.broadcast %33 : vector<1x512xf32> to vector<4x512xf32>
    %35 = arith.mulf %32, %34 : vector<4x512xf32>
    %c3_22 = arith.constant 3 : index
    %c0_23 = arith.constant 0 : index
    %c0_24 = arith.constant 0 : index
    %36 = vector.load %arg4[%c3_22, %c0_23, %c0_24] : memref<9x8x4xf32, #tpu.memory_space<vmem>>, vector<1x8x4xf32>
    %37 = vector.shape_cast %36 : vector<1x8x4xf32> to vector<8x4xf32>
    %cst_25 = arith.constant dense<0.000000e+00> : vector<8x512xf32>
    %38 = tpu.matmul %37, %35, %cst_25 {dimension_numbers = #tpu.dot_dimension_numbers<[1], [0], [0], [1], [0, 0, 1, 1], [], []>} : vector<8x4xf32>, vector<4x512xf32>, vector<8x512xf32> -> vector<8x512xf32>
    %39 = arith.addf %31, %38 : vector<8x512xf32>
    %c4 = arith.constant 4 : index
    %c0_26 = arith.constant 0 : index
    %40 = vector.load %arg5[%c4, %c0_26] : memref<9x512xf32, #tpu.memory_space<vmem>>, vector<1x512xf32>
    %41 = vector.broadcast %40 : vector<1x512xf32> to vector<4x512xf32>
    %42 = arith.mulf %8, %41 : vector<4x512xf32>
    %c4_27 = arith.constant 4 : index
    %c0_28 = arith.constant 0 : index
    %c0_29 = arith.constant 0 : index
    %43 = vector.load %arg4[%c4_27, %c0_28, %c0_29] : memref<9x8x4xf32, #tpu.memory_space<vmem>>, vector<1x8x4xf32>
    %44 = vector.shape_cast %43 : vector<1x8x4xf32> to vector<8x4xf32>
    %cst_30 = arith.constant dense<0.000000e+00> : vector<8x512xf32>
    %45 = tpu.matmul %44, %42, %cst_30 {dimension_numbers = #tpu.dot_dimension_numbers<[1], [0], [0], [1], [0, 0, 1, 1], [], []>} : vector<8x4xf32>, vector<4x512xf32>, vector<8x512xf32> -> vector<8x512xf32>
    %46 = arith.addf %39, %45 : vector<8x512xf32>
    %c511_i32 = arith.constant 511 : i32
    %47 = tpu.dynamic_rotate %8 by %c511_i32 dim 1 : vector<4x512xf32>, i32 -> vector<4x512xf32>
    %c5 = arith.constant 5 : index
    %c0_31 = arith.constant 0 : index
    %48 = vector.load %arg5[%c5, %c0_31] : memref<9x512xf32, #tpu.memory_space<vmem>>, vector<1x512xf32>
    %49 = vector.broadcast %48 : vector<1x512xf32> to vector<4x512xf32>
    %50 = arith.mulf %47, %49 : vector<4x512xf32>
    %c5_32 = arith.constant 5 : index
    %c0_33 = arith.constant 0 : index
    %c0_34 = arith.constant 0 : index
    %51 = vector.load %arg4[%c5_32, %c0_33, %c0_34] : memref<9x8x4xf32, #tpu.memory_space<vmem>>, vector<1x8x4xf32>
    %52 = vector.shape_cast %51 : vector<1x8x4xf32> to vector<8x4xf32>
    %cst_35 = arith.constant dense<0.000000e+00> : vector<8x512xf32>
    %53 = tpu.matmul %52, %50, %cst_35 {dimension_numbers = #tpu.dot_dimension_numbers<[1], [0], [0], [1], [0, 0, 1, 1], [], []>} : vector<8x4xf32>, vector<4x512xf32>, vector<8x512xf32> -> vector<8x512xf32>
    %54 = arith.addf %46, %53 : vector<8x512xf32>
    %c497_i32 = arith.constant 497 : i32
    %55 = tpu.dynamic_rotate %8 by %c497_i32 dim 1 : vector<4x512xf32>, i32 -> vector<4x512xf32>
    %c6 = arith.constant 6 : index
    %c0_36 = arith.constant 0 : index
    %56 = vector.load %arg5[%c6, %c0_36] : memref<9x512xf32, #tpu.memory_space<vmem>>, vector<1x512xf32>
    %57 = vector.broadcast %56 : vector<1x512xf32> to vector<4x512xf32>
    %58 = arith.mulf %55, %57 : vector<4x512xf32>
    %c6_37 = arith.constant 6 : index
    %c0_38 = arith.constant 0 : index
    %c0_39 = arith.constant 0 : index
    %59 = vector.load %arg4[%c6_37, %c0_38, %c0_39] : memref<9x8x4xf32, #tpu.memory_space<vmem>>, vector<1x8x4xf32>
    %60 = vector.shape_cast %59 : vector<1x8x4xf32> to vector<8x4xf32>
    %cst_40 = arith.constant dense<0.000000e+00> : vector<8x512xf32>
    %61 = tpu.matmul %60, %58, %cst_40 {dimension_numbers = #tpu.dot_dimension_numbers<[1], [0], [0], [1], [0, 0, 1, 1], [], []>} : vector<8x4xf32>, vector<4x512xf32>, vector<8x512xf32> -> vector<8x512xf32>
    %62 = arith.addf %54, %61 : vector<8x512xf32>
    %c496_i32 = arith.constant 496 : i32
    %63 = tpu.dynamic_rotate %8 by %c496_i32 dim 1 : vector<4x512xf32>, i32 -> vector<4x512xf32>
    %c7 = arith.constant 7 : index
    %c0_41 = arith.constant 0 : index
    %64 = vector.load %arg5[%c7, %c0_41] : memref<9x512xf32, #tpu.memory_space<vmem>>, vector<1x512xf32>
    %65 = vector.broadcast %64 : vector<1x512xf32> to vector<4x512xf32>
    %66 = arith.mulf %63, %65 : vector<4x512xf32>
    %c7_42 = arith.constant 7 : index
    %c0_43 = arith.constant 0 : index
    %c0_44 = arith.constant 0 : index
    %67 = vector.load %arg4[%c7_42, %c0_43, %c0_44] : memref<9x8x4xf32, #tpu.memory_space<vmem>>, vector<1x8x4xf32>
    %68 = vector.shape_cast %67 : vector<1x8x4xf32> to vector<8x4xf32>
    %cst_45 = arith.constant dense<0.000000e+00> : vector<8x512xf32>
    %69 = tpu.matmul %68, %66, %cst_45 {dimension_numbers = #tpu.dot_dimension_numbers<[1], [0], [0], [1], [0, 0, 1, 1], [], []>} : vector<8x4xf32>, vector<4x512xf32>, vector<8x512xf32> -> vector<8x512xf32>
    %70 = arith.addf %62, %69 : vector<8x512xf32>
    %c495_i32 = arith.constant 495 : i32
    %71 = tpu.dynamic_rotate %8 by %c495_i32 dim 1 : vector<4x512xf32>, i32 -> vector<4x512xf32>
    %c8 = arith.constant 8 : index
    %c0_46 = arith.constant 0 : index
    %72 = vector.load %arg5[%c8, %c0_46] : memref<9x512xf32, #tpu.memory_space<vmem>>, vector<1x512xf32>
    %73 = vector.broadcast %72 : vector<1x512xf32> to vector<4x512xf32>
    %74 = arith.mulf %71, %73 : vector<4x512xf32>
    %c8_47 = arith.constant 8 : index
    %c0_48 = arith.constant 0 : index
    %c0_49 = arith.constant 0 : index
    %75 = vector.load %arg4[%c8_47, %c0_48, %c0_49] : memref<9x8x4xf32, #tpu.memory_space<vmem>>, vector<1x8x4xf32>
    %76 = vector.shape_cast %75 : vector<1x8x4xf32> to vector<8x4xf32>
    %cst_50 = arith.constant dense<0.000000e+00> : vector<8x512xf32>
    %77 = tpu.matmul %76, %74, %cst_50 {dimension_numbers = #tpu.dot_dimension_numbers<[1], [0], [0], [1], [0, 0, 1, 1], [], []>} : vector<8x4xf32>, vector<4x512xf32>, vector<8x512xf32> -> vector<8x512xf32>
    %78 = arith.addf %70, %77 : vector<8x512xf32>
    %c0_51 = arith.constant 0 : index
    %c0_52 = arith.constant 0 : index
    %79 = vector.load %arg6[%c0_51, %c0_52] : memref<8x512xf32, #tpu.memory_space<vmem>>, vector<8x512xf32>
    tpu.vector_store %arg6[%c0_51, %c0_52], %78 {strides = array<i32>} : memref<8x512xf32, #tpu.memory_space<vmem>>, vector<8x512xf32>,
    %cst_53 = arith.constant dense<0.000000e+00> : vector<8xf32>
    %80 = vector.multi_reduction <add>, %78, %cst_53 [1] : vector<8x512xf32> to vector<8xf32>
    %81 = vector.shape_cast %80 : vector<8xf32> to vector<8x1xf32>
    %82 = arith.mulf %78, %78 : vector<8x512xf32>
    %cst_54 = arith.constant dense<0.000000e+00> : vector<8xf32>
    %83 = vector.multi_reduction <add>, %82, %cst_54 [1] : vector<8x512xf32> to vector<8xf32>
    %84 = vector.shape_cast %83 : vector<8xf32> to vector<8x1xf32>
    %85 = tpu.concatenate %81, %84 in 1 : vector<8x1xf32>, vector<8x1xf32> -> vector<8x2xf32>
    %c0_55 = arith.constant 0 : index
    %c0_56 = arith.constant 0 : index
    %c0_57 = arith.constant 0 : index
    %86 = vector.load %arg7[%c0_55, %c0_56, %c0_57] : memref<1x8x2xf32, #tpu.memory_space<vmem>>, vector<1x8x2xf32>
    %87 = vector.shape_cast %86 : vector<1x8x2xf32> to vector<8x2xf32>
    %88 = vector.shape_cast %85 : vector<8x2xf32> to vector<1x8x2xf32>
    tpu.vector_store %arg7[%c0_55, %c0_56, %c0_57], %88 {strides = array<i32>} : memref<1x8x2xf32, #tpu.memory_space<vmem>>, vector<1x8x2xf32>,
    return
  }
  func.func @transform_0(%arg0: i32) -> (i32, i32) {
    %c0_i32 = arith.constant 0 : i32
    %c0_i32_0 = arith.constant 0 : i32
    return %c0_i32, %arg0 : i32, i32
  }
  func.func @transform_1(%arg0: i32) -> (i32, i32) {
    %c0_i32 = arith.constant 0 : i32
    %c0_i32_0 = arith.constant 0 : i32
    %c0_i32_1 = arith.constant 0 : i32
    return %c0_i32, %c0_i32_0 : i32, i32
  }
  func.func @transform_2(%arg0: i32) -> (i32, i32) {
    %c0_i32 = arith.constant 0 : i32
    %c0_i32_0 = arith.constant 0 : i32
    %c0_i32_1 = arith.constant 0 : i32
    return %c0_i32, %c0_i32_0 : i32, i32
  }
  func.func @transform_3(%arg0: i32) -> (i32, i32, i32) {
    %c0_i32 = arith.constant 0 : i32
    %c0_i32_0 = arith.constant 0 : i32
    %c0_i32_1 = arith.constant 0 : i32
    %c0_i32_2 = arith.constant 0 : i32
    return %c0_i32, %c0_i32_0, %c0_i32_1 : i32, i32, i32
  }
  func.func @transform_4(%arg0: i32) -> (i32, i32) {
    %c0_i32 = arith.constant 0 : i32
    %c0_i32_0 = arith.constant 0 : i32
    %c0_i32_1 = arith.constant 0 : i32
    return %c0_i32, %c0_i32_0 : i32, i32
  }
  func.func @transform_5(%arg0: i32) -> (i32, i32) {
    %c0_i32 = arith.constant 0 : i32
    %c0_i32_0 = arith.constant 0 : i32
    return %c0_i32, %arg0 : i32, i32
  }
  func.func @transform_6(%arg0: i32) -> (i32, i32, i32) {
    %c0_i32 = arith.constant 0 : i32
    %c0_i32_0 = arith.constant 0 : i32
    %c0_i32_1 = arith.constant 0 : i32
    return %arg0, %c0_i32, %c0_i32_0 : i32, i32, i32
  }
}

module attributes {stable_mosaic.version = 11 : i64} {
  func.func @kernel(%arg0: i32, %arg1: memref<8x512xf32, #tpu.memory_space<vmem>>, %arg2: memref<8x1xf32, #tpu.memory_space<vmem>>, %arg3: memref<8x1xf32, #tpu.memory_space<vmem>>, %arg4: memref<8x512xf32, #tpu.memory_space<vmem>>) attributes {dimension_semantics = [#tpu.dimension_semantics<parallel>], iteration_bounds = array<i64: 1>, scalar_prefetch = 0 : i64, scratch_operands = 0 : i64, tpu.core_type = #tpu.core_type<tc>, window_params = [{transform_indices = @transform_0, window_bounds = array<i64: 8, 512>}, {pipeline_mode = #tpu.pipeline_mode<synchronous>, transform_indices = @transform_1, window_bounds = array<i64: 8, 1>}, {pipeline_mode = #tpu.pipeline_mode<synchronous>, transform_indices = @transform_2, window_bounds = array<i64: 8, 1>}, {transform_indices = @transform_3, window_bounds = array<i64: 8, 512>}]} {
    %c0 = arith.constant 0 : index
    %c0_0 = arith.constant 0 : index
    %0 = vector.load %arg1[%c0, %c0_0] : memref<8x512xf32, #tpu.memory_space<vmem>>, vector<8x512xf32>
    %c0_1 = arith.constant 0 : index
    %c0_2 = arith.constant 0 : index
    %1 = vector.load %arg2[%c0_1, %c0_2] : memref<8x1xf32, #tpu.memory_space<vmem>>, vector<8x1xf32>
    %2 = vector.broadcast %1 : vector<8x1xf32> to vector<8x512xf32>
    %3 = arith.mulf %0, %2 : vector<8x512xf32>
    %c0_3 = arith.constant 0 : index
    %c0_4 = arith.constant 0 : index
    %4 = vector.load %arg3[%c0_3, %c0_4] : memref<8x1xf32, #tpu.memory_space<vmem>>, vector<8x1xf32>
    %5 = vector.broadcast %4 : vector<8x1xf32> to vector<8x512xf32>
    %6 = arith.addf %3, %5 : vector<8x512xf32>
    %c0_5 = arith.constant 0 : index
    %c0_6 = arith.constant 0 : index
    %7 = vector.load %arg4[%c0_5, %c0_6] : memref<8x512xf32, #tpu.memory_space<vmem>>, vector<8x512xf32>
    tpu.vector_store %arg4[%c0_5, %c0_6], %6 {strides = array<i32>} : memref<8x512xf32, #tpu.memory_space<vmem>>, vector<8x512xf32>,
    return
  }
  func.func @transform_0(%arg0: i32) -> (i32, i32) {
    %c0_i32 = arith.constant 0 : i32
    %c0_i32_0 = arith.constant 0 : i32
    return %c0_i32, %arg0 : i32, i32
  }
  func.func @transform_1(%arg0: i32) -> (i32, i32) {
    %c0_i32 = arith.constant 0 : i32
    %c0_i32_0 = arith.constant 0 : i32
    %c0_i32_1 = arith.constant 0 : i32
    return %c0_i32, %c0_i32_0 : i32, i32
  }
  func.func @transform_2(%arg0: i32) -> (i32, i32) {
    %c0_i32 = arith.constant 0 : i32
    %c0_i32_0 = arith.constant 0 : i32
    %c0_i32_1 = arith.constant 0 : i32
    return %c0_i32, %c0_i32_0 : i32, i32
  }
  func.func @transform_3(%arg0: i32) -> (i32, i32) {
    %c0_i32 = arith.constant 0 : i32
    %c0_i32_0 = arith.constant 0 : i32
    return %c0_i32, %arg0 : i32, i32
  }
}

</mosaic_0001>

<llo_original>
// kernel: kernel_transform_sep_conv.5
$region0: #{kernel_transform_sep_conv.5}
  #allocation0 [shape = 'u32[]', space=smem, size = 0x4, offset = 0x4, fixed_abs, tag = 'smem constant byte address 0x4 - core index']
  #allocation1 [shape = 'u32[144,128]{1,0:T(1,128)}', space=vmem, size = 0x12000, scoped, tag = 'internal scratch']
  %s0 = inlined_call_operand.vmem [shape: f32[8,512], index: 0, kind: input, shape index: {}, may-alias: {0,3}]
  %s1 = inlined_call_operand.vmem [shape: f32[8,1], index: 1, kind: input, shape index: {}]
  %s2 = inlined_call_operand.vmem [shape: f32[8,1], index: 2, kind: input, shape index: {}]
  %s3 = inlined_call_operand.vmem [shape: f32[8,512], index: 3, kind: output, shape index: {}, may-alias: {0,3}]
  %s4 = sld [smem:[#allocation0]]
  $region22: #{kernel_transform_sep_conv.5} parent=0
    _
  %s6 = ssub.s32 1, %s4
  %s7 = scalar_select 0, %s6, %s4
  // Predicated region
  $region2: #{kernel_transform_sep_conv.5} parent=0 // pred_check
    _
  $region3: #{kernel_transform_sep_conv.5} parent=0 // pred_check_branch
    %9 = sbr.rel (0) target = $region5
  $region4: #{kernel_transform_sep_conv.5} parent=0 // pred_region
    _
  $region5: #{kernel_transform_sep_conv.5} parent=0 // pred_fallthru
    _
  // Predicated region
  $region6: #{kernel_transform_sep_conv.5} parent=0 // pred_check
    _
  $region7: #{kernel_transform_sep_conv.5} parent=0 // pred_check_branch
    %11 = sbr.rel (0) target = $region9
  $region8: #{kernel_transform_sep_conv.5} parent=0 // pred_region
    _
  $region9: #{kernel_transform_sep_conv.5} parent=0 // pred_fallthru
    _
  // Predicated region
  $region10: #{kernel_transform_sep_conv.5} parent=0 // pred_check
    _
  $region11: #{kernel_transform_sep_conv.5} parent=0 // pred_check_branch
    %13 = sbr.rel (0) target = $region13
  $region12: #{kernel_transform_sep_conv.5} parent=0 // pred_region
    _
  $region13: #{kernel_transform_sep_conv.5} parent=0 // pred_fallthru
    _
  %v14 = vld [vmem:[%s0] sm:$0xff]
  %v15 = vld [vmem:[%s0 + $0x8] sm:$0xff]
  %v16 = vld [vmem:[%s0 + $0x10] sm:$0xff]
  %v17 = vld [vmem:[%s0 + $0x18] sm:$0xff]
  %v18 = vld [vmem:[%s1] sm:$0xff]
  %20 = vset.pattern.permute.xlu0 0
  %21 = vperm.xlu0 %20, %v18
  %v22 = vpop.permute.xlu0 %21
  %v24 = vmul.f32 %v14, %v22
  %v25 = vmul.f32 %v15, %v22
  %v26 = vmul.f32 %v16, %v22
  %v27 = vmul.f32 %v17, %v22
  %v28 = vld [vmem:[%s2] sm:$0xff]
  %30 = vset.pattern.permute.xlu0 0
  %31 = vperm.xlu0 %30, %v28
  %v32 = vpop.permute.xlu0 %31
  %v34 = vadd.f32 %v24, %v32
  %v35 = vadd.f32 %v25, %v32
  %v36 = vadd.f32 %v26, %v32
  %v37 = vadd.f32 %v27, %v32
  %38 = vst [vmem:[%s3] sm:$0xff] %v34
  %39 = vst [vmem:[%s3 + $0x8] sm:$0xff] %v35
  %40 = vst [vmem:[%s3 + $0x10] sm:$0xff] %v36
  %41 = vst [vmem:[%s3 + $0x18] sm:$0xff] %v37
  // Predicated region
  $region14: #{kernel_transform_sep_conv.5} parent=0 // pred_check
    _
  $region15: #{kernel_transform_sep_conv.5} parent=0 // pred_check_branch
    %43 = sbr.rel (0) target = $region17
  $region16: #{kernel_transform_sep_conv.5} parent=0 // pred_region
    _
  $region17: #{kernel_transform_sep_conv.5} parent=0 // pred_fallthru
    _
  // Predicated region
  $region18: #{kernel_transform_sep_conv.5} parent=0 // pred_check
    _
  $region19: #{kernel_transform_sep_conv.5} parent=0 // pred_check_branch
    %45 = sbr.rel (0) target = $region21
  $region20: #{kernel_transform_sep_conv.5} parent=0 // pred_region
    _
  $region21: #{kernel_transform_sep_conv.5} parent=0 // pred_fallthru
    _

// kernel: kernel_transform_sep_conv.3
$region0: #{kernel_transform_sep_conv.3}
  #allocation0 [shape = 'u32[]', space=smem, size = 0x4, offset = 0x4, fixed_abs, tag = 'smem constant byte address 0x4 - core index']
  #allocation1 [shape = 'u32[144,128]{1,0:T(1,128)}', space=vmem, size = 0x12000, scoped, tag = 'internal scratch']
  %s0 = inlined_call_operand.vmem [shape: f32[4,512], index: 0, kind: input, shape index: {}]
  %s1 = inlined_call_operand.vmem [shape: f32[9,4,4], index: 1, kind: input, shape index: {}]
  %s2 = inlined_call_operand.vmem [shape: f32[9,512], index: 2, kind: input, shape index: {}]
  %s3 = inlined_call_operand.vmem [shape: f32[4,512], index: 3, kind: output, shape index: {0}]
  %s4 = inlined_call_operand.vmem [shape: f32[1,4,2], index: 4, kind: output, shape index: {1}]
  %5 = xla_tuple %s3, %s4
  %s6 = sld [smem:[#allocation0]]
  $region30: #{kernel_transform_sep_conv.3} parent=0
    _
  %s8 = ssub.s32 1, %s6
  %s9 = scalar_select 0, %s8, %s6
  // Predicated region
  $region2: #{kernel_transform_sep_conv.3} parent=0 // pred_check
    _
  $region3: #{kernel_transform_sep_conv.3} parent=0 // pred_check_branch
    %11 = sbr.rel (0) target = $region5
  $region4: #{kernel_transform_sep_conv.3} parent=0 // pred_region
    _
  $region5: #{kernel_transform_sep_conv.3} parent=0 // pred_fallthru
    _
  // Predicated region
  $region6: #{kernel_transform_sep_conv.3} parent=0 // pred_check
    _
  $region7: #{kernel_transform_sep_conv.3} parent=0 // pred_check_branch
    %13 = sbr.rel (0) target = $region9
  $region8: #{kernel_transform_sep_conv.3} parent=0 // pred_region
    _
  $region9: #{kernel_transform_sep_conv.3} parent=0 // pred_fallthru
    _
  // Predicated region
  $region10: #{kernel_transform_sep_conv.3} parent=0 // pred_check
    _
  $region11: #{kernel_transform_sep_conv.3} parent=0 // pred_check_branch
    %15 = sbr.rel (0) target = $region13
  $region12: #{kernel_transform_sep_conv.3} parent=0 // pred_region
    _
  $region13: #{kernel_transform_sep_conv.3} parent=0 // pred_fallthru
    _
  %v16 = vld [vmem:[%s0] sm:$0xff]
  %v17 = vld [vmem:[%s0 + $0x8] sm:$0xff]
  %v18 = vmax.f32 %v16, 0.0
  %v19 = vmax.f32 %v17, 0.0
  %v22 = vcombine.high %v18, %v18
  %v23 = vcombine.high %v19, %v19
  %26 = vrot.lane.b32.xlu0 %v18, 17
  %v27 = vpop.permute.xlu0 %26
  %28 = vrot.lane.b32.xlu0 %v22, 17
  %v29 = vpop.permute.xlu0 %28
  %30 = vrot.lane.b32.xlu0 %v19, 17
  %v31 = vpop.permute.xlu0 %30
  %32 = vrot.lane.b32.xlu0 %v23, 17
  %v33 = vpop.permute.xlu0 %32
  %v34 = vlaneseq
  %v35 = vand.u32 %v34, 127
  %vm36 = vcmp.lt.s32.totalorder %v35, 17
  %v37 = vsel %vm36, %v31, %v33
  %v38 = vsel %vm36, %v29, %v31
  %v39 = vsel %vm36, %v27, %v29
  %v40 = vsel %vm36, %v33, %v27
  %v41 = vld [vmem:[%s2] ss:$8 sm:$0xf]
  %v43 = vlaneseq
  %v44 = vshrl.u32 %v43, 7
  %v45 = vsub.s32 0, %v44
  %v46 = vrot.slane %v41, %v45
  %v47 = vlaneseq
  %v48 = vshrl.u32 %v47, 7
  %v49 = vsub.s32 1, %v48
  %v50 = vrot.slane %v41, %v49
  %v51 = vlaneseq
  %v52 = vshrl.u32 %v51, 7
  %v53 = vsub.s32 2, %v52
  %v54 = vrot.slane %v41, %v53
  %v55 = vlaneseq
  %v56 = vshrl.u32 %v55, 7
  %v57 = vsub.s32 3, %v56
  %v58 = vrot.slane %v41, %v57
  %v63 = vmul.f32 %v40, %v46
  %v64 = vmul.f32 %v39, %v50
  %v65 = vmul.f32 %v38, %v54
  %v66 = vmul.f32 %v37, %v58
  %v67 = vld [vmem:[%s1] sm:$0xf]
  %68 = vrot.lane.b32.xlu0 %v18, 16
  %v69 = vpop.permute.xlu0 %68
  %70 = vrot.lane.b32.xlu0 %v22, 16
  %v71 = vpop.permute.xlu0 %70
  %72 = vrot.lane.b32.xlu0 %v19, 16
  %v73 = vpop.permute.xlu0 %72
  %74 = vrot.lane.b32.xlu0 %v23, 16
  %v75 = vpop.permute.xlu0 %74
  %vm76 = vcmp.lt.s32.totalorder %v35, 16
  %v77 = vsel %vm76, %v73, %v75
  %v78 = vsel %vm76, %v71, %v73
  %v79 = vsel %vm76, %v69, %v71
  %v80 = vsel %vm76, %v75, %v69
  %s81 = scalar_lea.vmem %s2, 1
  %v82 = vld [vmem:[%s81] ss:$8 sm:$0xf]
  %v84 = vlaneseq
  %v85 = vshrl.u32 %v84, 7
  %v86 = vsub.s32 0, %v85
  %v87 = vrot.slane %v82, %v86
  %v88 = vlaneseq
  %v89 = vshrl.u32 %v88, 7
  %v90 = vsub.s32 1, %v89
  %v91 = vrot.slane %v82, %v90
  %v92 = vlaneseq
  %v93 = vshrl.u32 %v92, 7
  %v94 = vsub.s32 2, %v93
  %v95 = vrot.slane %v82, %v94
  %v96 = vlaneseq
  %v97 = vshrl.u32 %v96, 7
  %v98 = vsub.s32 3, %v97
  %v99 = vrot.slane %v82, %v98
  %v104 = vmul.f32 %v80, %v87
  %v105 = vmul.f32 %v79, %v91
  %v106 = vmul.f32 %v78, %v95
  %v107 = vmul.f32 %v77, %v99
  %s108 = scalar_lea.vmem %s1, 4
  %v109 = vld [vmem:[%s108] sm:$0xf]
  %vm110 = vcmask 31744
  %v112 = vsel %vm110, %v109, 0
  %vm114 = vcmask 1043456
  %v116 = vsel %vm114, %v104, 0
  %v119 = vsel %vm114, %v105, 0
  %v122 = vsel %vm114, %v106, 0
  %v125 = vsel %vm114, %v107, 0
  %127 = vmatprep.subr.mxu0 0.0
  %128 = vmatpush1.msra.mxu0 0.0
  %129 = vmatprep.subr.mxu0 0.0
  %130 = vmatpush1.msra.mxu0 0.0
  %131 = vmatprep.subr.mxu0 0.0
  %132 = vmatpush1.msra.mxu0 0.0
  %133 = vmatprep.subr.mxu0 0.0
  %134 = vmatpush1.msra.mxu0 0.0
  %135 = vmatprep.subr.mxu0 0.0
  %136 = vmatpush1.msra.mxu0 0.0
  %137 = vmatprep.subr.mxu0 0.0
  %138 = vmatpush1.msra.mxu0 0.0
  %139 = vmatprep.subr.mxu0 0.0
  %140 = vmatpush1.msra.mxu0 0.0
  %141 = vmatprep.subr.mxu0 0.0
  %142 = vmatpush1.msra.mxu0 0.0
  %143 = vmatprep.subr.mxu0 0.0
  %144 = vmatpush1.msra.mxu0 0.0
  %145 = vmatprep.subr.mxu0 0.0
  %146 = vmatpush1.msra.mxu0 0.0
  %147 = vmatprep.subr.mxu0 0.0
  %148 = vmatpush1.msra.mxu0 0.0
  %149 = vmatprep.subr.mxu0 0.0
  %150 = vmatpush1.msra.mxu0 0.0
  %151 = vmatprep.subr.mxu0 0.0
  %152 = vmatpush1.msra.mxu0 0.0
  %153 = vmatprep.subr.mxu0 0.0
  %154 = vmatpush1.msra.mxu0 0.0
  %155 = vmatprep.subr.mxu0 0.0
  %156 = vmatpush1.msra.mxu0 0.0
  %157 = vmatprep.subr.mxu0 %v119
  %158 = vmatpush1.msra.mxu0 %v116
  %159 = vmatprep.subr.mxu0 0.0
  %160 = vmatpush2.msra.mxu0 0.0
  %161 = vmatprep.subr.mxu0 0.0
  %162 = vmatpush2.msra.mxu0 0.0
  %163 = vmatprep.subr.mxu0 0.0
  %164 = vmatpush2.msra.mxu0 0.0
  %165 = vmatprep.subr.mxu0 0.0
  %166 = vmatpush2.msra.mxu0 0.0
  %167 = vmatprep.subr.mxu0 0.0
  %168 = vmatpush2.msra.mxu0 0.0
  %169 = vmatprep.subr.mxu0 0.0
  %170 = vmatpush2.msra.mxu0 0.0
  %171 = vmatprep.subr.mxu0 0.0
  %172 = vmatpush2.msra.mxu0 0.0
  %173 = vmatprep.subr.mxu0 0.0
  %174 = vmatpush2.msra.mxu0 0.0
  %175 = vmatprep.subr.mxu0 0.0
  %176 = vmatpush2.msra.mxu0 0.0
  %177 = vmatprep.subr.mxu0 0.0
  %178 = vmatpush2.msra.mxu0 0.0
  %179 = vmatprep.subr.mxu0 0.0
  %180 = vmatpush2.msra.mxu0 0.0
  %181 = vmatprep.subr.mxu0 0.0
  %182 = vmatpush2.msra.mxu0 0.0
  %183 = vmatprep.subr.mxu0 0.0
  %184 = vmatpush2.msra.mxu0 0.0
  %185 = vmatprep.subr.mxu0 0.0
  %186 = vmatpush2.msra.mxu0 0.0
  %187 = vmatprep.subr.mxu0 0.0
  %188 = vmatpush2.msra.mxu0 0.0
  %189 = vmatprep.subr.mxu0 0.0
  %190 = vmatpush2.msra.mxu0 0.0
  %191 = vmatprep.mubr.f32.mxu0 0.0
  %192 = vmatmul.mubr.f32.gmra.mxu0 %v112
  %v193 = vpop.f32.mrf.mxu0
  %v194 = vadd.f32 0.0, %v193
  %v195 = vpop.f32.mrf.mxu0
  %v196 = vadd.f32 0.0, %v195
  %197 = vdwg.mxu0
  %198 = vmatprep.subr.mxu0 0.0
  %199 = vmatpush1.msra.mxu0 0.0
  %200 = vmatprep.subr.mxu0 0.0
  %201 = vmatpush1.msra.mxu0 0.0
  %202 = vmatprep.subr.mxu0 0.0
  %203 = vmatpush1.msra.mxu0 0.0
  %204 = vmatprep.subr.mxu0 0.0
  %205 = vmatpush1.msra.mxu0 0.0
  %206 = vmatprep.subr.mxu0 0.0
  %207 = vmatpush1.msra.mxu0 0.0
  %208 = vmatprep.subr.mxu0 0.0
  %209 = vmatpush1.msra.mxu0 0.0
  %210 = vmatprep.subr.mxu0 0.0
  %211 = vmatpush1.msra.mxu0 0.0
  %212 = vmatprep.subr.mxu0 0.0
  %213 = vmatpush1.msra.mxu0 0.0
  %214 = vmatprep.subr.mxu0 0.0
  %215 = vmatpush1.msra.mxu0 0.0
  %216 = vmatprep.subr.mxu0 0.0
  %217 = vmatpush1.msra.mxu0 0.0
  %218 = vmatprep.subr.mxu0 0.0
  %219 = vmatpush1.msra.mxu0 0.0
  %220 = vmatprep.subr.mxu0 0.0
  %221 = vmatpush1.msra.mxu0 0.0
  %222 = vmatprep.subr.mxu0 0.0
  %223 = vmatpush1.msra.mxu0 0.0
  %224 = vmatprep.subr.mxu0 0.0
  %225 = vmatpush1.msra.mxu0 0.0
  %226 = vmatprep.subr.mxu0 0.0
  %227 = vmatpush1.msra.mxu0 0.0
  %228 = vmatprep.subr.mxu0 %v125
  %229 = vmatpush1.msra.mxu0 %v122
  %230 = vmatprep.subr.mxu0 0.0
  %231 = vmatpush2.msra.mxu0 0.0
  %232 = vmatprep.subr.mxu0 0.0
  %233 = vmatpush2.msra.mxu0 0.0
  %234 = vmatprep.subr.mxu0 0.0
  %235 = vmatpush2.msra.mxu0 0.0
  %236 = vmatprep.subr.mxu0 0.0
  %237 = vmatpush2.msra.mxu0 0.0
  %238 = vmatprep.subr.mxu0 0.0
  %239 = vmatpush2.msra.mxu0 0.0
  %240 = vmatprep.subr.mxu0 0.0
  %241 = vmatpush2.msra.mxu0 0.0
  %242 = vmatprep.subr.mxu0 0.0
  %243 = vmatpush2.msra.mxu0 0.0
  %244 = vmatprep.subr.mxu0 0.0
  %245 = vmatpush2.msra.mxu0 0.0
  %246 = vmatprep.subr.mxu0 0.0
  %247 = vmatpush2.msra.mxu0 0.0
  %248 = vmatprep.subr.mxu0 0.0
  %249 = vmatpush2.msra.mxu0 0.0
  %250 = vmatprep.subr.mxu0 0.0
  %251 = vmatpush2.msra.mxu0 0.0
  %252 = vmatprep.subr.mxu0 0.0
  %253 = vmatpush2.msra.mxu0 0.0
  %254 = vmatprep.subr.mxu0 0.0
  %255 = vmatpush2.msra.mxu0 0.0
  %256 = vmatprep.subr.mxu0 0.0
  %257 = vmatpush2.msra.mxu0 0.0
  %258 = vmatprep.subr.mxu0 0.0
  %259 = vmatpush2.msra.mxu0 0.0
  %260 = vmatprep.subr.mxu0 0.0
  %261 = vmatpush2.msra.mxu0 0.0
  %262 = vmatprep.mubr.f32.mxu0 0.0
  %263 = vmatmul.mubr.f32.gmra.mxu0 %v112
  %v264 = vpop.f32.mrf.mxu0
  %v265 = vadd.f32 0.0, %v264
  %v266 = vpop.f32.mrf.mxu0
  %v267 = vadd.f32 0.0, %v266
  %268 = vdwg.mxu0
  %v270 = vsel %vm110, %v67, 0
  %v273 = vsel %vm114, %v63, 0
  %v276 = vsel %vm114, %v64, 0
  %v279 = vsel %vm114, %v65, 0
  %v282 = vsel %vm114, %v66, 0
  %284 = vmatprep.subr.mxu0 0.0
  %285 = vmatpush1.msra.mxu0 0.0
  %286 = vmatprep.subr.mxu0 0.0
  %287 = vmatpush1.msra.mxu0 0.0
  %288 = vmatprep.subr.mxu0 0.0
  %289 = vmatpush1.msra.mxu0 0.0
  %290 = vmatprep.subr.mxu0 0.0
  %291 = vmatpush1.msra.mxu0 0.0
  %292 = vmatprep.subr.mxu0 0.0
  %293 = vmatpush1.msra.mxu0 0.0
  %294 = vmatprep.subr.mxu0 0.0
  %295 = vmatpush1.msra.mxu0 0.0
  %296 = vmatprep.subr.mxu0 0.0
  %297 = vmatpush1.msra.mxu0 0.0
  %298 = vmatprep.subr.mxu0 0.0
  %299 = vmatpush1.msra.mxu0 0.0
  %300 = vmatprep.subr.mxu0 0.0
  %301 = vmatpush1.msra.mxu0 0.0
  %302 = vmatprep.subr.mxu0 0.0
  %303 = vmatpush1.msra.mxu0 0.0
  %304 = vmatprep.subr.mxu0 0.0
  %305 = vmatpush1.msra.mxu0 0.0
  %306 = vmatprep.subr.mxu0 0.0
  %307 = vmatpush1.msra.mxu0 0.0
  %308 = vmatprep.subr.mxu0 0.0
  %309 = vmatpush1.msra.mxu0 0.0
  %310 = vmatprep.subr.mxu0 0.0
  %311 = vmatpush1.msra.mxu0 0.0
  %312 = vmatprep.subr.mxu0 0.0
  %313 = vmatpush1.msra.mxu0 0.0
  %314 = vmatprep.subr.mxu0 %v276
  %315 = vmatpush1.msra.mxu0 %v273
  %316 = vmatprep.subr.mxu0 0.0
  %317 = vmatpush2.msra.mxu0 0.0
  %318 = vmatprep.subr.mxu0 0.0
  %319 = vmatpush2.msra.mxu0 0.0
  %320 = vmatprep.subr.mxu0 0.0
  %321 = vmatpush2.msra.mxu0 0.0
  %322 = vmatprep.subr.mxu0 0.0
  %323 = vmatpush2.msra.mxu0 0.0
  %324 = vmatprep.subr.mxu0 0.0
  %325 = vmatpush2.msra.mxu0 0.0
  %326 = vmatprep.subr.mxu0 0.0
  %327 = vmatpush2.msra.mxu0 0.0
  %328 = vmatprep.subr.mxu0 0.0
  %329 = vmatpush2.msra.mxu0 0.0
  %330 = vmatprep.subr.mxu0 0.0
  %331 = vmatpush2.msra.mxu0 0.0
  %332 = vmatprep.subr.mxu0 0.0
  %333 = vmatpush2.msra.mxu0 0.0
  %334 = vmatprep.subr.mxu0 0.0
  %335 = vmatpush2.msra.mxu0 0.0
  %336 = vmatprep.subr.mxu0 0.0
  %337 = vmatpush2.msra.mxu0 0.0
  %338 = vmatprep.subr.mxu0 0.0
  %339 = vmatpush2.msra.mxu0 0.0
  %340 = vmatprep.subr.mxu0 0.0
  %341 = vmatpush2.msra.mxu0 0.0
  %342 = vmatprep.subr.mxu0 0.0
  %343 = vmatpush2.msra.mxu0 0.0
  %344 = vmatprep.subr.mxu0 0.0
  %345 = vmatpush2.msra.mxu0 0.0
  %346 = vmatprep.subr.mxu0 0.0
  %347 = vmatpush2.msra.mxu0 0.0
  %348 = vmatprep.mubr.f32.mxu0 0.0
  %349 = vmatmul.mubr.f32.gmra.mxu0 %v270
  %v350 = vpop.f32.mrf.mxu0
  %v351 = vadd.f32 %v194, %v350
  %v352 = vpop.f32.mrf.mxu0
  %v353 = vadd.f32 %v196, %v352
  %354 = vdwg.mxu0
  %355 = vmatprep.subr.mxu0 0.0
  %356 = vmatpush1.msra.mxu0 0.0
  %357 = vmatprep.subr.mxu0 0.0
  %358 = vmatpush1.msra.mxu0 0.0
  %359 = vmatprep.subr.mxu0 0.0
  %360 = vmatpush1.msra.mxu0 0.0
  %361 = vmatprep.subr.mxu0 0.0
  %362 = vmatpush1.msra.mxu0 0.0
  %363 = vmatprep.subr.mxu0 0.0
  %364 = vmatpush1.msra.mxu0 0.0
  %365 = vmatprep.subr.mxu0 0.0
  %366 = vmatpush1.msra.mxu0 0.0
  %367 = vmatprep.subr.mxu0 0.0
  %368 = vmatpush1.msra.mxu0 0.0
  %369 = vmatprep.subr.mxu0 0.0
  %370 = vmatpush1.msra.mxu0 0.0
  %371 = vmatprep.subr.mxu0 0.0
  %372 = vmatpush1.msra.mxu0 0.0
  %373 = vmatprep.subr.mxu0 0.0
  %374 = vmatpush1.msra.mxu0 0.0
  %375 = vmatprep.subr.mxu0 0.0
  %376 = vmatpush1.msra.mxu0 0.0
  %377 = vmatprep.subr.mxu0 0.0
  %378 = vmatpush1.msra.mxu0 0.0
  %379 = vmatprep.subr.mxu0 0.0
  %380 = vmatpush1.msra.mxu0 0.0
  %381 = vmatprep.subr.mxu0 0.0
  %382 = vmatpush1.msra.mxu0 0.0
  %383 = vmatprep.subr.mxu0 0.0
  %384 = vmatpush1.msra.mxu0 0.0
  %385 = vmatprep.subr.mxu0 %v282
  %386 = vmatpush1.msra.mxu0 %v279
  %387 = vmatprep.subr.mxu0 0.0
  %388 = vmatpush2.msra.mxu0 0.0
  %389 = vmatprep.subr.mxu0 0.0
  %390 = vmatpush2.msra.mxu0 0.0
  %391 = vmatprep.subr.mxu0 0.0
  %392 = vmatpush2.msra.mxu0 0.0
  %393 = vmatprep.subr.mxu0 0.0
  %394 = vmatpush2.msra.mxu0 0.0
  %395 = vmatprep.subr.mxu0 0.0
  %396 = vmatpush2.msra.mxu0 0.0
  %397 = vmatprep.subr.mxu0 0.0
  %398 = vmatpush2.msra.mxu0 0.0
  %399 = vmatprep.subr.mxu0 0.0
  %400 = vmatpush2.msra.mxu0 0.0
  %401 = vmatprep.subr.mxu0 0.0
  %402 = vmatpush2.msra.mxu0 0.0
  %403 = vmatprep.subr.mxu0 0.0
  %404 = vmatpush2.msra.mxu0 0.0
  %405 = vmatprep.subr.mxu0 0.0
  %406 = vmatpush2.msra.mxu0 0.0
  %407 = vmatprep.subr.mxu0 0.0
  %408 = vmatpush2.msra.mxu0 0.0
  %409 = vmatprep.subr.mxu0 0.0
  %410 = vmatpush2.msra.mxu0 0.0
  %411 = vmatprep.subr.mxu0 0.0
  %412 = vmatpush2.msra.mxu0 0.0
  %413 = vmatprep.subr.mxu0 0.0
  %414 = vmatpush2.msra.mxu0 0.0
  %415 = vmatprep.subr.mxu0 0.0
  %416 = vmatpush2.msra.mxu0 0.0
  %417 = vmatprep.subr.mxu0 0.0
  %418 = vmatpush2.msra.mxu0 0.0
  %419 = vmatprep.mubr.f32.mxu0 0.0
  %420 = vmatmul.mubr.f32.gmra.mxu0 %v270
  %v421 = vpop.f32.mrf.mxu0
  %v422 = vadd.f32 %v265, %v421
  %v423 = vpop.f32.mrf.mxu0
  %v424 = vadd.f32 %v267, %v423
  %425 = vdwg.mxu0
  %426 = vrot.lane.b32.xlu0 %v18, 15
  %v427 = vpop.permute.xlu0 %426
  %428 = vrot.lane.b32.xlu0 %v22, 15
  %v429 = vpop.permute.xlu0 %428
  %430 = vrot.lane.b32.xlu0 %v19, 15
  %v431 = vpop.permute.xlu0 %430
  %432 = vrot.lane.b32.xlu0 %v23, 15
  %v433 = vpop.permute.xlu0 %432
  %vm434 = vcmp.lt.s32.totalorder %v35, 15
  %v435 = vsel %vm434, %v431, %v433
  %v436 = vsel %vm434, %v429, %v431
  %v437 = vsel %vm434, %v427, %v429
  %v438 = vsel %vm434, %v433, %v427
  %s439 = scalar_lea.vmem %s2, 2
  %v440 = vld [vmem:[%s439] ss:$8 sm:$0xf]
  %v442 = vlaneseq
  %v443 = vshrl.u32 %v442, 7
  %v444 = vsub.s32 0, %v443
  %v445 = vrot.slane %v440, %v444
  %v446 = vlaneseq
  %v447 = vshrl.u32 %v446, 7
  %v448 = vsub.s32 1, %v447
  %v449 = vrot.slane %v440, %v448
  %v450 = vlaneseq
  %v451 = vshrl.u32 %v450, 7
  %v452 = vsub.s32 2, %v451
  %v453 = vrot.slane %v440, %v452
  %v454 = vlaneseq
  %v455 = vshrl.u32 %v454, 7
  %v456 = vsub.s32 3, %v455
  %v457 = vrot.slane %v440, %v456
  %v462 = vmul.f32 %v438, %v445
  %v463 = vmul.f32 %v437, %v449
  %v464 = vmul.f32 %v436, %v453
  %v465 = vmul.f32 %v435, %v457
  %s466 = scalar_lea.vmem %s1, 8
  %v467 = vld [vmem:[%s466] sm:$0xf]
  %v469 = vsel %vm110, %v467, 0
  %v472 = vsel %vm114, %v462, 0
  %v475 = vsel %vm114, %v463, 0
  %v478 = vsel %vm114, %v464, 0
  %v481 = vsel %vm114, %v465, 0
  %483 = vmatprep.subr.mxu0 0.0
  %484 = vmatpush1.msra.mxu0 0.0
  %485 = vmatprep.subr.mxu0 0.0
  %486 = vmatpush1.msra.mxu0 0.0
  %487 = vmatprep.subr.mxu0 0.0
  %488 = vmatpush1.msra.mxu0 0.0
  %489 = vmatprep.subr.mxu0 0.0
  %490 = vmatpush1.msra.mxu0 0.0
  %491 = vmatprep.subr.mxu0 0.0
  %492 = vmatpush1.msra.mxu0 0.0
  %493 = vmatprep.subr.mxu0 0.0
  %494 = vmatpush1.msra.mxu0 0.0
  %495 = vmatprep.subr.mxu0 0.0
  %496 = vmatpush1.msra.mxu0 0.0
  %497 = vmatprep.subr.mxu0 0.0
  %498 = vmatpush1.msra.mxu0 0.0
  %499 = vmatprep.subr.mxu0 0.0
  %500 = vmatpush1.msra.mxu0 0.0
  %501 = vmatprep.subr.mxu0 0.0
  %502 = vmatpush1.msra.mxu0 0.0
  %503 = vmatprep.subr.mxu0 0.0
  %504 = vmatpush1.msra.mxu0 0.0
  %505 = vmatprep.subr.mxu0 0.0
  %506 = vmatpush1.msra.mxu0 0.0
  %507 = vmatprep.subr.mxu0 0.0
  %508 = vmatpush1.msra.mxu0 0.0
  %509 = vmatprep.subr.mxu0 0.0
  %510 = vmatpush1.msra.mxu0 0.0
  %511 = vmatprep.subr.mxu0 0.0
  %512 = vmatpush1.msra.mxu0 0.0
  %513 = vmatprep.subr.mxu0 %v475
  %514 = vmatpush1.msra.mxu0 %v472
  %515 = vmatprep.subr.mxu0 0.0
  %516 = vmatpush2.msra.mxu0 0.0
  %517 = vmatprep.subr.mxu0 0.0
  %518 = vmatpush2.msra.mxu0 0.0
  %519 = vmatprep.subr.mxu0 0.0
  %520 = vmatpush2.msra.mxu0 0.0
  %521 = vmatprep.subr.mxu0 0.0
  %522 = vmatpush2.msra.mxu0 0.0
  %523 = vmatprep.subr.mxu0 0.0
  %524 = vmatpush2.msra.mxu0 0.0
  %525 = vmatprep.subr.mxu0 0.0
  %526 = vmatpush2.msra.mxu0 0.0
  %527 = vmatprep.subr.mxu0 0.0
  %528 = vmatpush2.msra.mxu0 0.0
  %529 = vmatprep.subr.mxu0 0.0
  %530 = vmatpush2.msra.mxu0 0.0
  %531 = vmatprep.subr.mxu0 0.0
  %532 = vmatpush2.msra.mxu0 0.0
  %533 = vmatprep.subr.mxu0 0.0
  %534 = vmatpush2.msra.mxu0 0.0
  %535 = vmatprep.subr.mxu0 0.0
  %536 = vmatpush2.msra.mxu0 0.0
  %537 = vmatprep.subr.mxu0 0.0
  %538 = vmatpush2.msra.mxu0 0.0
  %539 = vmatprep.subr.mxu0 0.0
  %540 = vmatpush2.msra.mxu0 0.0
  %541 = vmatprep.subr.mxu0 0.0
  %542 = vmatpush2.msra.mxu0 0.0
  %543 = vmatprep.subr.mxu0 0.0
  %544 = vmatpush2.msra.mxu0 0.0
  %545 = vmatprep.subr.mxu0 0.0
  %546 = vmatpush2.msra.mxu0 0.0
  %547 = vmatprep.mubr.f32.mxu0 0.0
  %548 = vmatmul.mubr.f32.gmra.mxu0 %v469
  %v549 = vpop.f32.mrf.mxu0
  %v550 = vadd.f32 0.0, %v549
  %v551 = vpop.f32.mrf.mxu0
  %v552 = vadd.f32 0.0, %v551
  %553 = vdwg.mxu0
  %554 = vmatprep.subr.mxu0 0.0
  %555 = vmatpush1.msra.mxu0 0.0
  %556 = vmatprep.subr.mxu0 0.0
  %557 = vmatpush1.msra.mxu0 0.0
  %558 = vmatprep.subr.mxu0 0.0
  %559 = vmatpush1.msra.mxu0 0.0
  %560 = vmatprep.subr.mxu0 0.0
  %561 = vmatpush1.msra.mxu0 0.0
  %562 = vmatprep.subr.mxu0 0.0
  %563 = vmatpush1.msra.mxu0 0.0
  %564 = vmatprep.subr.mxu0 0.0
  %565 = vmatpush1.msra.mxu0 0.0
  %566 = vmatprep.subr.mxu0 0.0
  %567 = vmatpush1.msra.mxu0 0.0
  %568 = vmatprep.subr.mxu0 0.0
  %569 = vmatpush1.msra.mxu0 0.0
  %570 = vmatprep.subr.mxu0 0.0
  %571 = vmatpush1.msra.mxu0 0.0
  %572 = vmatprep.subr.mxu0 0.0
  %573 = vmatpush1.msra.mxu0 0.0
  %574 = vmatprep.subr.mxu0 0.0
  %575 = vmatpush1.msra.mxu0 0.0
  %576 = vmatprep.subr.mxu0 0.0
  %577 = vmatpush1.msra.mxu0 0.0
  %578 = vmatprep.subr.mxu0 0.0
  %579 = vmatpush1.msra.mxu0 0.0
  %580 = vmatprep.subr.mxu0 0.0
  %581 = vmatpush1.msra.mxu0 0.0
  %582 = vmatprep.subr.mxu0 0.0
  %583 = vmatpush1.msra.mxu0 0.0
  %584 = vmatprep.subr.mxu0 %v481
  %585 = vmatpush1.msra.mxu0 %v478
  %586 = vmatprep.subr.mxu0 0.0
  %587 = vmatpush2.msra.mxu0 0.0
  %588 = vmatprep.subr.mxu0 0.0
  %589 = vmatpush2.msra.mxu0 0.0
  %590 = vmatprep.subr.mxu0 0.0
  %591 = vmatpush2.msra.mxu0 0.0
  %592 = vmatprep.subr.mxu0 0.0
  %593 = vmatpush2.msra.mxu0 0.0
  %594 = vmatprep.subr.mxu0 0.0
  %595 = vmatpush2.msra.mxu0 0.0
  %596 = vmatprep.subr.mxu0 0.0
  %597 = vmatpush2.msra.mxu0 0.0
  %598 = vmatprep.subr.mxu0 0.0
  %599 = vmatpush2.msra.mxu0 0.0
  %600 = vmatprep.subr.mxu0 0.0
  %601 = vmatpush2.msra.mxu0 0.0
  %602 = vmatprep.subr.mxu0 0.0
  %603 = vmatpush2.msra.mxu0 0.0
  %604 = vmatprep.subr.mxu0 0.0
  %605 = vmatpush2.msra.mxu0 0.0
  %606 = vmatprep.subr.mxu0 0.0
  %607 = vmatpush2.msra.mxu0 0.0
  %608 = vmatprep.subr.mxu0 0.0
  %609 = vmatpush2.msra.mxu0 0.0
  %610 = vmatprep.subr.mxu0 0.0
  %611 = vmatpush2.msra.mxu0 0.0
  %612 = vmatprep.subr.mxu0 0.0
  %613 = vmatpush2.msra.mxu0 0.0
  %614 = vmatprep.subr.mxu0 0.0
  %615 = vmatpush2.msra.mxu0 0.0
  %616 = vmatprep.subr.mxu0 0.0
  %617 = vmatpush2.msra.mxu0 0.0
  %618 = vmatprep.mubr.f32.mxu0 0.0
  %619 = vmatmul.mubr.f32.gmra.mxu0 %v469
  %v620 = vpop.f32.mrf.mxu0
  %v621 = vadd.f32 0.0, %v620
  %v622 = vpop.f32.mrf.mxu0
  %v623 = vadd.f32 0.0, %v622
  %624 = vdwg.mxu0
  %v625 = vadd.f32 %v351, %v550
  %v626 = vadd.f32 %v353, %v552
  %v627 = vadd.f32 %v422, %v621
  %v628 = vadd.f32 %v424, %v623
  %629 = vrot.lane.b32.xlu0 %v18, 1
  %v630 = vpop.permute.xlu0 %629
  %631 = vrot.lane.b32.xlu0 %v22, 1
  %v632 = vpop.permute.xlu0 %631
  %633 = vrot.lane.b32.xlu0 %v19, 1
  %v634 = vpop.permute.xlu0 %633
  %635 = vrot.lane.b32.xlu0 %v23, 1
  %v636 = vpop.permute.xlu0 %635
  %vm637 = vcmp.lt.s32.totalorder %v35, 1
  %v638 = vsel %vm637, %v634, %v636
  %v639 = vsel %vm637, %v632, %v634
  %v640 = vsel %vm637, %v630, %v632
  %v641 = vsel %vm637, %v636, %v630
  %s642 = scalar_lea.vmem %s2, 3
  %v643 = vld [vmem:[%s642] ss:$8 sm:$0xf]
  %v645 = vlaneseq
  %v646 = vshrl.u32 %v645, 7
  %v647 = vsub.s32 0, %v646
  %v648 = vrot.slane %v643, %v647
  %v649 = vlaneseq
  %v650 = vshrl.u32 %v649, 7
  %v651 = vsub.s32 1, %v650
  %v652 = vrot.slane %v643, %v651
  %v653 = vlaneseq
  %v654 = vshrl.u32 %v653, 7
  %v655 = vsub.s32 2, %v654
  %v656 = vrot.slane %v643, %v655
  %v657 = vlaneseq
  %v658 = vshrl.u32 %v657, 7
  %v659 = vsub.s32 3, %v658
  %v660 = vrot.slane %v643, %v659
  %v665 = vmul.f32 %v641, %v648
  %v666 = vmul.f32 %v640, %v652
  %v667 = vmul.f32 %v639, %v656
  %v668 = vmul.f32 %v638, %v660
  %s669 = scalar_lea.vmem %s1, 12
  %v670 = vld [vmem:[%s669] sm:$0xf]
  %v672 = vsel %vm110, %v670, 0
  %v675 = vsel %vm114, %v665, 0
  %v678 = vsel %vm114, %v666, 0
  %v681 = vsel %vm114, %v667, 0
  %v684 = vsel %vm114, %v668, 0
  %686 = vmatprep.subr.mxu0 0.0
  %687 = vmatpush1.msra.mxu0 0.0
  %688 = vmatprep.subr.mxu0 0.0
  %689 = vmatpush1.msra.mxu0 0.0
  %690 = vmatprep.subr.mxu0 0.0
  %691 = vmatpush1.msra.mxu0 0.0
  %692 = vmatprep.subr.mxu0 0.0
  %693 = vmatpush1.msra.mxu0 0.0
  %694 = vmatprep.subr.mxu0 0.0
  %695 = vmatpush1.msra.mxu0 0.0
  %696 = vmatprep.subr.mxu0 0.0
  %697 = vmatpush1.msra.mxu0 0.0
  %698 = vmatprep.subr.mxu0 0.0
  %699 = vmatpush1.msra.mxu0 0.0
  %700 = vmatprep.subr.mxu0 0.0
  %701 = vmatpush1.msra.mxu0 0.0
  %702 = vmatprep.subr.mxu0 0.0
  %703 = vmatpush1.msra.mxu0 0.0
  %704 = vmatprep.subr.mxu0 0.0
  %705 = vmatpush1.msra.mxu0 0.0
  %706 = vmatprep.subr.mxu0 0.0
  %707 = vmatpush1.msra.mxu0 0.0
  %708 = vmatprep.subr.mxu0 0.0
  %709 = vmatpush1.msra.mxu0 0.0
  %710 = vmatprep.subr.mxu0 0.0
  %711 = vmatpush1.msra.mxu0 0.0
  %712 = vmatprep.subr.mxu0 0.0
  %713 = vmatpush1.msra.mxu0 0.0
  %714 = vmatprep.subr.mxu0 0.0
  %715 = vmatpush1.msra.mxu0 0.0
  %716 = vmatprep.subr.mxu0 %v678
  %717 = vmatpush1.msra.mxu0 %v675
  %718 = vmatprep.subr.mxu0 0.0
  %719 = vmatpush2.msra.mxu0 0.0
  %720 = vmatprep.subr.mxu0 0.0
  %721 = vmatpush2.msra.mxu0 0.0
  %722 = vmatprep.subr.mxu0 0.0
  %723 = vmatpush2.msra.mxu0 0.0
  %724 = vmatprep.subr.mxu0 0.0
  %725 = vmatpush2.msra.mxu0 0.0
  %726 = vmatprep.subr.mxu0 0.0
  %727 = vmatpush2.msra.mxu0 0.0
  %728 = vmatprep.subr.mxu0 0.0
  %729 = vmatpush2.msra.mxu0 0.0
  %730 = vmatprep.subr.mxu0 0.0
  %731 = vmatpush2.msra.mxu0 0.0
  %732 = vmatprep.subr.mxu0 0.0
  %733 = vmatpush2.msra.mxu0 0.0
  %734 = vmatprep.subr.mxu0 0.0
  %735 = vmatpush2.msra.mxu0 0.0
  %736 = vmatprep.subr.mxu0 0.0
  %737 = vmatpush2.msra.mxu0 0.0
  %738 = vmatprep.subr.mxu0 0.0
  %739 = vmatpush2.msra.mxu0 0.0
  %740 = vmatprep.subr.mxu0 0.0
  %741 = vmatpush2.msra.mxu0 0.0
  %742 = vmatprep.subr.mxu0 0.0
  %743 = vmatpush2.msra.mxu0 0.0
  %744 = vmatprep.subr.mxu0 0.0
  %745 = vmatpush2.msra.mxu0 0.0
  %746 = vmatprep.subr.mxu0 0.0
  %747 = vmatpush2.msra.mxu0 0.0
  %748 = vmatprep.subr.mxu0 0.0
  %749 = vmatpush2.msra.mxu0 0.0
  %750 = vmatprep.mubr.f32.mxu0 0.0
  %751 = vmatmul.mubr.f32.gmra.mxu0 %v672
  %v752 = vpop.f32.mrf.mxu0
  %v753 = vadd.f32 0.0, %v752
  %v754 = vpop.f32.mrf.mxu0
  %v755 = vadd.f32 0.0, %v754
  %756 = vdwg.mxu0
  %757 = vmatprep.subr.mxu0 0.0
  %758 = vmatpush1.msra.mxu0 0.0
  %759 = vmatprep.subr.mxu0 0.0
  %760 = vmatpush1.msra.mxu0 0.0
  %761 = vmatprep.subr.mxu0 0.0
  %762 = vmatpush1.msra.mxu0 0.0
  %763 = vmatprep.subr.mxu0 0.0
  %764 = vmatpush1.msra.mxu0 0.0
  %765 = vmatprep.subr.mxu0 0.0
  %766 = vmatpush1.msra.mxu0 0.0
  %767 = vmatprep.subr.mxu0 0.0
  %768 = vmatpush1.msra.mxu0 0.0
  %769 = vmatprep.subr.mxu0 0.0
  %770 = vmatpush1.msra.mxu0 0.0
  %771 = vmatprep.subr.mxu0 0.0
  %772 = vmatpush1.msra.mxu0 0.0
  %773 = vmatprep.subr.mxu0 0.0
  %774 = vmatpush1.msra.mxu0 0.0
  %775 = vmatprep.subr.mxu0 0.0
  %776 = vmatpush1.msra.mxu0 0.0
  %777 = vmatprep.subr.mxu0 0.0
  %778 = vmatpush1.msra.mxu0 0.0
  %779 = vmatprep.subr.mxu0 0.0
  %780 = vmatpush1.msra.mxu0 0.0
  %781 = vmatprep.subr.mxu0 0.0
  %782 = vmatpush1.msra.mxu0 0.0
  %783 = vmatprep.subr.mxu0 0.0
  %784 = vmatpush1.msra.mxu0 0.0
  %785 = vmatprep.subr.mxu0 0.0
  %786 = vmatpush1.msra.mxu0 0.0
  %787 = vmatprep.subr.mxu0 %v684
  %788 = vmatpush1.msra.mxu0 %v681
  %789 = vmatprep.subr.mxu0 0.0
  %790 = vmatpush2.msra.mxu0 0.0
  %791 = vmatprep.subr.mxu0 0.0
  %792 = vmatpush2.msra.mxu0 0.0
  %793 = vmatprep.subr.mxu0 0.0
  %794 = vmatpush2.msra.mxu0 0.0
  %795 = vmatprep.subr.mxu0 0.0
  %796 = vmatpush2.msra.mxu0 0.0
  %797 = vmatprep.subr.mxu0 0.0
  %798 = vmatpush2.msra.mxu0 0.0
  %799 = vmatprep.subr.mxu0 0.0
  %800 = vmatpush2.msra.mxu0 0.0
  %801 = vmatprep.subr.mxu0 0.0
  %802 = vmatpush2.msra.mxu0 0.0
  %803 = vmatprep.subr.mxu0 0.0
  %804 = vmatpush2.msra.mxu0 0.0
  %805 = vmatprep.subr.mxu0 0.0
  %806 = vmatpush2.msra.mxu0 0.0
  %807 = vmatprep.subr.mxu0 0.0
  %808 = vmatpush2.msra.mxu0 0.0
  %809 = vmatprep.subr.mxu0 0.0
  %810 = vmatpush2.msra.mxu0 0.0
  %811 = vmatprep.subr.mxu0 0.0
  %812 = vmatpush2.msra.mxu0 0.0
  %813 = vmatprep.subr.mxu0 0.0
  %814 = vmatpush2.msra.mxu0 0.0
  %815 = vmatprep.subr.mxu0 0.0
  %816 = vmatpush2.msra.mxu0 0.0
  %817 = vmatprep.subr.mxu0 0.0
  %818 = vmatpush2.msra.mxu0 0.0
  %819 = vmatprep.subr.mxu0 0.0
  %820 = vmatpush2.msra.mxu0 0.0
  %821 = vmatprep.mubr.f32.mxu0 0.0
  %822 = vmatmul.mubr.f32.gmra.mxu0 %v672
  %v823 = vpop.f32.mrf.mxu0
  %v824 = vadd.f32 0.0, %v823
  %v825 = vpop.f32.mrf.mxu0
  %v826 = vadd.f32 0.0, %v825
  %827 = vdwg.mxu0
  %v828 = vadd.f32 %v625, %v753
  %v829 = vadd.f32 %v626, %v755
  %v830 = vadd.f32 %v627, %v824
  %v831 = vadd.f32 %v628, %v826
  %s832 = scalar_lea.vmem %s2, 4
  %v833 = vld [vmem:[%s832] ss:$8 sm:$0xf]
  %v835 = vlaneseq
  %v836 = vshrl.u32 %v835, 7
  %v837 = vsub.s32 0, %v836
  %v838 = vrot.slane %v833, %v837
  %v839 = vlaneseq
  %v840 = vshrl.u32 %v839, 7
  %v841 = vsub.s32 1, %v840
  %v842 = vrot.slane %v833, %v841
  %v843 = vlaneseq
  %v844 = vshrl.u32 %v843, 7
  %v845 = vsub.s32 2, %v844
  %v846 = vrot.slane %v833, %v845
  %v847 = vlaneseq
  %v848 = vshrl.u32 %v847, 7
  %v849 = vsub.s32 3, %v848
  %v850 = vrot.slane %v833, %v849
  %v851 = vcombine.low %v838, %v842
  %v852 = vcombine.low %v846, %v850
  %v855 = vmul.f32 %v18, %v851
  %v856 = vmul.f32 %v19, %v852
  %s857 = scalar_lea.vmem %s1, 16
  %v858 = vld [vmem:[%s857] sm:$0xf]
  %v861 = vcombine.high %v855, %v855
  %v862 = vcombine.high %v856, %v856
  %v864 = vsel %vm110, %v858, 0
  %v866 = vsel %vm114, %v855, 0
  %v868 = vsel %vm114, %v861, 0
  %v870 = vsel %vm114, %v856, 0
  %v872 = vsel %vm114, %v862, 0
  %874 = vmatprep.subr.mxu0 0.0
  %875 = vmatpush1.msra.mxu0 0.0
  %876 = vmatprep.subr.mxu0 0.0
  %877 = vmatpush1.msra.mxu0 0.0
  %878 = vmatprep.subr.mxu0 0.0
  %879 = vmatpush1.msra.mxu0 0.0
  %880 = vmatprep.subr.mxu0 0.0
  %881 = vmatpush1.msra.mxu0 0.0
  %882 = vmatprep.subr.mxu0 0.0
  %883 = vmatpush1.msra.mxu0 0.0
  %884 = vmatprep.subr.mxu0 0.0
  %885 = vmatpush1.msra.mxu0 0.0
  %886 = vmatprep.subr.mxu0 0.0
  %887 = vmatpush1.msra.mxu0 0.0
  %888 = vmatprep.subr.mxu0 0.0
  %889 = vmatpush1.msra.mxu0 0.0
  %890 = vmatprep.subr.mxu0 0.0
  %891 = vmatpush1.msra.mxu0 0.0
  %892 = vmatprep.subr.mxu0 0.0
  %893 = vmatpush1.msra.mxu0 0.0
  %894 = vmatprep.subr.mxu0 0.0
  %895 = vmatpush1.msra.mxu0 0.0
  %896 = vmatprep.subr.mxu0 0.0
  %897 = vmatpush1.msra.mxu0 0.0
  %898 = vmatprep.subr.mxu0 0.0
  %899 = vmatpush1.msra.mxu0 0.0
  %900 = vmatprep.subr.mxu0 0.0
  %901 = vmatpush1.msra.mxu0 0.0
  %902 = vmatprep.subr.mxu0 0.0
  %903 = vmatpush1.msra.mxu0 0.0
  %904 = vmatprep.subr.mxu0 %v868
  %905 = vmatpush1.msra.mxu0 %v866
  %906 = vmatprep.subr.mxu0 0.0
  %907 = vmatpush2.msra.mxu0 0.0
  %908 = vmatprep.subr.mxu0 0.0
  %909 = vmatpush2.msra.mxu0 0.0
  %910 = vmatprep.subr.mxu0 0.0
  %911 = vmatpush2.msra.mxu0 0.0
  %912 = vmatprep.subr.mxu0 0.0
  %913 = vmatpush2.msra.mxu0 0.0
  %914 = vmatprep.subr.mxu0 0.0
  %915 = vmatpush2.msra.mxu0 0.0
  %916 = vmatprep.subr.mxu0 0.0
  %917 = vmatpush2.msra.mxu0 0.0
  %918 = vmatprep.subr.mxu0 0.0
  %919 = vmatpush2.msra.mxu0 0.0
  %920 = vmatprep.subr.mxu0 0.0
  %921 = vmatpush2.msra.mxu0 0.0
  %922 = vmatprep.subr.mxu0 0.0
  %923 = vmatpush2.msra.mxu0 0.0
  %924 = vmatprep.subr.mxu0 0.0
  %925 = vmatpush2.msra.mxu0 0.0
  %926 = vmatprep.subr.mxu0 0.0
  %927 = vmatpush2.msra.mxu0 0.0
  %928 = vmatprep.subr.mxu0 0.0
  %929 = vmatpush2.msra.mxu0 0.0
  %930 = vmatprep.subr.mxu0 0.0
  %931 = vmatpush2.msra.mxu0 0.0
  %932 = vmatprep.subr.mxu0 0.0
  %933 = vmatpush2.msra.mxu0 0.0
  %934 = vmatprep.subr.mxu0 0.0
  %935 = vmatpush2.msra.mxu0 0.0
  %936 = vmatprep.subr.mxu0 0.0
  %937 = vmatpush2.msra.mxu0 0.0
  %938 = vmatprep.mubr.f32.mxu0 0.0
  %939 = vmatmul.mubr.f32.gmra.mxu0 %v864
  %v940 = vpop.f32.mrf.mxu0
  %v941 = vadd.f32 0.0, %v940
  %v942 = vpop.f32.mrf.mxu0
  %v943 = vadd.f32 0.0, %v942
  %944 = vdwg.mxu0
  %945 = vmatprep.subr.mxu0 0.0
  %946 = vmatpush1.msra.mxu0 0.0
  %947 = vmatprep.subr.mxu0 0.0
  %948 = vmatpush1.msra.mxu0 0.0
  %949 = vmatprep.subr.mxu0 0.0
  %950 = vmatpush1.msra.mxu0 0.0
  %951 = vmatprep.subr.mxu0 0.0
  %952 = vmatpush1.msra.mxu0 0.0
  %953 = vmatprep.subr.mxu0 0.0
  %954 = vmatpush1.msra.mxu0 0.0
  %955 = vmatprep.subr.mxu0 0.0
  %956 = vmatpush1.msra.mxu0 0.0
  %957 = vmatprep.subr.mxu0 0.0
  %958 = vmatpush1.msra.mxu0 0.0
  %959 = vmatprep.subr.mxu0 0.0
  %960 = vmatpush1.msra.mxu0 0.0
  %961 = vmatprep.subr.mxu0 0.0
  %962 = vmatpush1.msra.mxu0 0.0
  %963 = vmatprep.subr.mxu0 0.0
  %964 = vmatpush1.msra.mxu0 0.0
  %965 = vmatprep.subr.mxu0 0.0
  %966 = vmatpush1.msra.mxu0 0.0
  %967 = vmatprep.subr.mxu0 0.0
  %968 = vmatpush1.msra.mxu0 0.0
  %969 = vmatprep.subr.mxu0 0.0
  %970 = vmatpush1.msra.mxu0 0.0
  %971 = vmatprep.subr.mxu0 0.0
  %972 = vmatpush1.msra.mxu0 0.0
  %973 = vmatprep.subr.mxu0 0.0
  %974 = vmatpush1.msra.mxu0 0.0
  %975 = vmatprep.subr.mxu0 %v872
  %976 = vmatpush1.msra.mxu0 %v870
  %977 = vmatprep.subr.mxu0 0.0
  %978 = vmatpush2.msra.mxu0 0.0
  %979 = vmatprep.subr.mxu0 0.0
  %980 = vmatpush2.msra.mxu0 0.0
  %981 = vmatprep.subr.mxu0 0.0
  %982 = vmatpush2.msra.mxu0 0.0
  %983 = vmatprep.subr.mxu0 0.0
  %984 = vmatpush2.msra.mxu0 0.0
  %985 = vmatprep.subr.mxu0 0.0
  %986 = vmatpush2.msra.mxu0 0.0
  %987 = vmatprep.subr.mxu0 0.0
  %988 = vmatpush2.msra.mxu0 0.0
  %989 = vmatprep.subr.mxu0 0.0
  %990 = vmatpush2.msra.mxu0 0.0
  %991 = vmatprep.subr.mxu0 0.0
  %992 = vmatpush2.msra.mxu0 0.0
  %993 = vmatprep.subr.mxu0 0.0
  %994 = vmatpush2.msra.mxu0 0.0
  %995 = vmatprep.subr.mxu0 0.0
  %996 = vmatpush2.msra.mxu0 0.0
  %997 = vmatprep.subr.mxu0 0.0
  %998 = vmatpush2.msra.mxu0 0.0
  %999 = vmatprep.subr.mxu0 0.0
  %1000 = vmatpush2.msra.mxu0 0.0
  %1001 = vmatprep.subr.mxu0 0.0
  %1002 = vmatpush2.msra.mxu0 0.0
  %1003 = vmatprep.subr.mxu0 0.0
  %1004 = vmatpush2.msra.mxu0 0.0
  %1005 = vmatprep.subr.mxu0 0.0
  %1006 = vmatpush2.msra.mxu0 0.0
  %1007 = vmatprep.subr.mxu0 0.0
  %1008 = vmatpush2.msra.mxu0 0.0
  %1009 = vmatprep.mubr.f32.mxu0 0.0
  %1010 = vmatmul.mubr.f32.gmra.mxu0 %v864
  %v1011 = vpop.f32.mrf.mxu0
  %v1012 = vadd.f32 0.0, %v1011
  %v1013 = vpop.f32.mrf.mxu0
  %v1014 = vadd.f32 0.0, %v1013
  %1015 = vdwg.mxu0
  %v1016 = vadd.f32 %v828, %v941
  %v1017 = vadd.f32 %v829, %v943
  %v1018 = vadd.f32 %v830, %v1012
  %v1019 = vadd.f32 %v831, %v1014
  %1020 = vrot.lane.b32.xlu0 %v18, 127
  %v1021 = vpop.permute.xlu0 %1020
  %1022 = vrot.lane.b32.xlu0 %v22, 127
  %v1023 = vpop.permute.xlu0 %1022
  %1024 = vrot.lane.b32.xlu0 %v19, 127
  %v1025 = vpop.permute.xlu0 %1024
  %1026 = vrot.lane.b32.xlu0 %v23, 127
  %v1027 = vpop.permute.xlu0 %1026
  %vm1028 = vcmp.lt.s32.totalorder %v35, 127
  %v1029 = vsel %vm1028, %v1025, %v1027
  %v1030 = vsel %vm1028, %v1023, %v1025
  %v1031 = vsel %vm1028, %v1021, %v1023
  %v1032 = vsel %vm1028, %v1027, %v1021
  %s1033 = scalar_lea.vmem %s2, 5
  %v1034 = vld [vmem:[%s1033] ss:$8 sm:$0xf]
  %v1036 = vlaneseq
  %v1037 = vshrl.u32 %v1036, 7
  %v1038 = vsub.s32 0, %v1037
  %v1039 = vrot.slane %v1034, %v1038
  %v1040 = vlaneseq
  %v1041 = vshrl.u32 %v1040, 7
  %v1042 = vsub.s32 1, %v1041
  %v1043 = vrot.slane %v1034, %v1042
  %v1044 = vlaneseq
  %v1045 = vshrl.u32 %v1044, 7
  %v1046 = vsub.s32 2, %v1045
  %v1047 = vrot.slane %v1034, %v1046
  %v1048 = vlaneseq
  %v1049 = vshrl.u32 %v1048, 7
  %v1050 = vsub.s32 3, %v1049
  %v1051 = vrot.slane %v1034, %v1050
  %v1056 = vmul.f32 %v1031, %v1039
  %v1057 = vmul.f32 %v1030, %v1043
  %v1058 = vmul.f32 %v1029, %v1047
  %v1059 = vmul.f32 %v1032, %v1051
  %s1060 = scalar_lea.vmem %s1, 20
  %v1061 = vld [vmem:[%s1060] sm:$0xf]
  %v1063 = vsel %vm110, %v1061, 0
  %v1066 = vsel %vm114, %v1056, 0
  %v1069 = vsel %vm114, %v1057, 0
  %v1072 = vsel %vm114, %v1058, 0
  %v1075 = vsel %vm114, %v1059, 0
  %1077 = vmatprep.subr.mxu0 0.0
  %1078 = vmatpush1.msra.mxu0 0.0
  %1079 = vmatprep.subr.mxu0 0.0
  %1080 = vmatpush1.msra.mxu0 0.0
  %1081 = vmatprep.subr.mxu0 0.0
  %1082 = vmatpush1.msra.mxu0 0.0
  %1083 = vmatprep.subr.mxu0 0.0
  %1084 = vmatpush1.msra.mxu0 0.0
  %1085 = vmatprep.subr.mxu0 0.0
  %1086 = vmatpush1.msra.mxu0 0.0
  %1087 = vmatprep.subr.mxu0 0.0
  %1088 = vmatpush1.msra.mxu0 0.0
  %1089 = vmatprep.subr.mxu0 0.0
  %1090 = vmatpush1.msra.mxu0 0.0
  %1091 = vmatprep.subr.mxu0 0.0
  %1092 = vmatpush1.msra.mxu0 0.0
  %1093 = vmatprep.subr.mxu0 0.0
  %1094 = vmatpush1.msra.mxu0 0.0
  %1095 = vmatprep.subr.mxu0 0.0
  %1096 = vmatpush1.msra.mxu0 0.0
  %1097 = vmatprep.subr.mxu0 0.0
  %1098 = vmatpush1.msra.mxu0 0.0
  %1099 = vmatprep.subr.mxu0 0.0
  %1100 = vmatpush1.msra.mxu0 0.0
  %1101 = vmatprep.subr.mxu0 0.0
  %1102 = vmatpush1.msra.mxu0 0.0
  %1103 = vmatprep.subr.mxu0 0.0
  %1104 = vmatpush1.msra.mxu0 0.0
  %1105 = vmatprep.subr.mxu0 0.0
  %1106 = vmatpush1.msra.mxu0 0.0
  %1107 = vmatprep.subr.mxu0 %v1069
  %1108 = vmatpush1.msra.mxu0 %v1066
  %1109 = vmatprep.subr.mxu0 0.0
  %1110 = vmatpush2.msra.mxu0 0.0
  %1111 = vmatprep.subr.mxu0 0.0
  %1112 = vmatpush2.msra.mxu0 0.0
  %1113 = vmatprep.subr.mxu0 0.0
  %1114 = vmatpush2.msra.mxu0 0.0
  %1115 = vmatprep.subr.mxu0 0.0
  %1116 = vmatpush2.msra.mxu0 0.0
  %1117 = vmatprep.subr.mxu0 0.0
  %1118 = vmatpush2.msra.mxu0 0.0
  %1119 = vmatprep.subr.mxu0 0.0
  %1120 = vmatpush2.msra.mxu0 0.0
  %1121 = vmatprep.subr.mxu0 0.0
  %1122 = vmatpush2.msra.mxu0 0.0
  %1123 = vmatprep.subr.mxu0 0.0
  %1124 = vmatpush2.msra.mxu0 0.0
  %1125 = vmatprep.subr.mxu0 0.0
  %1126 = vmatpush2.msra.mxu0 0.0
  %1127 = vmatprep.subr.mxu0 0.0
  %1128 = vmatpush2.msra.mxu0 0.0
  %1129 = vmatprep.subr.mxu0 0.0
  %1130 = vmatpush2.msra.mxu0 0.0
  %1131 = vmatprep.subr.mxu0 0.0
  %1132 = vmatpush2.msra.mxu0 0.0
  %1133 = vmatprep.subr.mxu0 0.0
  %1134 = vmatpush2.msra.mxu0 0.0
  %1135 = vmatprep.subr.mxu0 0.0
  %1136 = vmatpush2.msra.mxu0 0.0
  %1137 = vmatprep.subr.mxu0 0.0
  %1138 = vmatpush2.msra.mxu0 0.0
  %1139 = vmatprep.subr.mxu0 0.0
  %1140 = vmatpush2.msra.mxu0 0.0
  %1141 = vmatprep.mubr.f32.mxu0 0.0
  %1142 = vmatmul.mubr.f32.gmra.mxu0 %v1063
  %v1143 = vpop.f32.mrf.mxu0
  %v1144 = vadd.f32 0.0, %v1143
  %v1145 = vpop.f32.mrf.mxu0
  %v1146 = vadd.f32 0.0, %v1145
  %1147 = vdwg.mxu0
  %1148 = vmatprep.subr.mxu0 0.0
  %1149 = vmatpush1.msra.mxu0 0.0
  %1150 = vmatprep.subr.mxu0 0.0
  %1151 = vmatpush1.msra.mxu0 0.0
  %1152 = vmatprep.subr.mxu0 0.0
  %1153 = vmatpush1.msra.mxu0 0.0
  %1154 = vmatprep.subr.mxu0 0.0
  %1155 = vmatpush1.msra.mxu0 0.0
  %1156 = vmatprep.subr.mxu0 0.0
  %1157 = vmatpush1.msra.mxu0 0.0
  %1158 = vmatprep.subr.mxu0 0.0
  %1159 = vmatpush1.msra.mxu0 0.0
  %1160 = vmatprep.subr.mxu0 0.0
  %1161 = vmatpush1.msra.mxu0 0.0
  %1162 = vmatprep.subr.mxu0 0.0
  %1163 = vmatpush1.msra.mxu0 0.0
  %1164 = vmatprep.subr.mxu0 0.0
  %1165 = vmatpush1.msra.mxu0 0.0
  %1166 = vmatprep.subr.mxu0 0.0
  %1167 = vmatpush1.msra.mxu0 0.0
  %1168 = vmatprep.subr.mxu0 0.0
  %1169 = vmatpush1.msra.mxu0 0.0
  %1170 = vmatprep.subr.mxu0 0.0
  %1171 = vmatpush1.msra.mxu0 0.0
  %1172 = vmatprep.subr.mxu0 0.0
  %1173 = vmatpush1.msra.mxu0 0.0
  %1174 = vmatprep.subr.mxu0 0.0
  %1175 = vmatpush1.msra.mxu0 0.0
  %1176 = vmatprep.subr.mxu0 0.0
  %1177 = vmatpush1.msra.mxu0 0.0
  %1178 = vmatprep.subr.mxu0 %v1075
  %1179 = vmatpush1.msra.mxu0 %v1072
  %1180 = vmatprep.subr.mxu0 0.0
  %1181 = vmatpush2.msra.mxu0 0.0
  %1182 = vmatprep.subr.mxu0 0.0
  %1183 = vmatpush2.msra.mxu0 0.0
  %1184 = vmatprep.subr.mxu0 0.0
  %1185 = vmatpush2.msra.mxu0 0.0
  %1186 = vmatprep.subr.mxu0 0.0
  %1187 = vmatpush2.msra.mxu0 0.0
  %1188 = vmatprep.subr.mxu0 0.0
  %1189 = vmatpush2.msra.mxu0 0.0
  %1190 = vmatprep.subr.mxu0 0.0
  %1191 = vmatpush2.msra.mxu0 0.0
  %1192 = vmatprep.subr.mxu0 0.0
  %1193 = vmatpush2.msra.mxu0 0.0
  %1194 = vmatprep.subr.mxu0 0.0
  %1195 = vmatpush2.msra.mxu0 0.0
  %1196 = vmatprep.subr.mxu0 0.0
  %1197 = vmatpush2.msra.mxu0 0.0
  %1198 = vmatprep.subr.mxu0 0.0
  %1199 = vmatpush2.msra.mxu0 0.0
  %1200 = vmatprep.subr.mxu0 0.0
  %1201 = vmatpush2.msra.mxu0 0.0
  %1202 = vmatprep.subr.mxu0 0.0
  %1203 = vmatpush2.msra.mxu0 0.0
  %1204 = vmatprep.subr.mxu0 0.0
  %1205 = vmatpush2.msra.mxu0 0.0
  %1206 = vmatprep.subr.mxu0 0.0
  %1207 = vmatpush2.msra.mxu0 0.0
  %1208 = vmatprep.subr.mxu0 0.0
  %1209 = vmatpush2.msra.mxu0 0.0
  %1210 = vmatprep.subr.mxu0 0.0
  %1211 = vmatpush2.msra.mxu0 0.0
  %1212 = vmatprep.mubr.f32.mxu0 0.0
  %1213 = vmatmul.mubr.f32.gmra.mxu0 %v1063
  %v1214 = vpop.f32.mrf.mxu0
  %v1215 = vadd.f32 0.0, %v1214
  %v1216 = vpop.f32.mrf.mxu0
  %v1217 = vadd.f32 0.0, %v1216
  %1218 = vdwg.mxu0
  %v1219 = vadd.f32 %v1016, %v1144
  %v1220 = vadd.f32 %v1017, %v1146
  %v1221 = vadd.f32 %v1018, %v1215
  %v1222 = vadd.f32 %v1019, %v1217
  %1223 = vrot.lane.b32.xlu0 %v18, 113
  %v1224 = vpop.permute.xlu0 %1223
  %1225 = vrot.lane.b32.xlu0 %v22, 113
  %v1226 = vpop.permute.xlu0 %1225
  %1227 = vrot.lane.b32.xlu0 %v19, 113
  %v1228 = vpop.permute.xlu0 %1227
  %1229 = vrot.lane.b32.xlu0 %v23, 113
  %v1230 = vpop.permute.xlu0 %1229
  %vm1231 = vcmp.lt.s32.totalorder %v35, 113
  %v1232 = vsel %vm1231, %v1228, %v1230
  %v1233 = vsel %vm1231, %v1226, %v1228
  %v1234 = vsel %vm1231, %v1224, %v1226
  %v1235 = vsel %vm1231, %v1230, %v1224
  %s1236 = scalar_lea.vmem %s2, 6
  %v1237 = vld [vmem:[%s1236] ss:$8 sm:$0xf]
  %v1239 = vlaneseq
  %v1240 = vshrl.u32 %v1239, 7
  %v1241 = vsub.s32 0, %v1240
  %v1242 = vrot.slane %v1237, %v1241
  %v1243 = vlaneseq
  %v1244 = vshrl.u32 %v1243, 7
  %v1245 = vsub.s32 1, %v1244
  %v1246 = vrot.slane %v1237, %v1245
  %v1247 = vlaneseq
  %v1248 = vshrl.u32 %v1247, 7
  %v1249 = vsub.s32 2, %v1248
  %v1250 = vrot.slane %v1237, %v1249
  %v1251 = vlaneseq
  %v1252 = vshrl.u32 %v1251, 7
  %v1253 = vsub.s32 3, %v1252
  %v1254 = vrot.slane %v1237, %v1253
  %v1259 = vmul.f32 %v1234, %v1242
  %v1260 = vmul.f32 %v1233, %v1246
  %v1261 = vmul.f32 %v1232, %v1250
  %v1262 = vmul.f32 %v1235, %v1254
  %s1263 = scalar_lea.vmem %s1, 24
  %v1264 = vld [vmem:[%s1263] sm:$0xf]
  %v1266 = vsel %vm110, %v1264, 0
  %v1269 = vsel %vm114, %v1259, 0
  %v1272 = vsel %vm114, %v1260, 0
  %v1275 = vsel %vm114, %v1261, 0
  %v1278 = vsel %vm114, %v1262, 0
  %1280 = vmatprep.subr.mxu0 0.0
  %1281 = vmatpush1.msra.mxu0 0.0
  %1282 = vmatprep.subr.mxu0 0.0
  %1283 = vmatpush1.msra.mxu0 0.0
  %1284 = vmatprep.subr.mxu0 0.0
  %1285 = vmatpush1.msra.mxu0 0.0
  %1286 = vmatprep.subr.mxu0 0.0
  %1287 = vmatpush1.msra.mxu0 0.0
  %1288 = vmatprep.subr.mxu0 0.0
  %1289 = vmatpush1.msra.mxu0 0.0
  %1290 = vmatprep.subr.mxu0 0.0
  %1291 = vmatpush1.msra.mxu0 0.0
  %1292 = vmatprep.subr.mxu0 0.0
  %1293 = vmatpush1.msra.mxu0 0.0
  %1294 = vmatprep.subr.mxu0 0.0
  %1295 = vmatpush1.msra.mxu0 0.0
  %1296 = vmatprep.subr.mxu0 0.0
  %1297 = vmatpush1.msra.mxu0 0.0
  %1298 = vmatprep.subr.mxu0 0.0
  %1299 = vmatpush1.msra.mxu0 0.0
  %1300 = vmatprep.subr.mxu0 0.0
  %1301 = vmatpush1.msra.mxu0 0.0
  %1302 = vmatprep.subr.mxu0 0.0
  %1303 = vmatpush1.msra.mxu0 0.0
  %1304 = vmatprep.subr.mxu0 0.0
  %1305 = vmatpush1.msra.mxu0 0.0
  %1306 = vmatprep.subr.mxu0 0.0
  %1307 = vmatpush1.msra.mxu0 0.0
  %1308 = vmatprep.subr.mxu0 0.0
  %1309 = vmatpush1.msra.mxu0 0.0
  %1310 = vmatprep.subr.mxu0 %v1272
  %1311 = vmatpush1.msra.mxu0 %v1269
  %1312 = vmatprep.subr.mxu0 0.0
  %1313 = vmatpush2.msra.mxu0 0.0
  %1314 = vmatprep.subr.mxu0 0.0
  %1315 = vmatpush2.msra.mxu0 0.0
  %1316 = vmatprep.subr.mxu0 0.0
  %1317 = vmatpush2.msra.mxu0 0.0
  %1318 = vmatprep.subr.mxu0 0.0
  %1319 = vmatpush2.msra.mxu0 0.0
  %1320 = vmatprep.subr.mxu0 0.0
  %1321 = vmatpush2.msra.mxu0 0.0
  %1322 = vmatprep.subr.mxu0 0.0
  %1323 = vmatpush2.msra.mxu0 0.0
  %1324 = vmatprep.subr.mxu0 0.0
  %1325 = vmatpush2.msra.mxu0 0.0
  %1326 = vmatprep.subr.mxu0 0.0
  %1327 = vmatpush2.msra.mxu0 0.0
  %1328 = vmatprep.subr.mxu0 0.0
  %1329 = vmatpush2.msra.mxu0 0.0
  %1330 = vmatprep.subr.mxu0 0.0
  %1331 = vmatpush2.msra.mxu0 0.0
  %1332 = vmatprep.subr.mxu0 0.0
  %1333 = vmatpush2.msra.mxu0 0.0
  %1334 = vmatprep.subr.mxu0 0.0
  %1335 = vmatpush2.msra.mxu0 0.0
  %1336 = vmatprep.subr.mxu0 0.0
  %1337 = vmatpush2.msra.mxu0 0.0
  %1338 = vmatprep.subr.mxu0 0.0
  %1339 = vmatpush2.msra.mxu0 0.0
  %1340 = vmatprep.subr.mxu0 0.0
  %1341 = vmatpush2.msra.mxu0 0.0
  %1342 = vmatprep.subr.mxu0 0.0
  %1343 = vmatpush2.msra.mxu0 0.0
  %1344 = vmatprep.mubr.f32.mxu0 0.0
  %1345 = vmatmul.mubr.f32.gmra.mxu0 %v1266
  %v1346 = vpop.f32.mrf.mxu0
  %v1347 = vadd.f32 0.0, %v1346
  %v1348 = vpop.f32.mrf.mxu0
  %v1349 = vadd.f32 0.0, %v1348
  %1350 = vdwg.mxu0
  %1351 = vmatprep.subr.mxu0 0.0
  %1352 = vmatpush1.msra.mxu0 0.0
  %1353 = vmatprep.subr.mxu0 0.0
  %1354 = vmatpush1.msra.mxu0 0.0
  %1355 = vmatprep.subr.mxu0 0.0
  %1356 = vmatpush1.msra.mxu0 0.0
  %1357 = vmatprep.subr.mxu0 0.0
  %1358 = vmatpush1.msra.mxu0 0.0
  %1359 = vmatprep.subr.mxu0 0.0
  %1360 = vmatpush1.msra.mxu0 0.0
  %1361 = vmatprep.subr.mxu0 0.0
  %1362 = vmatpush1.msra.mxu0 0.0
  %1363 = vmatprep.subr.mxu0 0.0
  %1364 = vmatpush1.msra.mxu0 0.0
  %1365 = vmatprep.subr.mxu0 0.0
  %1366 = vmatpush1.msra.mxu0 0.0
  %1367 = vmatprep.subr.mxu0 0.0
  %1368 = vmatpush1.msra.mxu0 0.0
  %1369 = vmatprep.subr.mxu0 0.0
  %1370 = vmatpush1.msra.mxu0 0.0
  %1371 = vmatprep.subr.mxu0 0.0
  %1372 = vmatpush1.msra.mxu0 0.0
  %1373 = vmatprep.subr.mxu0 0.0
  %1374 = vmatpush1.msra.mxu0 0.0
  %1375 = vmatprep.subr.mxu0 0.0
  %1376 = vmatpush1.msra.mxu0 0.0
  %1377 = vmatprep.subr.mxu0 0.0
  %1378 = vmatpush1.msra.mxu0 0.0
  %1379 = vmatprep.subr.mxu0 0.0
  %1380 = vmatpush1.msra.mxu0 0.0
  %1381 = vmatprep.subr.mxu0 %v1278
  %1382 = vmatpush1.msra.mxu0 %v1275
  %1383 = vmatprep.subr.mxu0 0.0
  %1384 = vmatpush2.msra.mxu0 0.0
  %1385 = vmatprep.subr.mxu0 0.0
  %1386 = vmatpush2.msra.mxu0 0.0
  %1387 = vmatprep.subr.mxu0 0.0
  %1388 = vmatpush2.msra.mxu0 0.0
  %1389 = vmatprep.subr.mxu0 0.0
  %1390 = vmatpush2.msra.mxu0 0.0
  %1391 = vmatprep.subr.mxu0 0.0
  %1392 = vmatpush2.msra.mxu0 0.0
  %1393 = vmatprep.subr.mxu0 0.0
  %1394 = vmatpush2.msra.mxu0 0.0
  %1395 = vmatprep.subr.mxu0 0.0
  %1396 = vmatpush2.msra.mxu0 0.0
  %1397 = vmatprep.subr.mxu0 0.0
  %1398 = vmatpush2.msra.mxu0 0.0
  %1399 = vmatprep.subr.mxu0 0.0
  %1400 = vmatpush2.msra.mxu0 0.0
  %1401 = vmatprep.subr.mxu0 0.0
  %1402 = vmatpush2.msra.mxu0 0.0
  %1403 = vmatprep.subr.mxu0 0.0
  %1404 = vmatpush2.msra.mxu0 0.0
  %1405 = vmatprep.subr.mxu0 0.0
  %1406 = vmatpush2.msra.mxu0 0.0
  %1407 = vmatprep.subr.mxu0 0.0
  %1408 = vmatpush2.msra.mxu0 0.0
  %1409 = vmatprep.subr.mxu0 0.0
  %1410 = vmatpush2.msra.mxu0 0.0
  %1411 = vmatprep.subr.mxu0 0.0
  %1412 = vmatpush2.msra.mxu0 0.0
  %1413 = vmatprep.subr.mxu0 0.0
  %1414 = vmatpush2.msra.mxu0 0.0
  %1415 = vmatprep.mubr.f32.mxu0 0.0
  %1416 = vmatmul.mubr.f32.gmra.mxu0 %v1266
  %v1417 = vpop.f32.mrf.mxu0
  %v1418 = vadd.f32 0.0, %v1417
  %v1419 = vpop.f32.mrf.mxu0
  %v1420 = vadd.f32 0.0, %v1419
  %1421 = vdwg.mxu0
  %v1422 = vadd.f32 %v1219, %v1347
  %v1423 = vadd.f32 %v1220, %v1349
  %v1424 = vadd.f32 %v1221, %v1418
  %v1425 = vadd.f32 %v1222, %v1420
  %1426 = vrot.lane.b32.xlu0 %v18, 112
  %v1427 = vpop.permute.xlu0 %1426
  %1428 = vrot.lane.b32.xlu0 %v22, 112
  %v1429 = vpop.permute.xlu0 %1428
  %1430 = vrot.lane.b32.xlu0 %v19, 112
  %v1431 = vpop.permute.xlu0 %1430
  %1432 = vrot.lane.b32.xlu0 %v23, 112
  %v1433 = vpop.permute.xlu0 %1432
  %vm1434 = vcmp.lt.s32.totalorder %v35, 112
  %v1435 = vsel %vm1434, %v1431, %v1433
  %v1436 = vsel %vm1434, %v1429, %v1431
  %v1437 = vsel %vm1434, %v1427, %v1429
  %v1438 = vsel %vm1434, %v1433, %v1427
  %s1439 = scalar_lea.vmem %s2, 7
  %v1440 = vld [vmem:[%s1439] ss:$8 sm:$0xf]
  %v1442 = vlaneseq
  %v1443 = vshrl.u32 %v1442, 7
  %v1444 = vsub.s32 0, %v1443
  %v1445 = vrot.slane %v1440, %v1444
  %v1446 = vlaneseq
  %v1447 = vshrl.u32 %v1446, 7
  %v1448 = vsub.s32 1, %v1447
  %v1449 = vrot.slane %v1440, %v1448
  %v1450 = vlaneseq
  %v1451 = vshrl.u32 %v1450, 7
  %v1452 = vsub.s32 2, %v1451
  %v1453 = vrot.slane %v1440, %v1452
  %v1454 = vlaneseq
  %v1455 = vshrl.u32 %v1454, 7
  %v1456 = vsub.s32 3, %v1455
  %v1457 = vrot.slane %v1440, %v1456
  %v1462 = vmul.f32 %v1437, %v1445
  %v1463 = vmul.f32 %v1436, %v1449
  %v1464 = vmul.f32 %v1435, %v1453
  %v1465 = vmul.f32 %v1438, %v1457
  %s1466 = scalar_lea.vmem %s1, 28
  %v1467 = vld [vmem:[%s1466] sm:$0xf]
  %v1469 = vsel %vm110, %v1467, 0
  %v1472 = vsel %vm114, %v1462, 0
  %v1475 = vsel %vm114, %v1463, 0
  %v1478 = vsel %vm114, %v1464, 0
  %v1481 = vsel %vm114, %v1465, 0
  %1483 = vmatprep.subr.mxu0 0.0
  %1484 = vmatpush1.msra.mxu0 0.0
  %1485 = vmatprep.subr.mxu0 0.0
  %1486 = vmatpush1.msra.mxu0 0.0
  %1487 = vmatprep.subr.mxu0 0.0
  %1488 = vmatpush1.msra.mxu0 0.0
  %1489 = vmatprep.subr.mxu0 0.0
  %1490 = vmatpush1.msra.mxu0 0.0
  %1491 = vmatprep.subr.mxu0 0.0
  %1492 = vmatpush1.msra.mxu0 0.0
  %1493 = vmatprep.subr.mxu0 0.0
  %1494 = vmatpush1.msra.mxu0 0.0
  %1495 = vmatprep.subr.mxu0 0.0
  %1496 = vmatpush1.msra.mxu0 0.0
  %1497 = vmatprep.subr.mxu0 0.0
  %1498 = vmatpush1.msra.mxu0 0.0
  %1499 = vmatprep.subr.mxu0 0.0
  %1500 = vmatpush1.msra.mxu0 0.0
  %1501 = vmatprep.subr.mxu0 0.0
  %1502 = vmatpush1.msra.mxu0 0.0
  %1503 = vmatprep.subr.mxu0 0.0
  %1504 = vmatpush1.msra.mxu0 0.0
  %1505 = vmatprep.subr.mxu0 0.0
  %1506 = vmatpush1.msra.mxu0 0.0
  %1507 = vmatprep.subr.mxu0 0.0
  %1508 = vmatpush1.msra.mxu0 0.0
  %1509 = vmatprep.subr.mxu0 0.0
  %1510 = vmatpush1.msra.mxu0 0.0
  %1511 = vmatprep.subr.mxu0 0.0
  %1512 = vmatpush1.msra.mxu0 0.0
  %1513 = vmatprep.subr.mxu0 %v1475
  %1514 = vmatpush1.msra.mxu0 %v1472
  %1515 = vmatprep.subr.mxu0 0.0
  %1516 = vmatpush2.msra.mxu0 0.0
  %1517 = vmatprep.subr.mxu0 0.0
  %1518 = vmatpush2.msra.mxu0 0.0
  %1519 = vmatprep.subr.mxu0 0.0
  %1520 = vmatpush2.msra.mxu0 0.0
  %1521 = vmatprep.subr.mxu0 0.0
  %1522 = vmatpush2.msra.mxu0 0.0
  %1523 = vmatprep.subr.mxu0 0.0
  %1524 = vmatpush2.msra.mxu0 0.0
  %1525 = vmatprep.subr.mxu0 0.0
  %1526 = vmatpush2.msra.mxu0 0.0
  %1527 = vmatprep.subr.mxu0 0.0
  %1528 = vmatpush2.msra.mxu0 0.0
  %1529 = vmatprep.subr.mxu0 0.0
  %1530 = vmatpush2.msra.mxu0 0.0
  %1531 = vmatprep.subr.mxu0 0.0
  %1532 = vmatpush2.msra.mxu0 0.0
  %1533 = vmatprep.subr.mxu0 0.0
  %1534 = vmatpush2.msra.mxu0 0.0
  %1535 = vmatprep.subr.mxu0 0.0
  %1536 = vmatpush2.msra.mxu0 0.0
  %1537 = vmatprep.subr.mxu0 0.0
  %1538 = vmatpush2.msra.mxu0 0.0
  %1539 = vmatprep.subr.mxu0 0.0
  %1540 = vmatpush2.msra.mxu0 0.0
  %1541 = vmatprep.subr.mxu0 0.0
  %1542 = vmatpush2.msra.mxu0 0.0
  %1543 = vmatprep.subr.mxu0 0.0
  %1544 = vmatpush2.msra.mxu0 0.0
  %1545 = vmatprep.subr.mxu0 0.0
  %1546 = vmatpush2.msra.mxu0 0.0
  %1547 = vmatprep.mubr.f32.mxu0 0.0
  %1548 = vmatmul.mubr.f32.gmra.mxu0 %v1469
  %v1549 = vpop.f32.mrf.mxu0
  %v1550 = vadd.f32 0.0, %v1549
  %v1551 = vpop.f32.mrf.mxu0
  %v1552 = vadd.f32 0.0, %v1551
  %1553 = vdwg.mxu0
  %1554 = vmatprep.subr.mxu0 0.0
  %1555 = vmatpush1.msra.mxu0 0.0
  %1556 = vmatprep.subr.mxu0 0.0
  %1557 = vmatpush1.msra.mxu0 0.0
  %1558 = vmatprep.subr.mxu0 0.0
  %1559 = vmatpush1.msra.mxu0 0.0
  %1560 = vmatprep.subr.mxu0 0.0
  %1561 = vmatpush1.msra.mxu0 0.0
  %1562 = vmatprep.subr.mxu0 0.0
  %1563 = vmatpush1.msra.mxu0 0.0
  %1564 = vmatprep.subr.mxu0 0.0
  %1565 = vmatpush1.msra.mxu0 0.0
  %1566 = vmatprep.subr.mxu0 0.0
  %1567 = vmatpush1.msra.mxu0 0.0
  %1568 = vmatprep.subr.mxu0 0.0
  %1569 = vmatpush1.msra.mxu0 0.0
  %1570 = vmatprep.subr.mxu0 0.0
  %1571 = vmatpush1.msra.mxu0 0.0
  %1572 = vmatprep.subr.mxu0 0.0
  %1573 = vmatpush1.msra.mxu0 0.0
  %1574 = vmatprep.subr.mxu0 0.0
  %1575 = vmatpush1.msra.mxu0 0.0
  %1576 = vmatprep.subr.mxu0 0.0
  %1577 = vmatpush1.msra.mxu0 0.0
  %1578 = vmatprep.subr.mxu0 0.0
  %1579 = vmatpush1.msra.mxu0 0.0
  %1580 = vmatprep.subr.mxu0 0.0
  %1581 = vmatpush1.msra.mxu0 0.0
  %1582 = vmatprep.subr.mxu0 0.0
  %1583 = vmatpush1.msra.mxu0 0.0
  %1584 = vmatprep.subr.mxu0 %v1481
  %1585 = vmatpush1.msra.mxu0 %v1478
  %1586 = vmatprep.subr.mxu0 0.0
  %1587 = vmatpush2.msra.mxu0 0.0
  %1588 = vmatprep.subr.mxu0 0.0
  %1589 = vmatpush2.msra.mxu0 0.0
  %1590 = vmatprep.subr.mxu0 0.0
  %1591 = vmatpush2.msra.mxu0 0.0
  %1592 = vmatprep.subr.mxu0 0.0
  %1593 = vmatpush2.msra.mxu0 0.0
  %1594 = vmatprep.subr.mxu0 0.0
  %1595 = vmatpush2.msra.mxu0 0.0
  %1596 = vmatprep.subr.mxu0 0.0
  %1597 = vmatpush2.msra.mxu0 0.0
  %1598 = vmatprep.subr.mxu0 0.0
  %1599 = vmatpush2.msra.mxu0 0.0
  %1600 = vmatprep.subr.mxu0 0.0
  %1601 = vmatpush2.msra.mxu0 0.0
  %1602 = vmatprep.subr.mxu0 0.0
  %1603 = vmatpush2.msra.mxu0 0.0
  %1604 = vmatprep.subr.mxu0 0.0
  %1605 = vmatpush2.msra.mxu0 0.0
  %1606 = vmatprep.subr.mxu0 0.0
  %1607 = vmatpush2.msra.mxu0 0.0
  %1608 = vmatprep.subr.mxu0 0.0
  %1609 = vmatpush2.msra.mxu0 0.0
  %1610 = vmatprep.subr.mxu0 0.0
  %1611 = vmatpush2.msra.mxu0 0.0
  %1612 = vmatprep.subr.mxu0 0.0
  %1613 = vmatpush2.msra.mxu0 0.0
  %1614 = vmatprep.subr.mxu0 0.0
  %1615 = vmatpush2.msra.mxu0 0.0
  %1616 = vmatprep.subr.mxu0 0.0
  %1617 = vmatpush2.msra.mxu0 0.0
  %1618 = vmatprep.mubr.f32.mxu0 0.0
  %1619 = vmatmul.mubr.f32.gmra.mxu0 %v1469
  %v1620 = vpop.f32.mrf.mxu0
  %v1621 = vadd.f32 0.0, %v1620
  %v1622 = vpop.f32.mrf.mxu0
  %v1623 = vadd.f32 0.0, %v1622
  %1624 = vdwg.mxu0
  %v1625 = vadd.f32 %v1422, %v1550
  %v1626 = vadd.f32 %v1423, %v1552
  %v1627 = vadd.f32 %v1424, %v1621
  %v1628 = vadd.f32 %v1425, %v1623
  %1629 = vrot.lane.b32.xlu0 %v18, 111
  %v1630 = vpop.permute.xlu0 %1629
  %1631 = vrot.lane.b32.xlu0 %v22, 111
  %v1632 = vpop.permute.xlu0 %1631
  %1633 = vrot.lane.b32.xlu0 %v19, 111
  %v1634 = vpop.permute.xlu0 %1633
  %1635 = vrot.lane.b32.xlu0 %v23, 111
  %v1636 = vpop.permute.xlu0 %1635
  %vm1637 = vcmp.lt.s32.totalorder %v35, 111
  %v1638 = vsel %vm1637, %v1634, %v1636
  %v1639 = vsel %vm1637, %v1632, %v1634
  %v1640 = vsel %vm1637, %v1630, %v1632
  %v1641 = vsel %vm1637, %v1636, %v1630
  %s1642 = scalar_lea.vmem %s2, 32
  %v1643 = vld [vmem:[%s1642] ss:$8 sm:$0xf]
  %v1645 = vlaneseq
  %v1646 = vshrl.u32 %v1645, 7
  %v1647 = vsub.s32 0, %v1646
  %v1648 = vrot.slane %v1643, %v1647
  %v1649 = vlaneseq
  %v1650 = vshrl.u32 %v1649, 7
  %v1651 = vsub.s32 1, %v1650
  %v1652 = vrot.slane %v1643, %v1651
  %v1653 = vlaneseq
  %v1654 = vshrl.u32 %v1653, 7
  %v1655 = vsub.s32 2, %v1654
  %v1656 = vrot.slane %v1643, %v1655
  %v1657 = vlaneseq
  %v1658 = vshrl.u32 %v1657, 7
  %v1659 = vsub.s32 3, %v1658
  %v1660 = vrot.slane %v1643, %v1659
  %v1665 = vmul.f32 %v1640, %v1648
  %v1666 = vmul.f32 %v1639, %v1652
  %v1667 = vmul.f32 %v1638, %v1656
  %v1668 = vmul.f32 %v1641, %v1660
  %s1669 = scalar_lea.vmem %s1, 32
  %v1670 = vld [vmem:[%s1669] sm:$0xf]
  %v1672 = vsel %vm110, %v1670, 0
  %v1675 = vsel %vm114, %v1665, 0
  %v1678 = vsel %vm114, %v1666, 0
  %v1681 = vsel %vm114, %v1667, 0
  %v1684 = vsel %vm114, %v1668, 0
  %1686 = vmatprep.subr.mxu0 0.0
  %1687 = vmatpush1.msra.mxu0 0.0
  %1688 = vmatprep.subr.mxu0 0.0
  %1689 = vmatpush1.msra.mxu0 0.0
  %1690 = vmatprep.subr.mxu0 0.0
  %1691 = vmatpush1.msra.mxu0 0.0
  %1692 = vmatprep.subr.mxu0 0.0
  %1693 = vmatpush1.msra.mxu0 0.0
  %1694 = vmatprep.subr.mxu0 0.0
  %1695 = vmatpush1.msra.mxu0 0.0
  %1696 = vmatprep.subr.mxu0 0.0
  %1697 = vmatpush1.msra.mxu0 0.0
  %1698 = vmatprep.subr.mxu0 0.0
  %1699 = vmatpush1.msra.mxu0 0.0
  %1700 = vmatprep.subr.mxu0 0.0
  %1701 = vmatpush1.msra.mxu0 0.0
  %1702 = vmatprep.subr.mxu0 0.0
  %1703 = vmatpush1.msra.mxu0 0.0
  %1704 = vmatprep.subr.mxu0 0.0
  %1705 = vmatpush1.msra.mxu0 0.0
  %1706 = vmatprep.subr.mxu0 0.0
  %1707 = vmatpush1.msra.mxu0 0.0
  %1708 = vmatprep.subr.mxu0 0.0
  %1709 = vmatpush1.msra.mxu0 0.0
  %1710 = vmatprep.subr.mxu0 0.0
  %1711 = vmatpush1.msra.mxu0 0.0
  %1712 = vmatprep.subr.mxu0 0.0
  %1713 = vmatpush1.msra.mxu0 0.0
  %1714 = vmatprep.subr.mxu0 0.0
  %1715 = vmatpush1.msra.mxu0 0.0
  %1716 = vmatprep.subr.mxu0 %v1678
  %1717 = vmatpush1.msra.mxu0 %v1675
  %1718 = vmatprep.subr.mxu0 0.0
  %1719 = vmatpush2.msra.mxu0 0.0
  %1720 = vmatprep.subr.mxu0 0.0
  %1721 = vmatpush2.msra.mxu0 0.0
  %1722 = vmatprep.subr.mxu0 0.0
  %1723 = vmatpush2.msra.mxu0 0.0
  %1724 = vmatprep.subr.mxu0 0.0
  %1725 = vmatpush2.msra.mxu0 0.0
  %1726 = vmatprep.subr.mxu0 0.0
  %1727 = vmatpush2.msra.mxu0 0.0
  %1728 = vmatprep.subr.mxu0 0.0
  %1729 = vmatpush2.msra.mxu0 0.0
  %1730 = vmatprep.subr.mxu0 0.0
  %1731 = vmatpush2.msra.mxu0 0.0
  %1732 = vmatprep.subr.mxu0 0.0
  %1733 = vmatpush2.msra.mxu0 0.0
  %1734 = vmatprep.subr.mxu0 0.0
  %1735 = vmatpush2.msra.mxu0 0.0
  %1736 = vmatprep.subr.mxu0 0.0
  %1737 = vmatpush2.msra.mxu0 0.0
  %1738 = vmatprep.subr.mxu0 0.0
  %1739 = vmatpush2.msra.mxu0 0.0
  %1740 = vmatprep.subr.mxu0 0.0
  %1741 = vmatpush2.msra.mxu0 0.0
  %1742 = vmatprep.subr.mxu0 0.0
  %1743 = vmatpush2.msra.mxu0 0.0
  %1744 = vmatprep.subr.mxu0 0.0
  %1745 = vmatpush2.msra.mxu0 0.0
  %1746 = vmatprep.subr.mxu0 0.0
  %1747 = vmatpush2.msra.mxu0 0.0
  %1748 = vmatprep.subr.mxu0 0.0
  %1749 = vmatpush2.msra.mxu0 0.0
  %1750 = vmatprep.mubr.f32.mxu0 0.0
  %1751 = vmatmul.mubr.f32.gmra.mxu0 %v1672
  %v1752 = vpop.f32.mrf.mxu0
  %v1753 = vadd.f32 0.0, %v1752
  %v1754 = vpop.f32.mrf.mxu0
  %v1755 = vadd.f32 0.0, %v1754
  %1756 = vdwg.mxu0
  %1757 = vmatprep.subr.mxu0 0.0
  %1758 = vmatpush1.msra.mxu0 0.0
  %1759 = vmatprep.subr.mxu0 0.0
  %1760 = vmatpush1.msra.mxu0 0.0
  %1761 = vmatprep.subr.mxu0 0.0
  %1762 = vmatpush1.msra.mxu0 0.0
  %1763 = vmatprep.subr.mxu0 0.0
  %1764 = vmatpush1.msra.mxu0 0.0
  %1765 = vmatprep.subr.mxu0 0.0
  %1766 = vmatpush1.msra.mxu0 0.0
  %1767 = vmatprep.subr.mxu0 0.0
  %1768 = vmatpush1.msra.mxu0 0.0
  %1769 = vmatprep.subr.mxu0 0.0
  %1770 = vmatpush1.msra.mxu0 0.0
  %1771 = vmatprep.subr.mxu0 0.0
  %1772 = vmatpush1.msra.mxu0 0.0
  %1773 = vmatprep.subr.mxu0 0.0
  %1774 = vmatpush1.msra.mxu0 0.0
  %1775 = vmatprep.subr.mxu0 0.0
  %1776 = vmatpush1.msra.mxu0 0.0
  %1777 = vmatprep.subr.mxu0 0.0
  %1778 = vmatpush1.msra.mxu0 0.0
  %1779 = vmatprep.subr.mxu0 0.0
  %1780 = vmatpush1.msra.mxu0 0.0
  %1781 = vmatprep.subr.mxu0 0.0
  %1782 = vmatpush1.msra.mxu0 0.0
  %1783 = vmatprep.subr.mxu0 0.0
  %1784 = vmatpush1.msra.mxu0 0.0
  %1785 = vmatprep.subr.mxu0 0.0
  %1786 = vmatpush1.msra.mxu0 0.0
  %1787 = vmatprep.subr.mxu0 %v1684
  %1788 = vmatpush1.msra.mxu0 %v1681
  %1789 = vmatprep.subr.mxu0 0.0
  %1790 = vmatpush2.msra.mxu0 0.0
  %1791 = vmatprep.subr.mxu0 0.0
  %1792 = vmatpush2.msra.mxu0 0.0
  %1793 = vmatprep.subr.mxu0 0.0
  %1794 = vmatpush2.msra.mxu0 0.0
  %1795 = vmatprep.subr.mxu0 0.0
  %1796 = vmatpush2.msra.mxu0 0.0
  %1797 = vmatprep.subr.mxu0 0.0
  %1798 = vmatpush2.msra.mxu0 0.0
  %1799 = vmatprep.subr.mxu0 0.0
  %1800 = vmatpush2.msra.mxu0 0.0
  %1801 = vmatprep.subr.mxu0 0.0
  %1802 = vmatpush2.msra.mxu0 0.0
  %1803 = vmatprep.subr.mxu0 0.0
  %1804 = vmatpush2.msra.mxu0 0.0
  %1805 = vmatprep.subr.mxu0 0.0
  %1806 = vmatpush2.msra.mxu0 0.0
  %1807 = vmatprep.subr.mxu0 0.0
  %1808 = vmatpush2.msra.mxu0 0.0
  %1809 = vmatprep.subr.mxu0 0.0
  %1810 = vmatpush2.msra.mxu0 0.0
  %1811 = vmatprep.subr.mxu0 0.0
  %1812 = vmatpush2.msra.mxu0 0.0
  %1813 = vmatprep.subr.mxu0 0.0
  %1814 = vmatpush2.msra.mxu0 0.0
  %1815 = vmatprep.subr.mxu0 0.0
  %1816 = vmatpush2.msra.mxu0 0.0
  %1817 = vmatprep.subr.mxu0 0.0
  %1818 = vmatpush2.msra.mxu0 0.0
  %1819 = vmatprep.subr.mxu0 0.0
  %1820 = vmatpush2.msra.mxu0 0.0
  %1821 = vmatprep.mubr.f32.mxu0 0.0
  %1822 = vmatmul.mubr.f32.gmra.mxu0 %v1672
  %v1823 = vpop.f32.mrf.mxu0
  %v1824 = vadd.f32 0.0, %v1823
  %v1825 = vpop.f32.mrf.mxu0
  %v1826 = vadd.f32 0.0, %v1825
  %1827 = vdwg.mxu0
  %v1828 = vadd.f32 %v1625, %v1753
  %v1829 = vadd.f32 %v1626, %v1755
  %v1830 = vadd.f32 %v1627, %v1824
  %v1831 = vadd.f32 %v1628, %v1826
  %v1836 = vcombine.low %v1828, %v1829
  %v1837 = vcombine.low %v1830, %v1831
  %1840 = vst [vmem:[%s3] sm:$0xff] %v1836
  %1841 = vst [vmem:[%s3 + $0x8] sm:$0xff] %v1837
  %v1842 = vsel %vm114, %v1828, 0.0
  %v1843 = vsel %vm114, %v1829, 0.0
  %v1844 = vadd.f32 %v1842, %v1843
  %v1845 = vsel %vm114, %v1830, 0.0
  %v1846 = vadd.f32 %v1844, %v1845
  %v1847 = vsel %vm114, %v1831, 0.0
  %v1848 = vadd.f32 %v1846, %v1847
  %1849 = vadd.xlane.f32.xlu0 %v1848
  %v1850 = vpop.xlane.xlu0 %1849
  %v1851 = vmul.f32 %v1828, %v1828
  %v1852 = vmul.f32 %v1829, %v1829
  %v1853 = vmul.f32 %v1830, %v1830
  %v1854 = vmul.f32 %v1831, %v1831
  %v1855 = vsel %vm114, %v1851, 0.0
  %v1856 = vsel %vm114, %v1852, 0.0
  %v1857 = vadd.f32 %v1855, %v1856
  %v1858 = vsel %vm114, %v1853, 0.0
  %v1859 = vadd.f32 %v1857, %v1858
  %v1860 = vsel %vm114, %v1854, 0.0
  %v1861 = vadd.f32 %v1859, %v1860
  %1862 = vadd.xlane.f32.xlu0 %v1861
  %v1863 = vpop.xlane.xlu0 %1862
  %vm1864 = vcmask 7168
  %v1865 = vsel %vm1864, %v1850, %v1863
  %vm1866 = vcmask 11264
  %1867 = vst.msk [vmem:[%s4] sm:$0xf] %vm1866, %v1865
  // Predicated region
  $region14: #{kernel_transform_sep_conv.3} parent=0 // pred_check
    _
  $region15: #{kernel_transform_sep_conv.3} parent=0 // pred_check_branch
    %1869 = sbr.rel (0) target = $region17
  $region16: #{kernel_transform_sep_conv.3} parent=0 // pred_region
    _
  $region17: #{kernel_transform_sep_conv.3} parent=0 // pred_fallthru
    _
  // Predicated region
  $region18: #{kernel_transform_sep_conv.3} parent=0 // pred_check
    _
  $region19: #{kernel_transform_sep_conv.3} parent=0 // pred_check_branch
    %1871 = sbr.rel (0) target = $region21
  $region20: #{kernel_transform_sep_conv.3} parent=0 // pred_region
    _
  $region21: #{kernel_transform_sep_conv.3} parent=0 // pred_fallthru
    _
  // Predicated region
  $region22: #{kernel_transform_sep_conv.3} parent=0 // pred_check
    _
  $region23: #{kernel_transform_sep_conv.3} parent=0 // pred_check_branch
    %1873 = sbr.rel (0) target = $region25
  $region24: #{kernel_transform_sep_conv.3} parent=0 // pred_region
    _
  $region25: #{kernel_transform_sep_conv.3} parent=0 // pred_fallthru
    _
  // Predicated region
  $region26: #{kernel_transform_sep_conv.3} parent=0 // pred_check
    _
  $region27: #{kernel_transform_sep_conv.3} parent=0 // pred_check_branch
    %1875 = sbr.rel (0) target = $region29
  $region28: #{kernel_transform_sep_conv.3} parent=0 // pred_region
    _
  $region29: #{kernel_transform_sep_conv.3} parent=0 // pred_fallthru
    _

// kernel: kernel_transform_sep_conv.4
$region0: #{kernel_transform_sep_conv.4}
  #allocation0 [shape = 'u32[]', space=smem, size = 0x4, offset = 0x4, fixed_abs, tag = 'smem constant byte address 0x4 - core index']
  #allocation1 [shape = 'u32[144,128]{1,0:T(1,128)}', space=vmem, size = 0x12000, scoped, tag = 'internal scratch']
  %s0 = inlined_call_operand.vmem [shape: f32[4,512], index: 0, kind: input, shape index: {}]
  %s1 = inlined_call_operand.vmem [shape: f32[4,1], index: 1, kind: input, shape index: {}]
  %s2 = inlined_call_operand.vmem [shape: f32[4,1], index: 2, kind: input, shape index: {}]
  %s3 = inlined_call_operand.vmem [shape: f32[9,8,4], index: 3, kind: input, shape index: {}]
  %s4 = inlined_call_operand.vmem [shape: f32[9,512], index: 4, kind: input, shape index: {}]
  %s5 = inlined_call_operand.vmem [shape: f32[8,512], index: 5, kind: output, shape index: {0}]
  %s6 = inlined_call_operand.vmem [shape: f32[1,8,2], index: 6, kind: output, shape index: {1}]
  %7 = xla_tuple %s5, %s6
  %s8 = sld [smem:[#allocation0]]
  $region38: #{kernel_transform_sep_conv.4} parent=0
    _
  %s10 = ssub.s32 1, %s8
  %s11 = scalar_select 0, %s10, %s8
  // Predicated region
  $region2: #{kernel_transform_sep_conv.4} parent=0 // pred_check
    _
  $region3: #{kernel_transform_sep_conv.4} parent=0 // pred_check_branch
    %13 = sbr.rel (0) target = $region5
  $region4: #{kernel_transform_sep_conv.4} parent=0 // pred_region
    _
  $region5: #{kernel_transform_sep_conv.4} parent=0 // pred_fallthru
    _
  // Predicated region
  $region6: #{kernel_transform_sep_conv.4} parent=0 // pred_check
    _
  $region7: #{kernel_transform_sep_conv.4} parent=0 // pred_check_branch
    %15 = sbr.rel (0) target = $region9
  $region8: #{kernel_transform_sep_conv.4} parent=0 // pred_region
    _
  $region9: #{kernel_transform_sep_conv.4} parent=0 // pred_fallthru
    _
  // Predicated region
  $region10: #{kernel_transform_sep_conv.4} parent=0 // pred_check
    _
  $region11: #{kernel_transform_sep_conv.4} parent=0 // pred_check_branch
    %17 = sbr.rel (0) target = $region13
  $region12: #{kernel_transform_sep_conv.4} parent=0 // pred_region
    _
  $region13: #{kernel_transform_sep_conv.4} parent=0 // pred_fallthru
    _
  // Predicated region
  $region14: #{kernel_transform_sep_conv.4} parent=0 // pred_check
    _
  $region15: #{kernel_transform_sep_conv.4} parent=0 // pred_check_branch
    %19 = sbr.rel (0) target = $region17
  $region16: #{kernel_transform_sep_conv.4} parent=0 // pred_region
    _
  $region17: #{kernel_transform_sep_conv.4} parent=0 // pred_fallthru
    _
  // Predicated region
  $region18: #{kernel_transform_sep_conv.4} parent=0 // pred_check
    _
  $region19: #{kernel_transform_sep_conv.4} parent=0 // pred_check_branch
    %21 = sbr.rel (0) target = $region21
  $region20: #{kernel_transform_sep_conv.4} parent=0 // pred_region
    _
  $region21: #{kernel_transform_sep_conv.4} parent=0 // pred_fallthru
    _
  %v22 = vld [vmem:[%s0] sm:$0xff]
  %v23 = vld [vmem:[%s0 + $0x8] sm:$0xff]
  %v24 = vld [vmem:[%s1] sm:$0xf]
  %26 = vset.pattern.permute.xlu0 0
  %27 = vperm.xlu0 %26, %v24
  %v28 = vpop.permute.xlu0 %27
  %v30 = vunpack.c.l.s4 839922192
  %v31 = vunpack.c.0.s8 %v30
  %v32 = vlaneseq
  %v33 = vshrl.u32 %v32, 7
  %v34 = vsub.s32 %v31, %v33
  %v35 = vrot.slane %v28, %v34
  %v37 = vmul.f32 %v22, %v35
  %v38 = vmul.f32 %v23, %v35
  %v39 = vld [vmem:[%s2] sm:$0xf]
  %41 = vset.pattern.permute.xlu0 0
  %42 = vperm.xlu0 %41, %v39
  %v43 = vpop.permute.xlu0 %42
  %v45 = vunpack.c.l.s4 839922192
  %v46 = vunpack.c.0.s8 %v45
  %v47 = vlaneseq
  %v48 = vshrl.u32 %v47, 7
  %v49 = vsub.s32 %v46, %v48
  %v50 = vrot.slane %v43, %v49
  %v52 = vadd.f32 %v37, %v50
  %v53 = vadd.f32 %v38, %v50
  %v54 = vmax.f32 %v52, 0.0
  %v55 = vmax.f32 %v53, 0.0
  %v58 = vcombine.high %v54, %v54
  %v59 = vcombine.high %v55, %v55
  %62 = vrot.lane.b32.xlu0 %v54, 17
  %v63 = vpop.permute.xlu0 %62
  %64 = vrot.lane.b32.xlu0 %v58, 17
  %v65 = vpop.permute.xlu0 %64
  %66 = vrot.lane.b32.xlu0 %v55, 17
  %v67 = vpop.permute.xlu0 %66
  %68 = vrot.lane.b32.xlu0 %v59, 17
  %v69 = vpop.permute.xlu0 %68
  %v70 = vlaneseq
  %v71 = vand.u32 %v70, 127
  %vm72 = vcmp.lt.s32.totalorder %v71, 17
  %v73 = vsel %vm72, %v67, %v69
  %v74 = vsel %vm72, %v65, %v67
  %v75 = vsel %vm72, %v63, %v65
  %v76 = vsel %vm72, %v69, %v63
  %v77 = vld [vmem:[%s4] ss:$8 sm:$0xf]
  %v79 = vlaneseq
  %v80 = vshrl.u32 %v79, 7
  %v81 = vsub.s32 0, %v80
  %v82 = vrot.slane %v77, %v81
  %v83 = vlaneseq
  %v84 = vshrl.u32 %v83, 7
  %v85 = vsub.s32 1, %v84
  %v86 = vrot.slane %v77, %v85
  %v87 = vlaneseq
  %v88 = vshrl.u32 %v87, 7
  %v89 = vsub.s32 2, %v88
  %v90 = vrot.slane %v77, %v89
  %v91 = vlaneseq
  %v92 = vshrl.u32 %v91, 7
  %v93 = vsub.s32 3, %v92
  %v94 = vrot.slane %v77, %v93
  %v99 = vmul.f32 %v76, %v82
  %v100 = vmul.f32 %v75, %v86
  %v101 = vmul.f32 %v74, %v90
  %v102 = vmul.f32 %v73, %v94
  %v103 = vld [vmem:[%s3] sm:$0xff]
  %104 = vrot.lane.b32.xlu0 %v54, 16
  %v105 = vpop.permute.xlu0 %104
  %106 = vrot.lane.b32.xlu0 %v58, 16
  %v107 = vpop.permute.xlu0 %106
  %108 = vrot.lane.b32.xlu0 %v55, 16
  %v109 = vpop.permute.xlu0 %108
  %110 = vrot.lane.b32.xlu0 %v59, 16
  %v111 = vpop.permute.xlu0 %110
  %vm112 = vcmp.lt.s32.totalorder %v71, 16
  %v113 = vsel %vm112, %v109, %v111
  %v114 = vsel %vm112, %v107, %v109
  %v115 = vsel %vm112, %v105, %v107
  %v116 = vsel %vm112, %v111, %v105
  %s117 = scalar_lea.vmem %s4, 1
  %v118 = vld [vmem:[%s117] ss:$8 sm:$0xf]
  %v120 = vlaneseq
  %v121 = vshrl.u32 %v120, 7
  %v122 = vsub.s32 0, %v121
  %v123 = vrot.slane %v118, %v122
  %v124 = vlaneseq
  %v125 = vshrl.u32 %v124, 7
  %v126 = vsub.s32 1, %v125
  %v127 = vrot.slane %v118, %v126
  %v128 = vlaneseq
  %v129 = vshrl.u32 %v128, 7
  %v130 = vsub.s32 2, %v129
  %v131 = vrot.slane %v118, %v130
  %v132 = vlaneseq
  %v133 = vshrl.u32 %v132, 7
  %v134 = vsub.s32 3, %v133
  %v135 = vrot.slane %v118, %v134
  %v140 = vmul.f32 %v116, %v123
  %v141 = vmul.f32 %v115, %v127
  %v142 = vmul.f32 %v114, %v131
  %v143 = vmul.f32 %v113, %v135
  %s144 = scalar_lea.vmem %s3, 8
  %v145 = vld [vmem:[%s144] sm:$0xff]
  %vm146 = vcmask 31744
  %v148 = vsel %vm146, %v145, 0
  %vm150 = vcmask 1043456
  %v152 = vsel %vm150, %v140, 0
  %v155 = vsel %vm150, %v141, 0
  %v158 = vsel %vm150, %v142, 0
  %v161 = vsel %vm150, %v143, 0
  %163 = vmatprep.subr.mxu0 0.0
  %164 = vmatpush1.msra.mxu0 0.0
  %165 = vmatprep.subr.mxu0 0.0
  %166 = vmatpush1.msra.mxu0 0.0
  %167 = vmatprep.subr.mxu0 0.0
  %168 = vmatpush1.msra.mxu0 0.0
  %169 = vmatprep.subr.mxu0 0.0
  %170 = vmatpush1.msra.mxu0 0.0
  %171 = vmatprep.subr.mxu0 0.0
  %172 = vmatpush1.msra.mxu0 0.0
  %173 = vmatprep.subr.mxu0 0.0
  %174 = vmatpush1.msra.mxu0 0.0
  %175 = vmatprep.subr.mxu0 0.0
  %176 = vmatpush1.msra.mxu0 0.0
  %177 = vmatprep.subr.mxu0 0.0
  %178 = vmatpush1.msra.mxu0 0.0
  %179 = vmatprep.subr.mxu0 0.0
  %180 = vmatpush1.msra.mxu0 0.0
  %181 = vmatprep.subr.mxu0 0.0
  %182 = vmatpush1.msra.mxu0 0.0
  %183 = vmatprep.subr.mxu0 0.0
  %184 = vmatpush1.msra.mxu0 0.0
  %185 = vmatprep.subr.mxu0 0.0
  %186 = vmatpush1.msra.mxu0 0.0
  %187 = vmatprep.subr.mxu0 0.0
  %188 = vmatpush1.msra.mxu0 0.0
  %189 = vmatprep.subr.mxu0 0.0
  %190 = vmatpush1.msra.mxu0 0.0
  %191 = vmatprep.subr.mxu0 0.0
  %192 = vmatpush1.msra.mxu0 0.0
  %193 = vmatprep.subr.mxu0 %v155
  %194 = vmatpush1.msra.mxu0 %v152
  %195 = vmatprep.subr.mxu0 0.0
  %196 = vmatpush2.msra.mxu0 0.0
  %197 = vmatprep.subr.mxu0 0.0
  %198 = vmatpush2.msra.mxu0 0.0
  %199 = vmatprep.subr.mxu0 0.0
  %200 = vmatpush2.msra.mxu0 0.0
  %201 = vmatprep.subr.mxu0 0.0
  %202 = vmatpush2.msra.mxu0 0.0
  %203 = vmatprep.subr.mxu0 0.0
  %204 = vmatpush2.msra.mxu0 0.0
  %205 = vmatprep.subr.mxu0 0.0
  %206 = vmatpush2.msra.mxu0 0.0
  %207 = vmatprep.subr.mxu0 0.0
  %208 = vmatpush2.msra.mxu0 0.0
  %209 = vmatprep.subr.mxu0 0.0
  %210 = vmatpush2.msra.mxu0 0.0
  %211 = vmatprep.subr.mxu0 0.0
  %212 = vmatpush2.msra.mxu0 0.0
  %213 = vmatprep.subr.mxu0 0.0
  %214 = vmatpush2.msra.mxu0 0.0
  %215 = vmatprep.subr.mxu0 0.0
  %216 = vmatpush2.msra.mxu0 0.0
  %217 = vmatprep.subr.mxu0 0.0
  %218 = vmatpush2.msra.mxu0 0.0
  %219 = vmatprep.subr.mxu0 0.0
  %220 = vmatpush2.msra.mxu0 0.0
  %221 = vmatprep.subr.mxu0 0.0
  %222 = vmatpush2.msra.mxu0 0.0
  %223 = vmatprep.subr.mxu0 0.0
  %224 = vmatpush2.msra.mxu0 0.0
  %225 = vmatprep.subr.mxu0 0.0
  %226 = vmatpush2.msra.mxu0 0.0
  %227 = vmatprep.mubr.f32.mxu0 0.0
  %228 = vmatmul.mubr.f32.gmra.mxu0 %v148
  %v229 = vpop.f32.mrf.mxu0
  %v230 = vadd.f32 0.0, %v229
  %v231 = vpop.f32.mrf.mxu0
  %v232 = vadd.f32 0.0, %v231
  %233 = vdwg.mxu0
  %234 = vmatprep.subr.mxu0 0.0
  %235 = vmatpush1.msra.mxu0 0.0
  %236 = vmatprep.subr.mxu0 0.0
  %237 = vmatpush1.msra.mxu0 0.0
  %238 = vmatprep.subr.mxu0 0.0
  %239 = vmatpush1.msra.mxu0 0.0
  %240 = vmatprep.subr.mxu0 0.0
  %241 = vmatpush1.msra.mxu0 0.0
  %242 = vmatprep.subr.mxu0 0.0
  %243 = vmatpush1.msra.mxu0 0.0
  %244 = vmatprep.subr.mxu0 0.0
  %245 = vmatpush1.msra.mxu0 0.0
  %246 = vmatprep.subr.mxu0 0.0
  %247 = vmatpush1.msra.mxu0 0.0
  %248 = vmatprep.subr.mxu0 0.0
  %249 = vmatpush1.msra.mxu0 0.0
  %250 = vmatprep.subr.mxu0 0.0
  %251 = vmatpush1.msra.mxu0 0.0
  %252 = vmatprep.subr.mxu0 0.0
  %253 = vmatpush1.msra.mxu0 0.0
  %254 = vmatprep.subr.mxu0 0.0
  %255 = vmatpush1.msra.mxu0 0.0
  %256 = vmatprep.subr.mxu0 0.0
  %257 = vmatpush1.msra.mxu0 0.0
  %258 = vmatprep.subr.mxu0 0.0
  %259 = vmatpush1.msra.mxu0 0.0
  %260 = vmatprep.subr.mxu0 0.0
  %261 = vmatpush1.msra.mxu0 0.0
  %262 = vmatprep.subr.mxu0 0.0
  %263 = vmatpush1.msra.mxu0 0.0
  %264 = vmatprep.subr.mxu0 %v161
  %265 = vmatpush1.msra.mxu0 %v158
  %266 = vmatprep.subr.mxu0 0.0
  %267 = vmatpush2.msra.mxu0 0.0
  %268 = vmatprep.subr.mxu0 0.0
  %269 = vmatpush2.msra.mxu0 0.0
  %270 = vmatprep.subr.mxu0 0.0
  %271 = vmatpush2.msra.mxu0 0.0
  %272 = vmatprep.subr.mxu0 0.0
  %273 = vmatpush2.msra.mxu0 0.0
  %274 = vmatprep.subr.mxu0 0.0
  %275 = vmatpush2.msra.mxu0 0.0
  %276 = vmatprep.subr.mxu0 0.0
  %277 = vmatpush2.msra.mxu0 0.0
  %278 = vmatprep.subr.mxu0 0.0
  %279 = vmatpush2.msra.mxu0 0.0
  %280 = vmatprep.subr.mxu0 0.0
  %281 = vmatpush2.msra.mxu0 0.0
  %282 = vmatprep.subr.mxu0 0.0
  %283 = vmatpush2.msra.mxu0 0.0
  %284 = vmatprep.subr.mxu0 0.0
  %285 = vmatpush2.msra.mxu0 0.0
  %286 = vmatprep.subr.mxu0 0.0
  %287 = vmatpush2.msra.mxu0 0.0
  %288 = vmatprep.subr.mxu0 0.0
  %289 = vmatpush2.msra.mxu0 0.0
  %290 = vmatprep.subr.mxu0 0.0
  %291 = vmatpush2.msra.mxu0 0.0
  %292 = vmatprep.subr.mxu0 0.0
  %293 = vmatpush2.msra.mxu0 0.0
  %294 = vmatprep.subr.mxu0 0.0
  %295 = vmatpush2.msra.mxu0 0.0
  %296 = vmatprep.subr.mxu0 0.0
  %297 = vmatpush2.msra.mxu0 0.0
  %298 = vmatprep.mubr.f32.mxu0 0.0
  %299 = vmatmul.mubr.f32.gmra.mxu0 %v148
  %v300 = vpop.f32.mrf.mxu0
  %v301 = vadd.f32 0.0, %v300
  %v302 = vpop.f32.mrf.mxu0
  %v303 = vadd.f32 0.0, %v302
  %304 = vdwg.mxu0
  %v306 = vsel %vm146, %v103, 0
  %v309 = vsel %vm150, %v99, 0
  %v312 = vsel %vm150, %v100, 0
  %v315 = vsel %vm150, %v101, 0
  %v318 = vsel %vm150, %v102, 0
  %320 = vmatprep.subr.mxu0 0.0
  %321 = vmatpush1.msra.mxu0 0.0
  %322 = vmatprep.subr.mxu0 0.0
  %323 = vmatpush1.msra.mxu0 0.0
  %324 = vmatprep.subr.mxu0 0.0
  %325 = vmatpush1.msra.mxu0 0.0
  %326 = vmatprep.subr.mxu0 0.0
  %327 = vmatpush1.msra.mxu0 0.0
  %328 = vmatprep.subr.mxu0 0.0
  %329 = vmatpush1.msra.mxu0 0.0
  %330 = vmatprep.subr.mxu0 0.0
  %331 = vmatpush1.msra.mxu0 0.0
  %332 = vmatprep.subr.mxu0 0.0
  %333 = vmatpush1.msra.mxu0 0.0
  %334 = vmatprep.subr.mxu0 0.0
  %335 = vmatpush1.msra.mxu0 0.0
  %336 = vmatprep.subr.mxu0 0.0
  %337 = vmatpush1.msra.mxu0 0.0
  %338 = vmatprep.subr.mxu0 0.0
  %339 = vmatpush1.msra.mxu0 0.0
  %340 = vmatprep.subr.mxu0 0.0
  %341 = vmatpush1.msra.mxu0 0.0
  %342 = vmatprep.subr.mxu0 0.0
  %343 = vmatpush1.msra.mxu0 0.0
  %344 = vmatprep.subr.mxu0 0.0
  %345 = vmatpush1.msra.mxu0 0.0
  %346 = vmatprep.subr.mxu0 0.0
  %347 = vmatpush1.msra.mxu0 0.0
  %348 = vmatprep.subr.mxu0 0.0
  %349 = vmatpush1.msra.mxu0 0.0
  %350 = vmatprep.subr.mxu0 %v312
  %351 = vmatpush1.msra.mxu0 %v309
  %352 = vmatprep.subr.mxu0 0.0
  %353 = vmatpush2.msra.mxu0 0.0
  %354 = vmatprep.subr.mxu0 0.0
  %355 = vmatpush2.msra.mxu0 0.0
  %356 = vmatprep.subr.mxu0 0.0
  %357 = vmatpush2.msra.mxu0 0.0
  %358 = vmatprep.subr.mxu0 0.0
  %359 = vmatpush2.msra.mxu0 0.0
  %360 = vmatprep.subr.mxu0 0.0
  %361 = vmatpush2.msra.mxu0 0.0
  %362 = vmatprep.subr.mxu0 0.0
  %363 = vmatpush2.msra.mxu0 0.0
  %364 = vmatprep.subr.mxu0 0.0
  %365 = vmatpush2.msra.mxu0 0.0
  %366 = vmatprep.subr.mxu0 0.0
  %367 = vmatpush2.msra.mxu0 0.0
  %368 = vmatprep.subr.mxu0 0.0
  %369 = vmatpush2.msra.mxu0 0.0
  %370 = vmatprep.subr.mxu0 0.0
  %371 = vmatpush2.msra.mxu0 0.0
  %372 = vmatprep.subr.mxu0 0.0
  %373 = vmatpush2.msra.mxu0 0.0
  %374 = vmatprep.subr.mxu0 0.0
  %375 = vmatpush2.msra.mxu0 0.0
  %376 = vmatprep.subr.mxu0 0.0
  %377 = vmatpush2.msra.mxu0 0.0
  %378 = vmatprep.subr.mxu0 0.0
  %379 = vmatpush2.msra.mxu0 0.0
  %380 = vmatprep.subr.mxu0 0.0
  %381 = vmatpush2.msra.mxu0 0.0
  %382 = vmatprep.subr.mxu0 0.0
  %383 = vmatpush2.msra.mxu0 0.0
  %384 = vmatprep.mubr.f32.mxu0 0.0
  %385 = vmatmul.mubr.f32.gmra.mxu0 %v306
  %v386 = vpop.f32.mrf.mxu0
  %v387 = vadd.f32 %v230, %v386
  %v388 = vpop.f32.mrf.mxu0
  %v389 = vadd.f32 %v232, %v388
  %390 = vdwg.mxu0
  %391 = vmatprep.subr.mxu0 0.0
  %392 = vmatpush1.msra.mxu0 0.0
  %393 = vmatprep.subr.mxu0 0.0
  %394 = vmatpush1.msra.mxu0 0.0
  %395 = vmatprep.subr.mxu0 0.0
  %396 = vmatpush1.msra.mxu0 0.0
  %397 = vmatprep.subr.mxu0 0.0
  %398 = vmatpush1.msra.mxu0 0.0
  %399 = vmatprep.subr.mxu0 0.0
  %400 = vmatpush1.msra.mxu0 0.0
  %401 = vmatprep.subr.mxu0 0.0
  %402 = vmatpush1.msra.mxu0 0.0
  %403 = vmatprep.subr.mxu0 0.0
  %404 = vmatpush1.msra.mxu0 0.0
  %405 = vmatprep.subr.mxu0 0.0
  %406 = vmatpush1.msra.mxu0 0.0
  %407 = vmatprep.subr.mxu0 0.0
  %408 = vmatpush1.msra.mxu0 0.0
  %409 = vmatprep.subr.mxu0 0.0
  %410 = vmatpush1.msra.mxu0 0.0
  %411 = vmatprep.subr.mxu0 0.0
  %412 = vmatpush1.msra.mxu0 0.0
  %413 = vmatprep.subr.mxu0 0.0
  %414 = vmatpush1.msra.mxu0 0.0
  %415 = vmatprep.subr.mxu0 0.0
  %416 = vmatpush1.msra.mxu0 0.0
  %417 = vmatprep.subr.mxu0 0.0
  %418 = vmatpush1.msra.mxu0 0.0
  %419 = vmatprep.subr.mxu0 0.0
  %420 = vmatpush1.msra.mxu0 0.0
  %421 = vmatprep.subr.mxu0 %v318
  %422 = vmatpush1.msra.mxu0 %v315
  %423 = vmatprep.subr.mxu0 0.0
  %424 = vmatpush2.msra.mxu0 0.0
  %425 = vmatprep.subr.mxu0 0.0
  %426 = vmatpush2.msra.mxu0 0.0
  %427 = vmatprep.subr.mxu0 0.0
  %428 = vmatpush2.msra.mxu0 0.0
  %429 = vmatprep.subr.mxu0 0.0
  %430 = vmatpush2.msra.mxu0 0.0
  %431 = vmatprep.subr.mxu0 0.0
  %432 = vmatpush2.msra.mxu0 0.0
  %433 = vmatprep.subr.mxu0 0.0
  %434 = vmatpush2.msra.mxu0 0.0
  %435 = vmatprep.subr.mxu0 0.0
  %436 = vmatpush2.msra.mxu0 0.0
  %437 = vmatprep.subr.mxu0 0.0
  %438 = vmatpush2.msra.mxu0 0.0
  %439 = vmatprep.subr.mxu0 0.0
  %440 = vmatpush2.msra.mxu0 0.0
  %441 = vmatprep.subr.mxu0 0.0
  %442 = vmatpush2.msra.mxu0 0.0
  %443 = vmatprep.subr.mxu0 0.0
  %444 = vmatpush2.msra.mxu0 0.0
  %445 = vmatprep.subr.mxu0 0.0
  %446 = vmatpush2.msra.mxu0 0.0
  %447 = vmatprep.subr.mxu0 0.0
  %448 = vmatpush2.msra.mxu0 0.0
  %449 = vmatprep.subr.mxu0 0.0
  %450 = vmatpush2.msra.mxu0 0.0
  %451 = vmatprep.subr.mxu0 0.0
  %452 = vmatpush2.msra.mxu0 0.0
  %453 = vmatprep.subr.mxu0 0.0
  %454 = vmatpush2.msra.mxu0 0.0
  %455 = vmatprep.mubr.f32.mxu0 0.0
  %456 = vmatmul.mubr.f32.gmra.mxu0 %v306
  %v457 = vpop.f32.mrf.mxu0
  %v458 = vadd.f32 %v301, %v457
  %v459 = vpop.f32.mrf.mxu0
  %v460 = vadd.f32 %v303, %v459
  %461 = vdwg.mxu0
  %462 = vrot.lane.b32.xlu0 %v54, 15
  %v463 = vpop.permute.xlu0 %462
  %464 = vrot.lane.b32.xlu0 %v58, 15
  %v465 = vpop.permute.xlu0 %464
  %466 = vrot.lane.b32.xlu0 %v55, 15
  %v467 = vpop.permute.xlu0 %466
  %468 = vrot.lane.b32.xlu0 %v59, 15
  %v469 = vpop.permute.xlu0 %468
  %vm470 = vcmp.lt.s32.totalorder %v71, 15
  %v471 = vsel %vm470, %v467, %v469
  %v472 = vsel %vm470, %v465, %v467
  %v473 = vsel %vm470, %v463, %v465
  %v474 = vsel %vm470, %v469, %v463
  %s475 = scalar_lea.vmem %s4, 2
  %v476 = vld [vmem:[%s475] ss:$8 sm:$0xf]
  %v478 = vlaneseq
  %v479 = vshrl.u32 %v478, 7
  %v480 = vsub.s32 0, %v479
  %v481 = vrot.slane %v476, %v480
  %v482 = vlaneseq
  %v483 = vshrl.u32 %v482, 7
  %v484 = vsub.s32 1, %v483
  %v485 = vrot.slane %v476, %v484
  %v486 = vlaneseq
  %v487 = vshrl.u32 %v486, 7
  %v488 = vsub.s32 2, %v487
  %v489 = vrot.slane %v476, %v488
  %v490 = vlaneseq
  %v491 = vshrl.u32 %v490, 7
  %v492 = vsub.s32 3, %v491
  %v493 = vrot.slane %v476, %v492
  %v498 = vmul.f32 %v474, %v481
  %v499 = vmul.f32 %v473, %v485
  %v500 = vmul.f32 %v472, %v489
  %v501 = vmul.f32 %v471, %v493
  %s502 = scalar_lea.vmem %s3, 16
  %v503 = vld [vmem:[%s502] sm:$0xff]
  %v505 = vsel %vm146, %v503, 0
  %v508 = vsel %vm150, %v498, 0
  %v511 = vsel %vm150, %v499, 0
  %v514 = vsel %vm150, %v500, 0
  %v517 = vsel %vm150, %v501, 0
  %519 = vmatprep.subr.mxu0 0.0
  %520 = vmatpush1.msra.mxu0 0.0
  %521 = vmatprep.subr.mxu0 0.0
  %522 = vmatpush1.msra.mxu0 0.0
  %523 = vmatprep.subr.mxu0 0.0
  %524 = vmatpush1.msra.mxu0 0.0
  %525 = vmatprep.subr.mxu0 0.0
  %526 = vmatpush1.msra.mxu0 0.0
  %527 = vmatprep.subr.mxu0 0.0
  %528 = vmatpush1.msra.mxu0 0.0
  %529 = vmatprep.subr.mxu0 0.0
  %530 = vmatpush1.msra.mxu0 0.0
  %531 = vmatprep.subr.mxu0 0.0
  %532 = vmatpush1.msra.mxu0 0.0
  %533 = vmatprep.subr.mxu0 0.0
  %534 = vmatpush1.msra.mxu0 0.0
  %535 = vmatprep.subr.mxu0 0.0
  %536 = vmatpush1.msra.mxu0 0.0
  %537 = vmatprep.subr.mxu0 0.0
  %538 = vmatpush1.msra.mxu0 0.0
  %539 = vmatprep.subr.mxu0 0.0
  %540 = vmatpush1.msra.mxu0 0.0
  %541 = vmatprep.subr.mxu0 0.0
  %542 = vmatpush1.msra.mxu0 0.0
  %543 = vmatprep.subr.mxu0 0.0
  %544 = vmatpush1.msra.mxu0 0.0
  %545 = vmatprep.subr.mxu0 0.0
  %546 = vmatpush1.msra.mxu0 0.0
  %547 = vmatprep.subr.mxu0 0.0
  %548 = vmatpush1.msra.mxu0 0.0
  %549 = vmatprep.subr.mxu0 %v511
  %550 = vmatpush1.msra.mxu0 %v508
  %551 = vmatprep.subr.mxu0 0.0
  %552 = vmatpush2.msra.mxu0 0.0
  %553 = vmatprep.subr.mxu0 0.0
  %554 = vmatpush2.msra.mxu0 0.0
  %555 = vmatprep.subr.mxu0 0.0
  %556 = vmatpush2.msra.mxu0 0.0
  %557 = vmatprep.subr.mxu0 0.0
  %558 = vmatpush2.msra.mxu0 0.0
  %559 = vmatprep.subr.mxu0 0.0
  %560 = vmatpush2.msra.mxu0 0.0
  %561 = vmatprep.subr.mxu0 0.0
  %562 = vmatpush2.msra.mxu0 0.0
  %563 = vmatprep.subr.mxu0 0.0
  %564 = vmatpush2.msra.mxu0 0.0
  %565 = vmatprep.subr.mxu0 0.0
  %566 = vmatpush2.msra.mxu0 0.0
  %567 = vmatprep.subr.mxu0 0.0
  %568 = vmatpush2.msra.mxu0 0.0
  %569 = vmatprep.subr.mxu0 0.0
  %570 = vmatpush2.msra.mxu0 0.0
  %571 = vmatprep.subr.mxu0 0.0
  %572 = vmatpush2.msra.mxu0 0.0
  %573 = vmatprep.subr.mxu0 0.0
  %574 = vmatpush2.msra.mxu0 0.0
  %575 = vmatprep.subr.mxu0 0.0
  %576 = vmatpush2.msra.mxu0 0.0
  %577 = vmatprep.subr.mxu0 0.0
  %578 = vmatpush2.msra.mxu0 0.0
  %579 = vmatprep.subr.mxu0 0.0
  %580 = vmatpush2.msra.mxu0 0.0
  %581 = vmatprep.subr.mxu0 0.0
  %582 = vmatpush2.msra.mxu0 0.0
  %583 = vmatprep.mubr.f32.mxu0 0.0
  %584 = vmatmul.mubr.f32.gmra.mxu0 %v505
  %v585 = vpop.f32.mrf.mxu0
  %v586 = vadd.f32 0.0, %v585
  %v587 = vpop.f32.mrf.mxu0
  %v588 = vadd.f32 0.0, %v587
  %589 = vdwg.mxu0
  %590 = vmatprep.subr.mxu0 0.0
  %591 = vmatpush1.msra.mxu0 0.0
  %592 = vmatprep.subr.mxu0 0.0
  %593 = vmatpush1.msra.mxu0 0.0
  %594 = vmatprep.subr.mxu0 0.0
  %595 = vmatpush1.msra.mxu0 0.0
  %596 = vmatprep.subr.mxu0 0.0
  %597 = vmatpush1.msra.mxu0 0.0
  %598 = vmatprep.subr.mxu0 0.0
  %599 = vmatpush1.msra.mxu0 0.0
  %600 = vmatprep.subr.mxu0 0.0
  %601 = vmatpush1.msra.mxu0 0.0
  %602 = vmatprep.subr.mxu0 0.0
  %603 = vmatpush1.msra.mxu0 0.0
  %604 = vmatprep.subr.mxu0 0.0
  %605 = vmatpush1.msra.mxu0 0.0
  %606 = vmatprep.subr.mxu0 0.0
  %607 = vmatpush1.msra.mxu0 0.0
  %608 = vmatprep.subr.mxu0 0.0
  %609 = vmatpush1.msra.mxu0 0.0
  %610 = vmatprep.subr.mxu0 0.0
  %611 = vmatpush1.msra.mxu0 0.0
  %612 = vmatprep.subr.mxu0 0.0
  %613 = vmatpush1.msra.mxu0 0.0
  %614 = vmatprep.subr.mxu0 0.0
  %615 = vmatpush1.msra.mxu0 0.0
  %616 = vmatprep.subr.mxu0 0.0
  %617 = vmatpush1.msra.mxu0 0.0
  %618 = vmatprep.subr.mxu0 0.0
  %619 = vmatpush1.msra.mxu0 0.0
  %620 = vmatprep.subr.mxu0 %v517
  %621 = vmatpush1.msra.mxu0 %v514
  %622 = vmatprep.subr.mxu0 0.0
  %623 = vmatpush2.msra.mxu0 0.0
  %624 = vmatprep.subr.mxu0 0.0
  %625 = vmatpush2.msra.mxu0 0.0
  %626 = vmatprep.subr.mxu0 0.0
  %627 = vmatpush2.msra.mxu0 0.0
  %628 = vmatprep.subr.mxu0 0.0
  %629 = vmatpush2.msra.mxu0 0.0
  %630 = vmatprep.subr.mxu0 0.0
  %631 = vmatpush2.msra.mxu0 0.0
  %632 = vmatprep.subr.mxu0 0.0
  %633 = vmatpush2.msra.mxu0 0.0
  %634 = vmatprep.subr.mxu0 0.0
  %635 = vmatpush2.msra.mxu0 0.0
  %636 = vmatprep.subr.mxu0 0.0
  %637 = vmatpush2.msra.mxu0 0.0
  %638 = vmatprep.subr.mxu0 0.0
  %639 = vmatpush2.msra.mxu0 0.0
  %640 = vmatprep.subr.mxu0 0.0
  %641 = vmatpush2.msra.mxu0 0.0
  %642 = vmatprep.subr.mxu0 0.0
  %643 = vmatpush2.msra.mxu0 0.0
  %644 = vmatprep.subr.mxu0 0.0
  %645 = vmatpush2.msra.mxu0 0.0
  %646 = vmatprep.subr.mxu0 0.0
  %647 = vmatpush2.msra.mxu0 0.0
  %648 = vmatprep.subr.mxu0 0.0
  %649 = vmatpush2.msra.mxu0 0.0
  %650 = vmatprep.subr.mxu0 0.0
  %651 = vmatpush2.msra.mxu0 0.0
  %652 = vmatprep.subr.mxu0 0.0
  %653 = vmatpush2.msra.mxu0 0.0
  %654 = vmatprep.mubr.f32.mxu0 0.0
  %655 = vmatmul.mubr.f32.gmra.mxu0 %v505
  %v656 = vpop.f32.mrf.mxu0
  %v657 = vadd.f32 0.0, %v656
  %v658 = vpop.f32.mrf.mxu0
  %v659 = vadd.f32 0.0, %v658
  %660 = vdwg.mxu0
  %v661 = vadd.f32 %v387, %v586
  %v662 = vadd.f32 %v389, %v588
  %v663 = vadd.f32 %v458, %v657
  %v664 = vadd.f32 %v460, %v659
  %665 = vrot.lane.b32.xlu0 %v54, 1
  %v666 = vpop.permute.xlu0 %665
  %667 = vrot.lane.b32.xlu0 %v58, 1
  %v668 = vpop.permute.xlu0 %667
  %669 = vrot.lane.b32.xlu0 %v55, 1
  %v670 = vpop.permute.xlu0 %669
  %671 = vrot.lane.b32.xlu0 %v59, 1
  %v672 = vpop.permute.xlu0 %671
  %vm673 = vcmp.lt.s32.totalorder %v71, 1
  %v674 = vsel %vm673, %v670, %v672
  %v675 = vsel %vm673, %v668, %v670
  %v676 = vsel %vm673, %v666, %v668
  %v677 = vsel %vm673, %v672, %v666
  %s678 = scalar_lea.vmem %s4, 3
  %v679 = vld [vmem:[%s678] ss:$8 sm:$0xf]
  %v681 = vlaneseq
  %v682 = vshrl.u32 %v681, 7
  %v683 = vsub.s32 0, %v682
  %v684 = vrot.slane %v679, %v683
  %v685 = vlaneseq
  %v686 = vshrl.u32 %v685, 7
  %v687 = vsub.s32 1, %v686
  %v688 = vrot.slane %v679, %v687
  %v689 = vlaneseq
  %v690 = vshrl.u32 %v689, 7
  %v691 = vsub.s32 2, %v690
  %v692 = vrot.slane %v679, %v691
  %v693 = vlaneseq
  %v694 = vshrl.u32 %v693, 7
  %v695 = vsub.s32 3, %v694
  %v696 = vrot.slane %v679, %v695
  %v701 = vmul.f32 %v677, %v684
  %v702 = vmul.f32 %v676, %v688
  %v703 = vmul.f32 %v675, %v692
  %v704 = vmul.f32 %v674, %v696
  %s705 = scalar_lea.vmem %s3, 24
  %v706 = vld [vmem:[%s705] sm:$0xff]
  %v708 = vsel %vm146, %v706, 0
  %v711 = vsel %vm150, %v701, 0
  %v714 = vsel %vm150, %v702, 0
  %v717 = vsel %vm150, %v703, 0
  %v720 = vsel %vm150, %v704, 0
  %722 = vmatprep.subr.mxu0 0.0
  %723 = vmatpush1.msra.mxu0 0.0
  %724 = vmatprep.subr.mxu0 0.0
  %725 = vmatpush1.msra.mxu0 0.0
  %726 = vmatprep.subr.mxu0 0.0
  %727 = vmatpush1.msra.mxu0 0.0
  %728 = vmatprep.subr.mxu0 0.0
  %729 = vmatpush1.msra.mxu0 0.0
  %730 = vmatprep.subr.mxu0 0.0
  %731 = vmatpush1.msra.mxu0 0.0
  %732 = vmatprep.subr.mxu0 0.0
  %733 = vmatpush1.msra.mxu0 0.0
  %734 = vmatprep.subr.mxu0 0.0
  %735 = vmatpush1.msra.mxu0 0.0
  %736 = vmatprep.subr.mxu0 0.0
  %737 = vmatpush1.msra.mxu0 0.0
  %738 = vmatprep.subr.mxu0 0.0
  %739 = vmatpush1.msra.mxu0 0.0
  %740 = vmatprep.subr.mxu0 0.0
  %741 = vmatpush1.msra.mxu0 0.0
  %742 = vmatprep.subr.mxu0 0.0
  %743 = vmatpush1.msra.mxu0 0.0
  %744 = vmatprep.subr.mxu0 0.0
  %745 = vmatpush1.msra.mxu0 0.0
  %746 = vmatprep.subr.mxu0 0.0
  %747 = vmatpush1.msra.mxu0 0.0
  %748 = vmatprep.subr.mxu0 0.0
  %749 = vmatpush1.msra.mxu0 0.0
  %750 = vmatprep.subr.mxu0 0.0
  %751 = vmatpush1.msra.mxu0 0.0
  %752 = vmatprep.subr.mxu0 %v714
  %753 = vmatpush1.msra.mxu0 %v711
  %754 = vmatprep.subr.mxu0 0.0
  %755 = vmatpush2.msra.mxu0 0.0
  %756 = vmatprep.subr.mxu0 0.0
  %757 = vmatpush2.msra.mxu0 0.0
  %758 = vmatprep.subr.mxu0 0.0
  %759 = vmatpush2.msra.mxu0 0.0
  %760 = vmatprep.subr.mxu0 0.0
  %761 = vmatpush2.msra.mxu0 0.0
  %762 = vmatprep.subr.mxu0 0.0
  %763 = vmatpush2.msra.mxu0 0.0
  %764 = vmatprep.subr.mxu0 0.0
  %765 = vmatpush2.msra.mxu0 0.0
  %766 = vmatprep.subr.mxu0 0.0
  %767 = vmatpush2.msra.mxu0 0.0
  %768 = vmatprep.subr.mxu0 0.0
  %769 = vmatpush2.msra.mxu0 0.0
  %770 = vmatprep.subr.mxu0 0.0
  %771 = vmatpush2.msra.mxu0 0.0
  %772 = vmatprep.subr.mxu0 0.0
  %773 = vmatpush2.msra.mxu0 0.0
  %774 = vmatprep.subr.mxu0 0.0
  %775 = vmatpush2.msra.mxu0 0.0
  %776 = vmatprep.subr.mxu0 0.0
  %777 = vmatpush2.msra.mxu0 0.0
  %778 = vmatprep.subr.mxu0 0.0
  %779 = vmatpush2.msra.mxu0 0.0
  %780 = vmatprep.subr.mxu0 0.0
  %781 = vmatpush2.msra.mxu0 0.0
  %782 = vmatprep.subr.mxu0 0.0
  %783 = vmatpush2.msra.mxu0 0.0
  %784 = vmatprep.subr.mxu0 0.0
  %785 = vmatpush2.msra.mxu0 0.0
  %786 = vmatprep.mubr.f32.mxu0 0.0
  %787 = vmatmul.mubr.f32.gmra.mxu0 %v708
  %v788 = vpop.f32.mrf.mxu0
  %v789 = vadd.f32 0.0, %v788
  %v790 = vpop.f32.mrf.mxu0
  %v791 = vadd.f32 0.0, %v790
  %792 = vdwg.mxu0
  %793 = vmatprep.subr.mxu0 0.0
  %794 = vmatpush1.msra.mxu0 0.0
  %795 = vmatprep.subr.mxu0 0.0
  %796 = vmatpush1.msra.mxu0 0.0
  %797 = vmatprep.subr.mxu0 0.0
  %798 = vmatpush1.msra.mxu0 0.0
  %799 = vmatprep.subr.mxu0 0.0
  %800 = vmatpush1.msra.mxu0 0.0
  %801 = vmatprep.subr.mxu0 0.0
  %802 = vmatpush1.msra.mxu0 0.0
  %803 = vmatprep.subr.mxu0 0.0
  %804 = vmatpush1.msra.mxu0 0.0
  %805 = vmatprep.subr.mxu0 0.0
  %806 = vmatpush1.msra.mxu0 0.0
  %807 = vmatprep.subr.mxu0 0.0
  %808 = vmatpush1.msra.mxu0 0.0
  %809 = vmatprep.subr.mxu0 0.0
  %810 = vmatpush1.msra.mxu0 0.0
  %811 = vmatprep.subr.mxu0 0.0
  %812 = vmatpush1.msra.mxu0 0.0
  %813 = vmatprep.subr.mxu0 0.0
  %814 = vmatpush1.msra.mxu0 0.0
  %815 = vmatprep.subr.mxu0 0.0
  %816 = vmatpush1.msra.mxu0 0.0
  %817 = vmatprep.subr.mxu0 0.0
  %818 = vmatpush1.msra.mxu0 0.0
  %819 = vmatprep.subr.mxu0 0.0
  %820 = vmatpush1.msra.mxu0 0.0
  %821 = vmatprep.subr.mxu0 0.0
  %822 = vmatpush1.msra.mxu0 0.0
  %823 = vmatprep.subr.mxu0 %v720
  %824 = vmatpush1.msra.mxu0 %v717
  %825 = vmatprep.subr.mxu0 0.0
  %826 = vmatpush2.msra.mxu0 0.0
  %827 = vmatprep.subr.mxu0 0.0
  %828 = vmatpush2.msra.mxu0 0.0
  %829 = vmatprep.subr.mxu0 0.0
  %830 = vmatpush2.msra.mxu0 0.0
  %831 = vmatprep.subr.mxu0 0.0
  %832 = vmatpush2.msra.mxu0 0.0
  %833 = vmatprep.subr.mxu0 0.0
  %834 = vmatpush2.msra.mxu0 0.0
  %835 = vmatprep.subr.mxu0 0.0
  %836 = vmatpush2.msra.mxu0 0.0
  %837 = vmatprep.subr.mxu0 0.0
  %838 = vmatpush2.msra.mxu0 0.0
  %839 = vmatprep.subr.mxu0 0.0
  %840 = vmatpush2.msra.mxu0 0.0
  %841 = vmatprep.subr.mxu0 0.0
  %842 = vmatpush2.msra.mxu0 0.0
  %843 = vmatprep.subr.mxu0 0.0
  %844 = vmatpush2.msra.mxu0 0.0
  %845 = vmatprep.subr.mxu0 0.0
  %846 = vmatpush2.msra.mxu0 0.0
  %847 = vmatprep.subr.mxu0 0.0
  %848 = vmatpush2.msra.mxu0 0.0
  %849 = vmatprep.subr.mxu0 0.0
  %850 = vmatpush2.msra.mxu0 0.0
  %851 = vmatprep.subr.mxu0 0.0
  %852 = vmatpush2.msra.mxu0 0.0
  %853 = vmatprep.subr.mxu0 0.0
  %854 = vmatpush2.msra.mxu0 0.0
  %855 = vmatprep.subr.mxu0 0.0
  %856 = vmatpush2.msra.mxu0 0.0
  %857 = vmatprep.mubr.f32.mxu0 0.0
  %858 = vmatmul.mubr.f32.gmra.mxu0 %v708
  %v859 = vpop.f32.mrf.mxu0
  %v860 = vadd.f32 0.0, %v859
  %v861 = vpop.f32.mrf.mxu0
  %v862 = vadd.f32 0.0, %v861
  %863 = vdwg.mxu0
  %v864 = vadd.f32 %v661, %v789
  %v865 = vadd.f32 %v662, %v791
  %v866 = vadd.f32 %v663, %v860
  %v867 = vadd.f32 %v664, %v862
  %s868 = scalar_lea.vmem %s4, 4
  %v869 = vld [vmem:[%s868] ss:$8 sm:$0xf]
  %v871 = vlaneseq
  %v872 = vshrl.u32 %v871, 7
  %v873 = vsub.s32 0, %v872
  %v874 = vrot.slane %v869, %v873
  %v875 = vlaneseq
  %v876 = vshrl.u32 %v875, 7
  %v877 = vsub.s32 1, %v876
  %v878 = vrot.slane %v869, %v877
  %v879 = vlaneseq
  %v880 = vshrl.u32 %v879, 7
  %v881 = vsub.s32 2, %v880
  %v882 = vrot.slane %v869, %v881
  %v883 = vlaneseq
  %v884 = vshrl.u32 %v883, 7
  %v885 = vsub.s32 3, %v884
  %v886 = vrot.slane %v869, %v885
  %v887 = vcombine.low %v874, %v878
  %v888 = vcombine.low %v882, %v886
  %v891 = vmul.f32 %v54, %v887
  %v892 = vmul.f32 %v55, %v888
  %s893 = scalar_lea.vmem %s3, 32
  %v894 = vld [vmem:[%s893] sm:$0xff]
  %v897 = vcombine.high %v891, %v891
  %v898 = vcombine.high %v892, %v892
  %v900 = vsel %vm146, %v894, 0
  %v902 = vsel %vm150, %v891, 0
  %v904 = vsel %vm150, %v897, 0
  %v906 = vsel %vm150, %v892, 0
  %v908 = vsel %vm150, %v898, 0
  %910 = vmatprep.subr.mxu0 0.0
  %911 = vmatpush1.msra.mxu0 0.0
  %912 = vmatprep.subr.mxu0 0.0
  %913 = vmatpush1.msra.mxu0 0.0
  %914 = vmatprep.subr.mxu0 0.0
  %915 = vmatpush1.msra.mxu0 0.0
  %916 = vmatprep.subr.mxu0 0.0
  %917 = vmatpush1.msra.mxu0 0.0
  %918 = vmatprep.subr.mxu0 0.0
  %919 = vmatpush1.msra.mxu0 0.0
  %920 = vmatprep.subr.mxu0 0.0
  %921 = vmatpush1.msra.mxu0 0.0
  %922 = vmatprep.subr.mxu0 0.0
  %923 = vmatpush1.msra.mxu0 0.0
  %924 = vmatprep.subr.mxu0 0.0
  %925 = vmatpush1.msra.mxu0 0.0
  %926 = vmatprep.subr.mxu0 0.0
  %927 = vmatpush1.msra.mxu0 0.0
  %928 = vmatprep.subr.mxu0 0.0
  %929 = vmatpush1.msra.mxu0 0.0
  %930 = vmatprep.subr.mxu0 0.0
  %931 = vmatpush1.msra.mxu0 0.0
  %932 = vmatprep.subr.mxu0 0.0
  %933 = vmatpush1.msra.mxu0 0.0
  %934 = vmatprep.subr.mxu0 0.0
  %935 = vmatpush1.msra.mxu0 0.0
  %936 = vmatprep.subr.mxu0 0.0
  %937 = vmatpush1.msra.mxu0 0.0
  %938 = vmatprep.subr.mxu0 0.0
  %939 = vmatpush1.msra.mxu0 0.0
  %940 = vmatprep.subr.mxu0 %v904
  %941 = vmatpush1.msra.mxu0 %v902
  %942 = vmatprep.subr.mxu0 0.0
  %943 = vmatpush2.msra.mxu0 0.0
  %944 = vmatprep.subr.mxu0 0.0
  %945 = vmatpush2.msra.mxu0 0.0
  %946 = vmatprep.subr.mxu0 0.0
  %947 = vmatpush2.msra.mxu0 0.0
  %948 = vmatprep.subr.mxu0 0.0
  %949 = vmatpush2.msra.mxu0 0.0
  %950 = vmatprep.subr.mxu0 0.0
  %951 = vmatpush2.msra.mxu0 0.0
  %952 = vmatprep.subr.mxu0 0.0
  %953 = vmatpush2.msra.mxu0 0.0
  %954 = vmatprep.subr.mxu0 0.0
  %955 = vmatpush2.msra.mxu0 0.0
  %956 = vmatprep.subr.mxu0 0.0
  %957 = vmatpush2.msra.mxu0 0.0
  %958 = vmatprep.subr.mxu0 0.0
  %959 = vmatpush2.msra.mxu0 0.0
  %960 = vmatprep.subr.mxu0 0.0
  %961 = vmatpush2.msra.mxu0 0.0
  %962 = vmatprep.subr.mxu0 0.0
  %963 = vmatpush2.msra.mxu0 0.0
  %964 = vmatprep.subr.mxu0 0.0
  %965 = vmatpush2.msra.mxu0 0.0
  %966 = vmatprep.subr.mxu0 0.0
  %967 = vmatpush2.msra.mxu0 0.0
  %968 = vmatprep.subr.mxu0 0.0
  %969 = vmatpush2.msra.mxu0 0.0
  %970 = vmatprep.subr.mxu0 0.0
  %971 = vmatpush2.msra.mxu0 0.0
  %972 = vmatprep.subr.mxu0 0.0
  %973 = vmatpush2.msra.mxu0 0.0
  %974 = vmatprep.mubr.f32.mxu0 0.0
  %975 = vmatmul.mubr.f32.gmra.mxu0 %v900
  %v976 = vpop.f32.mrf.mxu0
  %v977 = vadd.f32 0.0, %v976
  %v978 = vpop.f32.mrf.mxu0
  %v979 = vadd.f32 0.0, %v978
  %980 = vdwg.mxu0
  %981 = vmatprep.subr.mxu0 0.0
  %982 = vmatpush1.msra.mxu0 0.0
  %983 = vmatprep.subr.mxu0 0.0
  %984 = vmatpush1.msra.mxu0 0.0
  %985 = vmatprep.subr.mxu0 0.0
  %986 = vmatpush1.msra.mxu0 0.0
  %987 = vmatprep.subr.mxu0 0.0
  %988 = vmatpush1.msra.mxu0 0.0
  %989 = vmatprep.subr.mxu0 0.0
  %990 = vmatpush1.msra.mxu0 0.0
  %991 = vmatprep.subr.mxu0 0.0
  %992 = vmatpush1.msra.mxu0 0.0
  %993 = vmatprep.subr.mxu0 0.0
  %994 = vmatpush1.msra.mxu0 0.0
  %995 = vmatprep.subr.mxu0 0.0
  %996 = vmatpush1.msra.mxu0 0.0
  %997 = vmatprep.subr.mxu0 0.0
  %998 = vmatpush1.msra.mxu0 0.0
  %999 = vmatprep.subr.mxu0 0.0
  %1000 = vmatpush1.msra.mxu0 0.0
  %1001 = vmatprep.subr.mxu0 0.0
  %1002 = vmatpush1.msra.mxu0 0.0
  %1003 = vmatprep.subr.mxu0 0.0
  %1004 = vmatpush1.msra.mxu0 0.0
  %1005 = vmatprep.subr.mxu0 0.0
  %1006 = vmatpush1.msra.mxu0 0.0
  %1007 = vmatprep.subr.mxu0 0.0
  %1008 = vmatpush1.msra.mxu0 0.0
  %1009 = vmatprep.subr.mxu0 0.0
  %1010 = vmatpush1.msra.mxu0 0.0
  %1011 = vmatprep.subr.mxu0 %v908
  %1012 = vmatpush1.msra.mxu0 %v906
  %1013 = vmatprep.subr.mxu0 0.0
  %1014 = vmatpush2.msra.mxu0 0.0
  %1015 = vmatprep.subr.mxu0 0.0
  %1016 = vmatpush2.msra.mxu0 0.0
  %1017 = vmatprep.subr.mxu0 0.0
  %1018 = vmatpush2.msra.mxu0 0.0
  %1019 = vmatprep.subr.mxu0 0.0
  %1020 = vmatpush2.msra.mxu0 0.0
  %1021 = vmatprep.subr.mxu0 0.0
  %1022 = vmatpush2.msra.mxu0 0.0
  %1023 = vmatprep.subr.mxu0 0.0
  %1024 = vmatpush2.msra.mxu0 0.0
  %1025 = vmatprep.subr.mxu0 0.0
  %1026 = vmatpush2.msra.mxu0 0.0
  %1027 = vmatprep.subr.mxu0 0.0
  %1028 = vmatpush2.msra.mxu0 0.0
  %1029 = vmatprep.subr.mxu0 0.0
  %1030 = vmatpush2.msra.mxu0 0.0
  %1031 = vmatprep.subr.mxu0 0.0
  %1032 = vmatpush2.msra.mxu0 0.0
  %1033 = vmatprep.subr.mxu0 0.0
  %1034 = vmatpush2.msra.mxu0 0.0
  %1035 = vmatprep.subr.mxu0 0.0
  %1036 = vmatpush2.msra.mxu0 0.0
  %1037 = vmatprep.subr.mxu0 0.0
  %1038 = vmatpush2.msra.mxu0 0.0
  %1039 = vmatprep.subr.mxu0 0.0
  %1040 = vmatpush2.msra.mxu0 0.0
  %1041 = vmatprep.subr.mxu0 0.0
  %1042 = vmatpush2.msra.mxu0 0.0
  %1043 = vmatprep.subr.mxu0 0.0
  %1044 = vmatpush2.msra.mxu0 0.0
  %1045 = vmatprep.mubr.f32.mxu0 0.0
  %1046 = vmatmul.mubr.f32.gmra.mxu0 %v900
  %v1047 = vpop.f32.mrf.mxu0
  %v1048 = vadd.f32 0.0, %v1047
  %v1049 = vpop.f32.mrf.mxu0
  %v1050 = vadd.f32 0.0, %v1049
  %1051 = vdwg.mxu0
  %v1052 = vadd.f32 %v864, %v977
  %v1053 = vadd.f32 %v865, %v979
  %v1054 = vadd.f32 %v866, %v1048
  %v1055 = vadd.f32 %v867, %v1050
  %1056 = vrot.lane.b32.xlu0 %v54, 127
  %v1057 = vpop.permute.xlu0 %1056
  %1058 = vrot.lane.b32.xlu0 %v58, 127
  %v1059 = vpop.permute.xlu0 %1058
  %1060 = vrot.lane.b32.xlu0 %v55, 127
  %v1061 = vpop.permute.xlu0 %1060
  %1062 = vrot.lane.b32.xlu0 %v59, 127
  %v1063 = vpop.permute.xlu0 %1062
  %vm1064 = vcmp.lt.s32.totalorder %v71, 127
  %v1065 = vsel %vm1064, %v1061, %v1063
  %v1066 = vsel %vm1064, %v1059, %v1061
  %v1067 = vsel %vm1064, %v1057, %v1059
  %v1068 = vsel %vm1064, %v1063, %v1057
  %s1069 = scalar_lea.vmem %s4, 5
  %v1070 = vld [vmem:[%s1069] ss:$8 sm:$0xf]
  %v1072 = vlaneseq
  %v1073 = vshrl.u32 %v1072, 7
  %v1074 = vsub.s32 0, %v1073
  %v1075 = vrot.slane %v1070, %v1074
  %v1076 = vlaneseq
  %v1077 = vshrl.u32 %v1076, 7
  %v1078 = vsub.s32 1, %v1077
  %v1079 = vrot.slane %v1070, %v1078
  %v1080 = vlaneseq
  %v1081 = vshrl.u32 %v1080, 7
  %v1082 = vsub.s32 2, %v1081
  %v1083 = vrot.slane %v1070, %v1082
  %v1084 = vlaneseq
  %v1085 = vshrl.u32 %v1084, 7
  %v1086 = vsub.s32 3, %v1085
  %v1087 = vrot.slane %v1070, %v1086
  %v1092 = vmul.f32 %v1067, %v1075
  %v1093 = vmul.f32 %v1066, %v1079
  %v1094 = vmul.f32 %v1065, %v1083
  %v1095 = vmul.f32 %v1068, %v1087
  %s1096 = scalar_lea.vmem %s3, 40
  %v1097 = vld [vmem:[%s1096] sm:$0xff]
  %v1099 = vsel %vm146, %v1097, 0
  %v1102 = vsel %vm150, %v1092, 0
  %v1105 = vsel %vm150, %v1093, 0
  %v1108 = vsel %vm150, %v1094, 0
  %v1111 = vsel %vm150, %v1095, 0
  %1113 = vmatprep.subr.mxu0 0.0
  %1114 = vmatpush1.msra.mxu0 0.0
  %1115 = vmatprep.subr.mxu0 0.0
  %1116 = vmatpush1.msra.mxu0 0.0
  %1117 = vmatprep.subr.mxu0 0.0
  %1118 = vmatpush1.msra.mxu0 0.0
  %1119 = vmatprep.subr.mxu0 0.0
  %1120 = vmatpush1.msra.mxu0 0.0
  %1121 = vmatprep.subr.mxu0 0.0
  %1122 = vmatpush1.msra.mxu0 0.0
  %1123 = vmatprep.subr.mxu0 0.0
  %1124 = vmatpush1.msra.mxu0 0.0
  %1125 = vmatprep.subr.mxu0 0.0
  %1126 = vmatpush1.msra.mxu0 0.0
  %1127 = vmatprep.subr.mxu0 0.0
  %1128 = vmatpush1.msra.mxu0 0.0
  %1129 = vmatprep.subr.mxu0 0.0
  %1130 = vmatpush1.msra.mxu0 0.0
  %1131 = vmatprep.subr.mxu0 0.0
  %1132 = vmatpush1.msra.mxu0 0.0
  %1133 = vmatprep.subr.mxu0 0.0
  %1134 = vmatpush1.msra.mxu0 0.0
  %1135 = vmatprep.subr.mxu0 0.0
  %1136 = vmatpush1.msra.mxu0 0.0
  %1137 = vmatprep.subr.mxu0 0.0
  %1138 = vmatpush1.msra.mxu0 0.0
  %1139 = vmatprep.subr.mxu0 0.0
  %1140 = vmatpush1.msra.mxu0 0.0
  %1141 = vmatprep.subr.mxu0 0.0
  %1142 = vmatpush1.msra.mxu0 0.0
  %1143 = vmatprep.subr.mxu0 %v1105
  %1144 = vmatpush1.msra.mxu0 %v1102
  %1145 = vmatprep.subr.mxu0 0.0
  %1146 = vmatpush2.msra.mxu0 0.0
  %1147 = vmatprep.subr.mxu0 0.0
  %1148 = vmatpush2.msra.mxu0 0.0
  %1149 = vmatprep.subr.mxu0 0.0
  %1150 = vmatpush2.msra.mxu0 0.0
  %1151 = vmatprep.subr.mxu0 0.0
  %1152 = vmatpush2.msra.mxu0 0.0
  %1153 = vmatprep.subr.mxu0 0.0
  %1154 = vmatpush2.msra.mxu0 0.0
  %1155 = vmatprep.subr.mxu0 0.0
  %1156 = vmatpush2.msra.mxu0 0.0
  %1157 = vmatprep.subr.mxu0 0.0
  %1158 = vmatpush2.msra.mxu0 0.0
  %1159 = vmatprep.subr.mxu0 0.0
  %1160 = vmatpush2.msra.mxu0 0.0
  %1161 = vmatprep.subr.mxu0 0.0
  %1162 = vmatpush2.msra.mxu0 0.0
  %1163 = vmatprep.subr.mxu0 0.0
  %1164 = vmatpush2.msra.mxu0 0.0
  %1165 = vmatprep.subr.mxu0 0.0
  %1166 = vmatpush2.msra.mxu0 0.0
  %1167 = vmatprep.subr.mxu0 0.0
  %1168 = vmatpush2.msra.mxu0 0.0
  %1169 = vmatprep.subr.mxu0 0.0
  %1170 = vmatpush2.msra.mxu0 0.0
  %1171 = vmatprep.subr.mxu0 0.0
  %1172 = vmatpush2.msra.mxu0 0.0
  %1173 = vmatprep.subr.mxu0 0.0
  %1174 = vmatpush2.msra.mxu0 0.0
  %1175 = vmatprep.subr.mxu0 0.0
  %1176 = vmatpush2.msra.mxu0 0.0
  %1177 = vmatprep.mubr.f32.mxu0 0.0
  %1178 = vmatmul.mubr.f32.gmra.mxu0 %v1099
  %v1179 = vpop.f32.mrf.mxu0
  %v1180 = vadd.f32 0.0, %v1179
  %v1181 = vpop.f32.mrf.mxu0
  %v1182 = vadd.f32 0.0, %v1181
  %1183 = vdwg.mxu0
  %1184 = vmatprep.subr.mxu0 0.0
  %1185 = vmatpush1.msra.mxu0 0.0
  %1186 = vmatprep.subr.mxu0 0.0
  %1187 = vmatpush1.msra.mxu0 0.0
  %1188 = vmatprep.subr.mxu0 0.0
  %1189 = vmatpush1.msra.mxu0 0.0
  %1190 = vmatprep.subr.mxu0 0.0
  %1191 = vmatpush1.msra.mxu0 0.0
  %1192 = vmatprep.subr.mxu0 0.0
  %1193 = vmatpush1.msra.mxu0 0.0
  %1194 = vmatprep.subr.mxu0 0.0
  %1195 = vmatpush1.msra.mxu0 0.0
  %1196 = vmatprep.subr.mxu0 0.0
  %1197 = vmatpush1.msra.mxu0 0.0
  %1198 = vmatprep.subr.mxu0 0.0
  %1199 = vmatpush1.msra.mxu0 0.0
  %1200 = vmatprep.subr.mxu0 0.0
  %1201 = vmatpush1.msra.mxu0 0.0
  %1202 = vmatprep.subr.mxu0 0.0
  %1203 = vmatpush1.msra.mxu0 0.0
  %1204 = vmatprep.subr.mxu0 0.0
  %1205 = vmatpush1.msra.mxu0 0.0
  %1206 = vmatprep.subr.mxu0 0.0
  %1207 = vmatpush1.msra.mxu0 0.0
  %1208 = vmatprep.subr.mxu0 0.0
  %1209 = vmatpush1.msra.mxu0 0.0
  %1210 = vmatprep.subr.mxu0 0.0
  %1211 = vmatpush1.msra.mxu0 0.0
  %1212 = vmatprep.subr.mxu0 0.0
  %1213 = vmatpush1.msra.mxu0 0.0
  %1214 = vmatprep.subr.mxu0 %v1111
  %1215 = vmatpush1.msra.mxu0 %v1108
  %1216 = vmatprep.subr.mxu0 0.0
  %1217 = vmatpush2.msra.mxu0 0.0
  %1218 = vmatprep.subr.mxu0 0.0
  %1219 = vmatpush2.msra.mxu0 0.0
  %1220 = vmatprep.subr.mxu0 0.0
  %1221 = vmatpush2.msra.mxu0 0.0
  %1222 = vmatprep.subr.mxu0 0.0
  %1223 = vmatpush2.msra.mxu0 0.0
  %1224 = vmatprep.subr.mxu0 0.0
  %1225 = vmatpush2.msra.mxu0 0.0
  %1226 = vmatprep.subr.mxu0 0.0
  %1227 = vmatpush2.msra.mxu0 0.0
  %1228 = vmatprep.subr.mxu0 0.0
  %1229 = vmatpush2.msra.mxu0 0.0
  %1230 = vmatprep.subr.mxu0 0.0
  %1231 = vmatpush2.msra.mxu0 0.0
  %1232 = vmatprep.subr.mxu0 0.0
  %1233 = vmatpush2.msra.mxu0 0.0
  %1234 = vmatprep.subr.mxu0 0.0
  %1235 = vmatpush2.msra.mxu0 0.0
  %1236 = vmatprep.subr.mxu0 0.0
  %1237 = vmatpush2.msra.mxu0 0.0
  %1238 = vmatprep.subr.mxu0 0.0
  %1239 = vmatpush2.msra.mxu0 0.0
  %1240 = vmatprep.subr.mxu0 0.0
  %1241 = vmatpush2.msra.mxu0 0.0
  %1242 = vmatprep.subr.mxu0 0.0
  %1243 = vmatpush2.msra.mxu0 0.0
  %1244 = vmatprep.subr.mxu0 0.0
  %1245 = vmatpush2.msra.mxu0 0.0
  %1246 = vmatprep.subr.mxu0 0.0
  %1247 = vmatpush2.msra.mxu0 0.0
  %1248 = vmatprep.mubr.f32.mxu0 0.0
  %1249 = vmatmul.mubr.f32.gmra.mxu0 %v1099
  %v1250 = vpop.f32.mrf.mxu0
  %v1251 = vadd.f32 0.0, %v1250
  %v1252 = vpop.f32.mrf.mxu0
  %v1253 = vadd.f32 0.0, %v1252
  %1254 = vdwg.mxu0
  %v1255 = vadd.f32 %v1052, %v1180
  %v1256 = vadd.f32 %v1053, %v1182
  %v1257 = vadd.f32 %v1054, %v1251
  %v1258 = vadd.f32 %v1055, %v1253
  %1259 = vrot.lane.b32.xlu0 %v54, 113
  %v1260 = vpop.permute.xlu0 %1259
  %1261 = vrot.lane.b32.xlu0 %v58, 113
  %v1262 = vpop.permute.xlu0 %1261
  %1263 = vrot.lane.b32.xlu0 %v55, 113
  %v1264 = vpop.permute.xlu0 %1263
  %1265 = vrot.lane.b32.xlu0 %v59, 113
  %v1266 = vpop.permute.xlu0 %1265
  %vm1267 = vcmp.lt.s32.totalorder %v71, 113
  %v1268 = vsel %vm1267, %v1264, %v1266
  %v1269 = vsel %vm1267, %v1262, %v1264
  %v1270 = vsel %vm1267, %v1260, %v1262
  %v1271 = vsel %vm1267, %v1266, %v1260
  %s1272 = scalar_lea.vmem %s4, 6
  %v1273 = vld [vmem:[%s1272] ss:$8 sm:$0xf]
  %v1275 = vlaneseq
  %v1276 = vshrl.u32 %v1275, 7
  %v1277 = vsub.s32 0, %v1276
  %v1278 = vrot.slane %v1273, %v1277
  %v1279 = vlaneseq
  %v1280 = vshrl.u32 %v1279, 7
  %v1281 = vsub.s32 1, %v1280
  %v1282 = vrot.slane %v1273, %v1281
  %v1283 = vlaneseq
  %v1284 = vshrl.u32 %v1283, 7
  %v1285 = vsub.s32 2, %v1284
  %v1286 = vrot.slane %v1273, %v1285
  %v1287 = vlaneseq
  %v1288 = vshrl.u32 %v1287, 7
  %v1289 = vsub.s32 3, %v1288
  %v1290 = vrot.slane %v1273, %v1289
  %v1295 = vmul.f32 %v1270, %v1278
  %v1296 = vmul.f32 %v1269, %v1282
  %v1297 = vmul.f32 %v1268, %v1286
  %v1298 = vmul.f32 %v1271, %v1290
  %s1299 = scalar_lea.vmem %s3, 48
  %v1300 = vld [vmem:[%s1299] sm:$0xff]
  %v1302 = vsel %vm146, %v1300, 0
  %v1305 = vsel %vm150, %v1295, 0
  %v1308 = vsel %vm150, %v1296, 0
  %v1311 = vsel %vm150, %v1297, 0
  %v1314 = vsel %vm150, %v1298, 0
  %1316 = vmatprep.subr.mxu0 0.0
  %1317 = vmatpush1.msra.mxu0 0.0
  %1318 = vmatprep.subr.mxu0 0.0
  %1319 = vmatpush1.msra.mxu0 0.0
  %1320 = vmatprep.subr.mxu0 0.0
  %1321 = vmatpush1.msra.mxu0 0.0
  %1322 = vmatprep.subr.mxu0 0.0
  %1323 = vmatpush1.msra.mxu0 0.0
  %1324 = vmatprep.subr.mxu0 0.0
  %1325 = vmatpush1.msra.mxu0 0.0
  %1326 = vmatprep.subr.mxu0 0.0
  %1327 = vmatpush1.msra.mxu0 0.0
  %1328 = vmatprep.subr.mxu0 0.0
  %1329 = vmatpush1.msra.mxu0 0.0
  %1330 = vmatprep.subr.mxu0 0.0
  %1331 = vmatpush1.msra.mxu0 0.0
  %1332 = vmatprep.subr.mxu0 0.0
  %1333 = vmatpush1.msra.mxu0 0.0
  %1334 = vmatprep.subr.mxu0 0.0
  %1335 = vmatpush1.msra.mxu0 0.0
  %1336 = vmatprep.subr.mxu0 0.0
  %1337 = vmatpush1.msra.mxu0 0.0
  %1338 = vmatprep.subr.mxu0 0.0
  %1339 = vmatpush1.msra.mxu0 0.0
  %1340 = vmatprep.subr.mxu0 0.0
  %1341 = vmatpush1.msra.mxu0 0.0
  %1342 = vmatprep.subr.mxu0 0.0
  %1343 = vmatpush1.msra.mxu0 0.0
  %1344 = vmatprep.subr.mxu0 0.0
  %1345 = vmatpush1.msra.mxu0 0.0
  %1346 = vmatprep.subr.mxu0 %v1308
  %1347 = vmatpush1.msra.mxu0 %v1305
  %1348 = vmatprep.subr.mxu0 0.0
  %1349 = vmatpush2.msra.mxu0 0.0
  %1350 = vmatprep.subr.mxu0 0.0
  %1351 = vmatpush2.msra.mxu0 0.0
  %1352 = vmatprep.subr.mxu0 0.0
  %1353 = vmatpush2.msra.mxu0 0.0
  %1354 = vmatprep.subr.mxu0 0.0
  %1355 = vmatpush2.msra.mxu0 0.0
  %1356 = vmatprep.subr.mxu0 0.0
  %1357 = vmatpush2.msra.mxu0 0.0
  %1358 = vmatprep.subr.mxu0 0.0
  %1359 = vmatpush2.msra.mxu0 0.0
  %1360 = vmatprep.subr.mxu0 0.0
  %1361 = vmatpush2.msra.mxu0 0.0
  %1362 = vmatprep.subr.mxu0 0.0
  %1363 = vmatpush2.msra.mxu0 0.0
  %1364 = vmatprep.subr.mxu0 0.0
  %1365 = vmatpush2.msra.mxu0 0.0
  %1366 = vmatprep.subr.mxu0 0.0
  %1367 = vmatpush2.msra.mxu0 0.0
  %1368 = vmatprep.subr.mxu0 0.0
  %1369 = vmatpush2.msra.mxu0 0.0
  %1370 = vmatprep.subr.mxu0 0.0
  %1371 = vmatpush2.msra.mxu0 0.0
  %1372 = vmatprep.subr.mxu0 0.0
  %1373 = vmatpush2.msra.mxu0 0.0
  %1374 = vmatprep.subr.mxu0 0.0
  %1375 = vmatpush2.msra.mxu0 0.0
  %1376 = vmatprep.subr.mxu0 0.0
  %1377 = vmatpush2.msra.mxu0 0.0
  %1378 = vmatprep.subr.mxu0 0.0
  %1379 = vmatpush2.msra.mxu0 0.0
  %1380 = vmatprep.mubr.f32.mxu0 0.0
  %1381 = vmatmul.mubr.f32.gmra.mxu0 %v1302
  %v1382 = vpop.f32.mrf.mxu0
  %v1383 = vadd.f32 0.0, %v1382
  %v1384 = vpop.f32.mrf.mxu0
  %v1385 = vadd.f32 0.0, %v1384
  %1386 = vdwg.mxu0
  %1387 = vmatprep.subr.mxu0 0.0
  %1388 = vmatpush1.msra.mxu0 0.0
  %1389 = vmatprep.subr.mxu0 0.0
  %1390 = vmatpush1.msra.mxu0 0.0
  %1391 = vmatprep.subr.mxu0 0.0
  %1392 = vmatpush1.msra.mxu0 0.0
  %1393 = vmatprep.subr.mxu0 0.0
  %1394 = vmatpush1.msra.mxu0 0.0
  %1395 = vmatprep.subr.mxu0 0.0
  %1396 = vmatpush1.msra.mxu0 0.0
  %1397 = vmatprep.subr.mxu0 0.0
  %1398 = vmatpush1.msra.mxu0 0.0
  %1399 = vmatprep.subr.mxu0 0.0
  %1400 = vmatpush1.msra.mxu0 0.0
  %1401 = vmatprep.subr.mxu0 0.0
  %1402 = vmatpush1.msra.mxu0 0.0
  %1403 = vmatprep.subr.mxu0 0.0
  %1404 = vmatpush1.msra.mxu0 0.0
  %1405 = vmatprep.subr.mxu0 0.0
  %1406 = vmatpush1.msra.mxu0 0.0
  %1407 = vmatprep.subr.mxu0 0.0
  %1408 = vmatpush1.msra.mxu0 0.0
  %1409 = vmatprep.subr.mxu0 0.0
  %1410 = vmatpush1.msra.mxu0 0.0
  %1411 = vmatprep.subr.mxu0 0.0
  %1412 = vmatpush1.msra.mxu0 0.0
  %1413 = vmatprep.subr.mxu0 0.0
  %1414 = vmatpush1.msra.mxu0 0.0
  %1415 = vmatprep.subr.mxu0 0.0
  %1416 = vmatpush1.msra.mxu0 0.0
  %1417 = vmatprep.subr.mxu0 %v1314
  %1418 = vmatpush1.msra.mxu0 %v1311
  %1419 = vmatprep.subr.mxu0 0.0
  %1420 = vmatpush2.msra.mxu0 0.0
  %1421 = vmatprep.subr.mxu0 0.0
  %1422 = vmatpush2.msra.mxu0 0.0
  %1423 = vmatprep.subr.mxu0 0.0
  %1424 = vmatpush2.msra.mxu0 0.0
  %1425 = vmatprep.subr.mxu0 0.0
  %1426 = vmatpush2.msra.mxu0 0.0
  %1427 = vmatprep.subr.mxu0 0.0
  %1428 = vmatpush2.msra.mxu0 0.0
  %1429 = vmatprep.subr.mxu0 0.0
  %1430 = vmatpush2.msra.mxu0 0.0
  %1431 = vmatprep.subr.mxu0 0.0
  %1432 = vmatpush2.msra.mxu0 0.0
  %1433 = vmatprep.subr.mxu0 0.0
  %1434 = vmatpush2.msra.mxu0 0.0
  %1435 = vmatprep.subr.mxu0 0.0
  %1436 = vmatpush2.msra.mxu0 0.0
  %1437 = vmatprep.subr.mxu0 0.0
  %1438 = vmatpush2.msra.mxu0 0.0
  %1439 = vmatprep.subr.mxu0 0.0
  %1440 = vmatpush2.msra.mxu0 0.0
  %1441 = vmatprep.subr.mxu0 0.0
  %1442 = vmatpush2.msra.mxu0 0.0
  %1443 = vmatprep.subr.mxu0 0.0
  %1444 = vmatpush2.msra.mxu0 0.0
  %1445 = vmatprep.subr.mxu0 0.0
  %1446 = vmatpush2.msra.mxu0 0.0
  %1447 = vmatprep.subr.mxu0 0.0
  %1448 = vmatpush2.msra.mxu0 0.0
  %1449 = vmatprep.subr.mxu0 0.0
  %1450 = vmatpush2.msra.mxu0 0.0
  %1451 = vmatprep.mubr.f32.mxu0 0.0
  %1452 = vmatmul.mubr.f32.gmra.mxu0 %v1302
  %v1453 = vpop.f32.mrf.mxu0
  %v1454 = vadd.f32 0.0, %v1453
  %v1455 = vpop.f32.mrf.mxu0
  %v1456 = vadd.f32 0.0, %v1455
  %1457 = vdwg.mxu0
  %v1458 = vadd.f32 %v1255, %v1383
  %v1459 = vadd.f32 %v1256, %v1385
  %v1460 = vadd.f32 %v1257, %v1454
  %v1461 = vadd.f32 %v1258, %v1456
  %1462 = vrot.lane.b32.xlu0 %v54, 112
  %v1463 = vpop.permute.xlu0 %1462
  %1464 = vrot.lane.b32.xlu0 %v58, 112
  %v1465 = vpop.permute.xlu0 %1464
  %1466 = vrot.lane.b32.xlu0 %v55, 112
  %v1467 = vpop.permute.xlu0 %1466
  %1468 = vrot.lane.b32.xlu0 %v59, 112
  %v1469 = vpop.permute.xlu0 %1468
  %vm1470 = vcmp.lt.s32.totalorder %v71, 112
  %v1471 = vsel %vm1470, %v1467, %v1469
  %v1472 = vsel %vm1470, %v1465, %v1467
  %v1473 = vsel %vm1470, %v1463, %v1465
  %v1474 = vsel %vm1470, %v1469, %v1463
  %s1475 = scalar_lea.vmem %s4, 7
  %v1476 = vld [vmem:[%s1475] ss:$8 sm:$0xf]
  %v1478 = vlaneseq
  %v1479 = vshrl.u32 %v1478, 7
  %v1480 = vsub.s32 0, %v1479
  %v1481 = vrot.slane %v1476, %v1480
  %v1482 = vlaneseq
  %v1483 = vshrl.u32 %v1482, 7
  %v1484 = vsub.s32 1, %v1483
  %v1485 = vrot.slane %v1476, %v1484
  %v1486 = vlaneseq
  %v1487 = vshrl.u32 %v1486, 7
  %v1488 = vsub.s32 2, %v1487
  %v1489 = vrot.slane %v1476, %v1488
  %v1490 = vlaneseq
  %v1491 = vshrl.u32 %v1490, 7
  %v1492 = vsub.s32 3, %v1491
  %v1493 = vrot.slane %v1476, %v1492
  %v1498 = vmul.f32 %v1473, %v1481
  %v1499 = vmul.f32 %v1472, %v1485
  %v1500 = vmul.f32 %v1471, %v1489
  %v1501 = vmul.f32 %v1474, %v1493
  %s1502 = scalar_lea.vmem %s3, 56
  %v1503 = vld [vmem:[%s1502] sm:$0xff]
  %v1505 = vsel %vm146, %v1503, 0
  %v1508 = vsel %vm150, %v1498, 0
  %v1511 = vsel %vm150, %v1499, 0
  %v1514 = vsel %vm150, %v1500, 0
  %v1517 = vsel %vm150, %v1501, 0
  %1519 = vmatprep.subr.mxu0 0.0
  %1520 = vmatpush1.msra.mxu0 0.0
  %1521 = vmatprep.subr.mxu0 0.0
  %1522 = vmatpush1.msra.mxu0 0.0
  %1523 = vmatprep.subr.mxu0 0.0
  %1524 = vmatpush1.msra.mxu0 0.0
  %1525 = vmatprep.subr.mxu0 0.0
  %1526 = vmatpush1.msra.mxu0 0.0
  %1527 = vmatprep.subr.mxu0 0.0
  %1528 = vmatpush1.msra.mxu0 0.0
  %1529 = vmatprep.subr.mxu0 0.0
  %1530 = vmatpush1.msra.mxu0 0.0
  %1531 = vmatprep.subr.mxu0 0.0
  %1532 = vmatpush1.msra.mxu0 0.0
  %1533 = vmatprep.subr.mxu0 0.0
  %1534 = vmatpush1.msra.mxu0 0.0
  %1535 = vmatprep.subr.mxu0 0.0
  %1536 = vmatpush1.msra.mxu0 0.0
  %1537 = vmatprep.subr.mxu0 0.0
  %1538 = vmatpush1.msra.mxu0 0.0
  %1539 = vmatprep.subr.mxu0 0.0
  %1540 = vmatpush1.msra.mxu0 0.0
  %1541 = vmatprep.subr.mxu0 0.0
  %1542 = vmatpush1.msra.mxu0 0.0
  %1543 = vmatprep.subr.mxu0 0.0
  %1544 = vmatpush1.msra.mxu0 0.0
  %1545 = vmatprep.subr.mxu0 0.0
  %1546 = vmatpush1.msra.mxu0 0.0
  %1547 = vmatprep.subr.mxu0 0.0
  %1548 = vmatpush1.msra.mxu0 0.0
  %1549 = vmatprep.subr.mxu0 %v1511
  %1550 = vmatpush1.msra.mxu0 %v1508
  %1551 = vmatprep.subr.mxu0 0.0
  %1552 = vmatpush2.msra.mxu0 0.0
  %1553 = vmatprep.subr.mxu0 0.0
  %1554 = vmatpush2.msra.mxu0 0.0
  %1555 = vmatprep.subr.mxu0 0.0
  %1556 = vmatpush2.msra.mxu0 0.0
  %1557 = vmatprep.subr.mxu0 0.0
  %1558 = vmatpush2.msra.mxu0 0.0
  %1559 = vmatprep.subr.mxu0 0.0
  %1560 = vmatpush2.msra.mxu0 0.0
  %1561 = vmatprep.subr.mxu0 0.0
  %1562 = vmatpush2.msra.mxu0 0.0
  %1563 = vmatprep.subr.mxu0 0.0
  %1564 = vmatpush2.msra.mxu0 0.0
  %1565 = vmatprep.subr.mxu0 0.0
  %1566 = vmatpush2.msra.mxu0 0.0
  %1567 = vmatprep.subr.mxu0 0.0
  %1568 = vmatpush2.msra.mxu0 0.0
  %1569 = vmatprep.subr.mxu0 0.0
  %1570 = vmatpush2.msra.mxu0 0.0
  %1571 = vmatprep.subr.mxu0 0.0
  %1572 = vmatpush2.msra.mxu0 0.0
  %1573 = vmatprep.subr.mxu0 0.0
  %1574 = vmatpush2.msra.mxu0 0.0
  %1575 = vmatprep.subr.mxu0 0.0
  %1576 = vmatpush2.msra.mxu0 0.0
  %1577 = vmatprep.subr.mxu0 0.0
  %1578 = vmatpush2.msra.mxu0 0.0
  %1579 = vmatprep.subr.mxu0 0.0
  %1580 = vmatpush2.msra.mxu0 0.0
  %1581 = vmatprep.subr.mxu0 0.0
  %1582 = vmatpush2.msra.mxu0 0.0
  %1583 = vmatprep.mubr.f32.mxu0 0.0
  %1584 = vmatmul.mubr.f32.gmra.mxu0 %v1505
  %v1585 = vpop.f32.mrf.mxu0
  %v1586 = vadd.f32 0.0, %v1585
  %v1587 = vpop.f32.mrf.mxu0
  %v1588 = vadd.f32 0.0, %v1587
  %1589 = vdwg.mxu0
  %1590 = vmatprep.subr.mxu0 0.0
  %1591 = vmatpush1.msra.mxu0 0.0
  %1592 = vmatprep.subr.mxu0 0.0
  %1593 = vmatpush1.msra.mxu0 0.0
  %1594 = vmatprep.subr.mxu0 0.0
  %1595 = vmatpush1.msra.mxu0 0.0
  %1596 = vmatprep.subr.mxu0 0.0
  %1597 = vmatpush1.msra.mxu0 0.0
  %1598 = vmatprep.subr.mxu0 0.0
  %1599 = vmatpush1.msra.mxu0 0.0
  %1600 = vmatprep.subr.mxu0 0.0
  %1601 = vmatpush1.msra.mxu0 0.0
  %1602 = vmatprep.subr.mxu0 0.0
  %1603 = vmatpush1.msra.mxu0 0.0
  %1604 = vmatprep.subr.mxu0 0.0
  %1605 = vmatpush1.msra.mxu0 0.0
  %1606 = vmatprep.subr.mxu0 0.0
  %1607 = vmatpush1.msra.mxu0 0.0
  %1608 = vmatprep.subr.mxu0 0.0
  %1609 = vmatpush1.msra.mxu0 0.0
  %1610 = vmatprep.subr.mxu0 0.0
  %1611 = vmatpush1.msra.mxu0 0.0
  %1612 = vmatprep.subr.mxu0 0.0
  %1613 = vmatpush1.msra.mxu0 0.0
  %1614 = vmatprep.subr.mxu0 0.0
  %1615 = vmatpush1.msra.mxu0 0.0
  %1616 = vmatprep.subr.mxu0 0.0
  %1617 = vmatpush1.msra.mxu0 0.0
  %1618 = vmatprep.subr.mxu0 0.0
  %1619 = vmatpush1.msra.mxu0 0.0
  %1620 = vmatprep.subr.mxu0 %v1517
  %1621 = vmatpush1.msra.mxu0 %v1514
  %1622 = vmatprep.subr.mxu0 0.0
  %1623 = vmatpush2.msra.mxu0 0.0
  %1624 = vmatprep.subr.mxu0 0.0
  %1625 = vmatpush2.msra.mxu0 0.0
  %1626 = vmatprep.subr.mxu0 0.0
  %1627 = vmatpush2.msra.mxu0 0.0
  %1628 = vmatprep.subr.mxu0 0.0
  %1629 = vmatpush2.msra.mxu0 0.0
  %1630 = vmatprep.subr.mxu0 0.0
  %1631 = vmatpush2.msra.mxu0 0.0
  %1632 = vmatprep.subr.mxu0 0.0
  %1633 = vmatpush2.msra.mxu0 0.0
  %1634 = vmatprep.subr.mxu0 0.0
  %1635 = vmatpush2.msra.mxu0 0.0
  %1636 = vmatprep.subr.mxu0 0.0
  %1637 = vmatpush2.msra.mxu0 0.0
  %1638 = vmatprep.subr.mxu0 0.0
  %1639 = vmatpush2.msra.mxu0 0.0
  %1640 = vmatprep.subr.mxu0 0.0
  %1641 = vmatpush2.msra.mxu0 0.0
  %1642 = vmatprep.subr.mxu0 0.0
  %1643 = vmatpush2.msra.mxu0 0.0
  %1644 = vmatprep.subr.mxu0 0.0
  %1645 = vmatpush2.msra.mxu0 0.0
  %1646 = vmatprep.subr.mxu0 0.0
  %1647 = vmatpush2.msra.mxu0 0.0
  %1648 = vmatprep.subr.mxu0 0.0
  %1649 = vmatpush2.msra.mxu0 0.0
  %1650 = vmatprep.subr.mxu0 0.0
  %1651 = vmatpush2.msra.mxu0 0.0
  %1652 = vmatprep.subr.mxu0 0.0
  %1653 = vmatpush2.msra.mxu0 0.0
  %1654 = vmatprep.mubr.f32.mxu0 0.0
  %1655 = vmatmul.mubr.f32.gmra.mxu0 %v1505
  %v1656 = vpop.f32.mrf.mxu0
  %v1657 = vadd.f32 0.0, %v1656
  %v1658 = vpop.f32.mrf.mxu0
  %v1659 = vadd.f32 0.0, %v1658
  %1660 = vdwg.mxu0
  %v1661 = vadd.f32 %v1458, %v1586
  %v1662 = vadd.f32 %v1459, %v1588
  %v1663 = vadd.f32 %v1460, %v1657
  %v1664 = vadd.f32 %v1461, %v1659
  %1665 = vrot.lane.b32.xlu0 %v54, 111
  %v1666 = vpop.permute.xlu0 %1665
  %1667 = vrot.lane.b32.xlu0 %v58, 111
  %v1668 = vpop.permute.xlu0 %1667
  %1669 = vrot.lane.b32.xlu0 %v55, 111
  %v1670 = vpop.permute.xlu0 %1669
  %1671 = vrot.lane.b32.xlu0 %v59, 111
  %v1672 = vpop.permute.xlu0 %1671
  %vm1673 = vcmp.lt.s32.totalorder %v71, 111
  %v1674 = vsel %vm1673, %v1670, %v1672
  %v1675 = vsel %vm1673, %v1668, %v1670
  %v1676 = vsel %vm1673, %v1666, %v1668
  %v1677 = vsel %vm1673, %v1672, %v1666
  %s1678 = scalar_lea.vmem %s4, 32
  %v1679 = vld [vmem:[%s1678] ss:$8 sm:$0xf]
  %v1681 = vlaneseq
  %v1682 = vshrl.u32 %v1681, 7
  %v1683 = vsub.s32 0, %v1682
  %v1684 = vrot.slane %v1679, %v1683
  %v1685 = vlaneseq
  %v1686 = vshrl.u32 %v1685, 7
  %v1687 = vsub.s32 1, %v1686
  %v1688 = vrot.slane %v1679, %v1687
  %v1689 = vlaneseq
  %v1690 = vshrl.u32 %v1689, 7
  %v1691 = vsub.s32 2, %v1690
  %v1692 = vrot.slane %v1679, %v1691
  %v1693 = vlaneseq
  %v1694 = vshrl.u32 %v1693, 7
  %v1695 = vsub.s32 3, %v1694
  %v1696 = vrot.slane %v1679, %v1695
  %v1701 = vmul.f32 %v1676, %v1684
  %v1702 = vmul.f32 %v1675, %v1688
  %v1703 = vmul.f32 %v1674, %v1692
  %v1704 = vmul.f32 %v1677, %v1696
  %s1705 = scalar_lea.vmem %s3, 64
  %v1706 = vld [vmem:[%s1705] sm:$0xff]
  %v1708 = vsel %vm146, %v1706, 0
  %v1711 = vsel %vm150, %v1701, 0
  %v1714 = vsel %vm150, %v1702, 0
  %v1717 = vsel %vm150, %v1703, 0
  %v1720 = vsel %vm150, %v1704, 0
  %1722 = vmatprep.subr.mxu0 0.0
  %1723 = vmatpush1.msra.mxu0 0.0
  %1724 = vmatprep.subr.mxu0 0.0
  %1725 = vmatpush1.msra.mxu0 0.0
  %1726 = vmatprep.subr.mxu0 0.0
  %1727 = vmatpush1.msra.mxu0 0.0
  %1728 = vmatprep.subr.mxu0 0.0
  %1729 = vmatpush1.msra.mxu0 0.0
  %1730 = vmatprep.subr.mxu0 0.0
  %1731 = vmatpush1.msra.mxu0 0.0
  %1732 = vmatprep.subr.mxu0 0.0
  %1733 = vmatpush1.msra.mxu0 0.0
  %1734 = vmatprep.subr.mxu0 0.0
  %1735 = vmatpush1.msra.mxu0 0.0
  %1736 = vmatprep.subr.mxu0 0.0
  %1737 = vmatpush1.msra.mxu0 0.0
  %1738 = vmatprep.subr.mxu0 0.0
  %1739 = vmatpush1.msra.mxu0 0.0
  %1740 = vmatprep.subr.mxu0 0.0
  %1741 = vmatpush1.msra.mxu0 0.0
  %1742 = vmatprep.subr.mxu0 0.0
  %1743 = vmatpush1.msra.mxu0 0.0
  %1744 = vmatprep.subr.mxu0 0.0
  %1745 = vmatpush1.msra.mxu0 0.0
  %1746 = vmatprep.subr.mxu0 0.0
  %1747 = vmatpush1.msra.mxu0 0.0
  %1748 = vmatprep.subr.mxu0 0.0
  %1749 = vmatpush1.msra.mxu0 0.0
  %1750 = vmatprep.subr.mxu0 0.0
  %1751 = vmatpush1.msra.mxu0 0.0
  %1752 = vmatprep.subr.mxu0 %v1714
  %1753 = vmatpush1.msra.mxu0 %v1711
  %1754 = vmatprep.subr.mxu0 0.0
  %1755 = vmatpush2.msra.mxu0 0.0
  %1756 = vmatprep.subr.mxu0 0.0
  %1757 = vmatpush2.msra.mxu0 0.0
  %1758 = vmatprep.subr.mxu0 0.0
  %1759 = vmatpush2.msra.mxu0 0.0
  %1760 = vmatprep.subr.mxu0 0.0
  %1761 = vmatpush2.msra.mxu0 0.0
  %1762 = vmatprep.subr.mxu0 0.0
  %1763 = vmatpush2.msra.mxu0 0.0
  %1764 = vmatprep.subr.mxu0 0.0
  %1765 = vmatpush2.msra.mxu0 0.0
  %1766 = vmatprep.subr.mxu0 0.0
  %1767 = vmatpush2.msra.mxu0 0.0
  %1768 = vmatprep.subr.mxu0 0.0
  %1769 = vmatpush2.msra.mxu0 0.0
  %1770 = vmatprep.subr.mxu0 0.0
  %1771 = vmatpush2.msra.mxu0 0.0
  %1772 = vmatprep.subr.mxu0 0.0
  %1773 = vmatpush2.msra.mxu0 0.0
  %1774 = vmatprep.subr.mxu0 0.0
  %1775 = vmatpush2.msra.mxu0 0.0
  %1776 = vmatprep.subr.mxu0 0.0
  %1777 = vmatpush2.msra.mxu0 0.0
  %1778 = vmatprep.subr.mxu0 0.0
  %1779 = vmatpush2.msra.mxu0 0.0
  %1780 = vmatprep.subr.mxu0 0.0
  %1781 = vmatpush2.msra.mxu0 0.0
  %1782 = vmatprep.subr.mxu0 0.0
  %1783 = vmatpush2.msra.mxu0 0.0
  %1784 = vmatprep.subr.mxu0 0.0
  %1785 = vmatpush2.msra.mxu0 0.0
  %1786 = vmatprep.mubr.f32.mxu0 0.0
  %1787 = vmatmul.mubr.f32.gmra.mxu0 %v1708
  %v1788 = vpop.f32.mrf.mxu0
  %v1789 = vadd.f32 0.0, %v1788
  %v1790 = vpop.f32.mrf.mxu0
  %v1791 = vadd.f32 0.0, %v1790
  %1792 = vdwg.mxu0
  %1793 = vmatprep.subr.mxu0 0.0
  %1794 = vmatpush1.msra.mxu0 0.0
  %1795 = vmatprep.subr.mxu0 0.0
  %1796 = vmatpush1.msra.mxu0 0.0
  %1797 = vmatprep.subr.mxu0 0.0
  %1798 = vmatpush1.msra.mxu0 0.0
  %1799 = vmatprep.subr.mxu0 0.0
  %1800 = vmatpush1.msra.mxu0 0.0
  %1801 = vmatprep.subr.mxu0 0.0
  %1802 = vmatpush1.msra.mxu0 0.0
  %1803 = vmatprep.subr.mxu0 0.0
  %1804 = vmatpush1.msra.mxu0 0.0
  %1805 = vmatprep.subr.mxu0 0.0
  %1806 = vmatpush1.msra.mxu0 0.0
  %1807 = vmatprep.subr.mxu0 0.0
  %1808 = vmatpush1.msra.mxu0 0.0
  %1809 = vmatprep.subr.mxu0 0.0
  %1810 = vmatpush1.msra.mxu0 0.0
  %1811 = vmatprep.subr.mxu0 0.0
  %1812 = vmatpush1.msra.mxu0 0.0
  %1813 = vmatprep.subr.mxu0 0.0
  %1814 = vmatpush1.msra.mxu0 0.0
  %1815 = vmatprep.subr.mxu0 0.0
  %1816 = vmatpush1.msra.mxu0 0.0
  %1817 = vmatprep.subr.mxu0 0.0
  %1818 = vmatpush1.msra.mxu0 0.0
  %1819 = vmatprep.subr.mxu0 0.0
  %1820 = vmatpush1.msra.mxu0 0.0
  %1821 = vmatprep.subr.mxu0 0.0
  %1822 = vmatpush1.msra.mxu0 0.0
  %1823 = vmatprep.subr.mxu0 %v1720
  %1824 = vmatpush1.msra.mxu0 %v1717
  %1825 = vmatprep.subr.mxu0 0.0
  %1826 = vmatpush2.msra.mxu0 0.0
  %1827 = vmatprep.subr.mxu0 0.0
  %1828 = vmatpush2.msra.mxu0 0.0
  %1829 = vmatprep.subr.mxu0 0.0
  %1830 = vmatpush2.msra.mxu0 0.0
  %1831 = vmatprep.subr.mxu0 0.0
  %1832 = vmatpush2.msra.mxu0 0.0
  %1833 = vmatprep.subr.mxu0 0.0
  %1834 = vmatpush2.msra.mxu0 0.0
  %1835 = vmatprep.subr.mxu0 0.0
  %1836 = vmatpush2.msra.mxu0 0.0
  %1837 = vmatprep.subr.mxu0 0.0
  %1838 = vmatpush2.msra.mxu0 0.0
  %1839 = vmatprep.subr.mxu0 0.0
  %1840 = vmatpush2.msra.mxu0 0.0
  %1841 = vmatprep.subr.mxu0 0.0
  %1842 = vmatpush2.msra.mxu0 0.0
  %1843 = vmatprep.subr.mxu0 0.0
  %1844 = vmatpush2.msra.mxu0 0.0
  %1845 = vmatprep.subr.mxu0 0.0
  %1846 = vmatpush2.msra.mxu0 0.0
  %1847 = vmatprep.subr.mxu0 0.0
  %1848 = vmatpush2.msra.mxu0 0.0
  %1849 = vmatprep.subr.mxu0 0.0
  %1850 = vmatpush2.msra.mxu0 0.0
  %1851 = vmatprep.subr.mxu0 0.0
  %1852 = vmatpush2.msra.mxu0 0.0
  %1853 = vmatprep.subr.mxu0 0.0
  %1854 = vmatpush2.msra.mxu0 0.0
  %1855 = vmatprep.subr.mxu0 0.0
  %1856 = vmatpush2.msra.mxu0 0.0
  %1857 = vmatprep.mubr.f32.mxu0 0.0
  %1858 = vmatmul.mubr.f32.gmra.mxu0 %v1708
  %v1859 = vpop.f32.mrf.mxu0
  %v1860 = vadd.f32 0.0, %v1859
  %v1861 = vpop.f32.mrf.mxu0
  %v1862 = vadd.f32 0.0, %v1861
  %1863 = vdwg.mxu0
  %v1864 = vadd.f32 %v1661, %v1789
  %v1865 = vadd.f32 %v1662, %v1791
  %v1866 = vadd.f32 %v1663, %v1860
  %v1867 = vadd.f32 %v1664, %v1862
  %1868 = vst [vmem:[%s5] sm:$0xff] %v1864
  %1869 = vst [vmem:[%s5 + $0x8] sm:$0xff] %v1865
  %1870 = vst [vmem:[%s5 + $0x10] sm:$0xff] %v1866
  %1871 = vst [vmem:[%s5 + $0x18] sm:$0xff] %v1867
  %v1872 = vadd.f32 %v1864, %v1865
  %v1873 = vadd.f32 %v1872, %v1866
  %v1874 = vadd.f32 %v1873, %v1867
  %1875 = vadd.xlane.f32.xlu0 %v1874
  %v1876 = vpop.xlane.xlu0 %1875
  %v1877 = vmul.f32 %v1864, %v1864
  %v1878 = vmul.f32 %v1865, %v1865
  %v1879 = vmul.f32 %v1866, %v1866
  %v1880 = vmul.f32 %v1867, %v1867
  %v1881 = vadd.f32 %v1877, %v1878
  %v1882 = vadd.f32 %v1881, %v1879
  %v1883 = vadd.f32 %v1882, %v1880
  %1884 = vadd.xlane.f32.xlu0 %v1883
  %v1885 = vpop.xlane.xlu0 %1884
  %vm1886 = vcmask 7168
  %v1887 = vsel %vm1886, %v1876, %v1885
  %vm1888 = vcmask 15360
  %1889 = vst.msk [vmem:[%s6] sm:$0xff] %vm1888, %v1887
  // Predicated region
  $region22: #{kernel_transform_sep_conv.4} parent=0 // pred_check
    _
  $region23: #{kernel_transform_sep_conv.4} parent=0 // pred_check_branch
    %1891 = sbr.rel (0) target = $region25
  $region24: #{kernel_transform_sep_conv.4} parent=0 // pred_region
    _
  $region25: #{kernel_transform_sep_conv.4} parent=0 // pred_fallthru
    _
  // Predicated region
  $region26: #{kernel_transform_sep_conv.4} parent=0 // pred_check
    _
  $region27: #{kernel_transform_sep_conv.4} parent=0 // pred_check_branch
    %1893 = sbr.rel (0) target = $region29
  $region28: #{kernel_transform_sep_conv.4} parent=0 // pred_region
    _
  $region29: #{kernel_transform_sep_conv.4} parent=0 // pred_fallthru
    _
  // Predicated region
  $region30: #{kernel_transform_sep_conv.4} parent=0 // pred_check
    _
  $region31: #{kernel_transform_sep_conv.4} parent=0 // pred_check_branch
    %1895 = sbr.rel (0) target = $region33
  $region32: #{kernel_transform_sep_conv.4} parent=0 // pred_region
    _
  $region33: #{kernel_transform_sep_conv.4} parent=0 // pred_fallthru
    _
  // Predicated region
  $region34: #{kernel_transform_sep_conv.4} parent=0 // pred_check
    _
  $region35: #{kernel_transform_sep_conv.4} parent=0 // pred_check_branch
    %1897 = sbr.rel (0) target = $region37
  $region36: #{kernel_transform_sep_conv.4} parent=0 // pred_region
    _
  $region37: #{kernel_transform_sep_conv.4} parent=0 // pred_fallthru
    _

</llo_original>
